<compile_context>
chip_gen: v5e
topology: v5e:2x2
jax: 0.10.0
libtpu: 0.0.40
codegen_flags: <defaults>
</compile_context>

<pallas_src>
import functools

import jax
import jax.numpy as jnp
from jax.experimental import pallas as pl
from jax.experimental.pallas import tpu as pltpu

INPUT_SIZE = 50
HIDDEN = 20
NUM_LAYERS = 3

HP = 128            # hidden / feature padding: one full lane block
GB = 4 * HP         # gate layout: [r | z | n_x | n_h], each 128-lane aligned


def _gru_wavefront_kernel(x_ref, srv_ref, wi0_ref, wh0_ref, wf_ref, bias_ref,
                          out_ref, gx0_ref, *, L, NP, last_row):
    """3-layer GRU (wavefront schedule) + output[:, -1, :] + servings multiply.

    x_ref   : (L*NP, 128)  VMEM  zero-padded input sequence (time-major, flat)
    srv_ref : (L, 128)     VMEM  servings broadcast lane-dense (or ones)
    wi0_ref : (128, 512)   VMEM  layer-0 input weights, blocks [r|z|n_x|0]
    wh0_ref : (128, 512)   VMEM  layer-0 hidden weights, blocks [r|z|0|n_h]
    wf_ref  : (2, 256, 512) VMEM layers 1,2 fused [Wi ; Wh] stacked weights
    bias_ref: (3, 1, 512)  VMEM  per-layer bias [b_ir+b_hr | b_iz+b_hz | b_in | b_hn]
    out_ref : (L, 128)     VMEM  lane-dense padded output
    gx0_ref : (L*NP, 512)  VMEM  scratch: hoisted layer-0 input activations
    """
    f32 = jnp.float32
    cdt = wh0_ref.dtype   # matmul operand dtype (bf16 in the perf config)

    # Hoisted layer-0 input->hidden projection: one big matmul, off the
    # serial recurrence critical path. Bias already folded in.
    gx0_ref[...] = (jnp.dot(x_ref[...], wi0_ref[...],
                            preferred_element_type=f32) + bias_ref[0])

    def gate_step(g, h_old):
        # sigmoid via tanh: single EUP op + cheap VPU scale/add per gate.
        r = 0.5 * jnp.tanh(0.5 * g[:, 0:HP]) + 0.5
        z = 0.5 * jnp.tanh(0.5 * g[:, HP:2 * HP]) + 0.5
        n = jnp.tanh(g[:, 2 * HP:3 * HP] + r * g[:, 3 * HP:4 * HP])
        return (1.0 - z) * n + z * h_old

    h = [jnp.zeros((NP, HP), f32) for _ in range(NUM_LAYERS)]   # f32 state
    hc = [jnp.zeros((NP, HP), cdt) for _ in range(NUM_LAYERS)]  # matmul copies

    rows = []
    # Wavefront: at round w, layer l processes time t = w - l. All reads within
    # a round come from the previous round's bindings -> 3 independent chains.
    for w in range(L + NUM_LAYERS - 1):           # static unroll: 10 rounds
        new_h = [None] * NUM_LAYERS
        for layer in range(NUM_LAYERS):
            t = w - layer
            if not (0 <= t < L):
                continue
            if layer == 0:
                # gx precomputed; only the tiny h @ Wh stays on the serial chain.
                g = (gx0_ref[pl.ds(t * NP, NP), :]
                     + jnp.dot(hc[0], wh0_ref[...], preferred_element_type=f32))
            else:
                # Fused input+recurrence matmul: [h_{l-1}(t); h_l(t-1)] @ W.
                stacked = jnp.concatenate([hc[layer - 1], hc[layer]], axis=1)
                g = (jnp.dot(stacked, wf_ref[layer - 1],
                             preferred_element_type=f32) + bias_ref[layer])
            new_h[layer] = gate_step(g, h[layer])
            if layer == NUM_LAYERS - 1:
                # Reference semantics: output[:, -1, :] == last *batch* row at
                # every timestep. Keep just that row in registers.
                rows.append(new_h[layer][last_row:last_row + 1, :])
        for layer in range(NUM_LAYERS):
            if new_h[layer] is not None:
                h[layer] = new_h[layer]
                hc[layer] = new_h[layer].astype(cdt)

    # One dense, unmasked (L,128) store; servings multiply fused once.
    out = jnp.concatenate(rows, axis=0)            # (L, 128)
    out_ref[...] = out * srv_ref[...]


def _pack_params(params, dtype):
    """Pack PyTorch-layout GRU params into lane-aligned [r|z|n_x|n_h] slabs."""
    H = HIDDEN
    wi0 = jnp.zeros((HP, GB), jnp.float32)
    wh0 = jnp.zeros((HP, GB), jnp.float32)
    wf = jnp.zeros((NUM_LAYERS - 1, 2 * HP, GB), jnp.float32)
    bias = jnp.zeros((NUM_LAYERS, 1, GB), jnp.float32)
    for layer, (w_ih, w_hh, b_ih, b_hh) in enumerate(params):
        w_ih = w_ih.astype(jnp.float32)
        w_hh = w_hh.astype(jnp.float32)
        b_ih = b_ih.astype(jnp.float32)
        b_hh = b_hh.astype(jnp.float32)
        i_size = w_ih.shape[1]
        assert i_size <= HP and w_hh.shape[1] == H
        wir, wiz, win = w_ih[0:H], w_ih[H:2 * H], w_ih[2 * H:3 * H]
        whr, whz, whn = w_hh[0:H], w_hh[H:2 * H], w_hh[2 * H:3 * H]
        # Bias blocks: r,z get b_ih+b_hh folded; n keeps b_in (n_x) / b_hn (n_h)
        # separate because b_hn must sit inside r * (W_hn h + b_hn).
        bias = bias.at[layer, 0, 0 * HP:0 * HP + H].set(b_ih[0:H] + b_hh[0:H])
        bias = bias.at[layer, 0, 1 * HP:1 * HP + H].set(b_ih[H:2 * H] + b_hh[H:2 * H])
        bias = bias.at[layer, 0, 2 * HP:2 * HP + H].set(b_ih[2 * H:3 * H])
        bias = bias.at[layer, 0, 3 * HP:3 * HP + H].set(b_hh[2 * H:3 * H])
        if layer == 0:
            wi0 = wi0.at[:i_size, 0 * HP:0 * HP + H].set(wir.T)
            wi0 = wi0.at[:i_size, 1 * HP:1 * HP + H].set(wiz.T)
            wi0 = wi0.at[:i_size, 2 * HP:2 * HP + H].set(win.T)
            wh0 = wh0.at[:H, 0 * HP:0 * HP + H].set(whr.T)
            wh0 = wh0.at[:H, 1 * HP:1 * HP + H].set(whz.T)
            wh0 = wh0.at[:H, 3 * HP:3 * HP + H].set(whn.T)
        else:
            k = layer - 1
            # rows 0:128  <- contraction lanes of h_{l-1}(t)  (input part)
            wf = wf.at[k, 0:H, 0 * HP:0 * HP + H].set(wir.T)
            wf = wf.at[k, 0:H, 1 * HP:1 * HP + H].set(wiz.T)
            wf = wf.at[k, 0:H, 2 * HP:2 * HP + H].set(win.T)
            # rows 128:256 <- contraction lanes of h_l(t-1)   (hidden part)
            wf = wf.at[k, HP:HP + H, 0 * HP:0 * HP + H].set(whr.T)
            wf = wf.at[k, HP:HP + H, 1 * HP:1 * HP + H].set(whz.T)
            wf = wf.at[k, HP:HP + H, 3 * HP:3 * HP + H].set(whn.T)
    return wi0.astype(dtype), wh0.astype(dtype), wf.astype(dtype), bias


def gru_encoder(x, servings, params, *, is_serving_multiply=True,
                compute_dtype=jnp.bfloat16):
    """Wrapper: padding / parameter packing in plain JAX, compute in Pallas."""
    L, N, I = x.shape
    assert I <= HP, "input feature size must fit one lane block"
    NP = max(8, ((N + 7) // 8) * 8)   # pad batch to full sublanes

    # Pad batch -> 8 sublanes, features -> 128 lanes; flatten (time, batch).
    x_pad = jnp.zeros((L, NP, HP), jnp.float32)
    x_pad = x_pad.at[:, :N, :I].set(x.astype(jnp.float32))
    x_pad = x_pad.reshape(L * NP, HP).astype(compute_dtype)

    if is_serving_multiply:
        srv = servings.astype(jnp.float32).reshape(L, 1)
    else:
        srv = jnp.ones((L, 1), jnp.float32)
    srv = jnp.broadcast_to(srv, (L, HP))   # lane-dense -> no in-kernel bcast

    wi0, wh0, wf, bias = _pack_params(params, compute_dtype)

    kernel = functools.partial(_gru_wavefront_kernel, L=L, NP=NP, last_row=N - 1)
    out = pl.pallas_call(
        kernel,
        out_shape=jax.ShapeDtypeStruct((L, HP), jnp.float32),
        in_specs=[
            pl.BlockSpec(memory_space=pltpu.MemorySpace.VMEM),   # x (padded)
            pl.BlockSpec(memory_space=pltpu.MemorySpace.VMEM),   # servings
            pl.BlockSpec(memory_space=pltpu.MemorySpace.VMEM),   # wi0
            pl.BlockSpec(memory_space=pltpu.MemorySpace.VMEM),   # wh0
            pl.BlockSpec(memory_space=pltpu.MemorySpace.VMEM),   # wf (fused)
            pl.BlockSpec(memory_space=pltpu.MemorySpace.VMEM),   # bias
        ],
        out_specs=pl.BlockSpec(memory_space=pltpu.MemorySpace.VMEM),
        scratch_shapes=[
            pltpu.VMEM((L * NP, GB), jnp.float32),   # hoisted layer-0 gx
        ],
    )(x_pad, srv, wi0, wh0, wf, bias)
    return out[:, :HIDDEN]   # strip lane padding


def gru_reference(x, servings, params, *, is_serving_multiply=True):
    """Pure-JAX reference mirroring torch.nn.GRU (batch_first=False) semantics."""
    L, N, _ = x.shape
    inp = x.astype(jnp.float32)
    for (w_ih, w_hh, b_ih, b_hh) in params:
        h = jnp.zeros((N, HIDDEN), jnp.float32)
        outs = []
        for t in range(L):
            gx = inp[t] @ w_ih.T + b_ih
            gh = h @ w_hh.T + b_hh
            r = jax.nn.sigmoid(gx[:, :HIDDEN] + gh[:, :HIDDEN])
            z = jax.nn.sigmoid(gx[:, HIDDEN:2 * HIDDEN] + gh[:, HIDDEN:2 * HIDDEN])
            n = jnp.tanh(gx[:, 2 * HIDDEN:] + r * gh[:, 2 * HIDDEN:])
            h = (1.0 - z) * n + z * h
            outs.append(h)
        inp = jnp.stack(outs, axis=0)
    enc = inp[:, -1, :]
    if is_serving_multiply:
        enc = enc * servings.astype(jnp.float32)[:, None]
    return enc


def init_params(key):
    """Deterministic GRU params, PyTorch shapes: w_ih (3H,I), w_hh (3H,H), biases (3H,)."""
    params = []
    scale = 1.0 / float(jnp.sqrt(HIDDEN))
    for layer in range(NUM_LAYERS):
        i_size = INPUT_SIZE if layer == 0 else HIDDEN
        key, k1, k2, k3, k4 = jax.random.split(key, 5)
        params.append((
            jax.random.uniform(k1, (3 * HIDDEN, i_size), jnp.float32, -scale, scale),
            jax.random.uniform(k2, (3 * HIDDEN, HIDDEN), jnp.float32, -scale, scale),
            jax.random.uniform(k3, (3 * HIDDEN,), jnp.float32, -scale, scale),
            jax.random.uniform(k4, (3 * HIDDEN,), jnp.float32, -scale, scale),
        ))
    return params


if __name__ == "__main__":
    key = jax.random.PRNGKey(0)
    kx, ks, kp = jax.random.split(key, 3)

    L, N = 8, 2                                   # seq_len=8, batch=2
    x_tensors = jax.random.normal(kx, (L, N, INPUT_SIZE), jnp.float32)
    servings = jax.random.uniform(ks, (L,), jnp.float32, 0.5, 4.0)
    params = init_params(kp)

    ref = gru_reference(x_tensors, servings, params, is_serving_multiply=True)

    # 1) f32 operands: tight check -> validates the wavefront restructuring.
    out_f32 = gru_encoder(x_tensors, servings, params,
                          is_serving_multiply=True, compute_dtype=jnp.float32)
    out_f32 = jax.block_until_ready(out_f32)
    assert out_f32.shape == (L, HIDDEN), out_f32.shape
    assert jnp.allclose(out_f32, ref, atol=1e-4, rtol=1e-4), \
        float(jnp.max(jnp.abs(out_f32 - ref)))

    # 2) bf16 matmul operands (perf config): looser tolerance vs f32 reference.
    out = gru_encoder(x_tensors, servings, params,
                      is_serving_multiply=True, compute_dtype=jnp.bfloat16)
    out = jax.block_until_ready(out)
    assert out.shape == (L, HIDDEN), out.shape
    assert jnp.allclose(out, ref, atol=5e-2, rtol=5e-2), \
        float(jnp.max(jnp.abs(out - ref)))

    print("KERNEL_OK")
</pallas_src>

<mosaic_0001>
module attributes {stable_mosaic.version = 11 : i64} {
  func.func @_gru_wavefront_kernel(%arg0: memref<64x128xf32, #tpu.memory_space<vmem>>, %arg1: memref<8x128xf32, #tpu.memory_space<vmem>>, %arg2: memref<128x512xf32, #tpu.memory_space<vmem>>, %arg3: memref<128x512xf32, #tpu.memory_space<vmem>>, %arg4: memref<2x256x512xf32, #tpu.memory_space<vmem>>, %arg5: memref<3x1x512xf32, #tpu.memory_space<vmem>>, %arg6: memref<8x128xf32, #tpu.memory_space<vmem>>, %arg7: memref<64x512xf32, #tpu.memory_space<vmem>>) attributes {dimension_semantics = [], scalar_prefetch = 0 : i64, scratch_operands = 1 : i64, tpu.core_type = #tpu.core_type<tc>} {
    %c0 = arith.constant 0 : index
    %c0_0 = arith.constant 0 : index
    %0 = vector.load %arg0[%c0, %c0_0] : memref<64x128xf32, #tpu.memory_space<vmem>>, vector<64x128xf32>
    %c0_1 = arith.constant 0 : index
    %c0_2 = arith.constant 0 : index
    %1 = vector.load %arg2[%c0_1, %c0_2] : memref<128x512xf32, #tpu.memory_space<vmem>>, vector<128x512xf32>
    %cst = arith.constant dense<0.000000e+00> : vector<64x512xf32>
    %2 = tpu.matmul %0, %1, %cst {dimension_numbers = #tpu.dot_dimension_numbers<[1], [0], [0], [1], [0, 0, 1, 1], [], []>} : vector<64x128xf32>, vector<128x512xf32>, vector<64x512xf32> -> vector<64x512xf32>
    %c0_3 = arith.constant 0 : index
    %c0_4 = arith.constant 0 : index
    %c0_5 = arith.constant 0 : index
    %3 = vector.load %arg5[%c0_3, %c0_4, %c0_5] : memref<3x1x512xf32, #tpu.memory_space<vmem>>, vector<1x1x512xf32>
    %4 = vector.shape_cast %3 : vector<1x1x512xf32> to vector<1x512xf32>
    %5 = vector.broadcast %4 : vector<1x512xf32> to vector<64x512xf32>
    %6 = arith.addf %2, %5 : vector<64x512xf32>
    %c0_6 = arith.constant 0 : index
    %c0_7 = arith.constant 0 : index
    %7 = vector.load %arg7[%c0_6, %c0_7] : memref<64x512xf32, #tpu.memory_space<vmem>>, vector<64x512xf32>
    tpu.vector_store %arg7[%c0_6, %c0_7], %6 {strides = array<i32>} : memref<64x512xf32, #tpu.memory_space<vmem>>, vector<64x512xf32>,
    %cst_8 = arith.constant 0.000000e+00 : f32
    %8 = vector.broadcast %cst_8 : f32 to vector<8x128xf32>
    %cst_9 = arith.constant 0.000000e+00 : f32
    %9 = vector.broadcast %cst_9 : f32 to vector<8x128xf32>
    %cst_10 = arith.constant 0.000000e+00 : f32
    %10 = vector.broadcast %cst_10 : f32 to vector<8x128xf32>
    %cst_11 = arith.constant 0.000000e+00 : f32
    %11 = vector.broadcast %cst_11 : f32 to vector<8x128xf32>
    %cst_12 = arith.constant 0.000000e+00 : f32
    %12 = vector.broadcast %cst_12 : f32 to vector<8x128xf32>
    %cst_13 = arith.constant 0.000000e+00 : f32
    %13 = vector.broadcast %cst_13 : f32 to vector<8x128xf32>
    %c0_14 = arith.constant 0 : index
    %c0_15 = arith.constant 0 : index
    %14 = vector.load %arg7[%c0_14, %c0_15] : memref<64x512xf32, #tpu.memory_space<vmem>>, vector<8x512xf32>
    %c0_16 = arith.constant 0 : index
    %c0_17 = arith.constant 0 : index
    %15 = vector.load %arg3[%c0_16, %c0_17] : memref<128x512xf32, #tpu.memory_space<vmem>>, vector<128x512xf32>
    %cst_18 = arith.constant dense<0.000000e+00> : vector<8x512xf32>
    %16 = tpu.matmul %11, %15, %cst_18 {dimension_numbers = #tpu.dot_dimension_numbers<[1], [0], [0], [1], [0, 0, 1, 1], [], []>} : vector<8x128xf32>, vector<128x512xf32>, vector<8x512xf32> -> vector<8x512xf32>
    %17 = arith.addf %14, %16 : vector<8x512xf32>
    %18 = vector.extract_strided_slice %17 {offsets = [0, 0], sizes = [8, 128], strides = [1, 1]} : vector<8x512xf32> to vector<8x128xf32>
    %cst_19 = arith.constant 5.000000e-01 : f32
    %19 = vector.broadcast %cst_19 : f32 to vector<8x128xf32>
    %20 = arith.mulf %19, %18 : vector<8x128xf32>
    %21 = math.tanh %20 : vector<8x128xf32>
    %cst_20 = arith.constant 5.000000e-01 : f32
    %22 = vector.broadcast %cst_20 : f32 to vector<8x128xf32>
    %23 = arith.mulf %22, %21 : vector<8x128xf32>
    %cst_21 = arith.constant 5.000000e-01 : f32
    %24 = vector.broadcast %cst_21 : f32 to vector<8x128xf32>
    %25 = arith.addf %23, %24 : vector<8x128xf32>
    %26 = vector.extract_strided_slice %17 {offsets = [0, 128], sizes = [8, 128], strides = [1, 1]} : vector<8x512xf32> to vector<8x128xf32>
    %cst_22 = arith.constant 5.000000e-01 : f32
    %27 = vector.broadcast %cst_22 : f32 to vector<8x128xf32>
    %28 = arith.mulf %27, %26 : vector<8x128xf32>
    %29 = math.tanh %28 : vector<8x128xf32>
    %cst_23 = arith.constant 5.000000e-01 : f32
    %30 = vector.broadcast %cst_23 : f32 to vector<8x128xf32>
    %31 = arith.mulf %30, %29 : vector<8x128xf32>
    %cst_24 = arith.constant 5.000000e-01 : f32
    %32 = vector.broadcast %cst_24 : f32 to vector<8x128xf32>
    %33 = arith.addf %31, %32 : vector<8x128xf32>
    %34 = vector.extract_strided_slice %17 {offsets = [0, 256], sizes = [8, 128], strides = [1, 1]} : vector<8x512xf32> to vector<8x128xf32>
    %35 = vector.extract_strided_slice %17 {offsets = [0, 384], sizes = [8, 128], strides = [1, 1]} : vector<8x512xf32> to vector<8x128xf32>
    %36 = arith.mulf %25, %35 : vector<8x128xf32>
    %37 = arith.addf %34, %36 : vector<8x128xf32>
    %38 = math.tanh %37 : vector<8x128xf32>
    %cst_25 = arith.constant 1.000000e+00 : f32
    %39 = vector.broadcast %cst_25 : f32 to vector<8x128xf32>
    %40 = arith.subf %39, %33 : vector<8x128xf32>
    %41 = arith.mulf %40, %38 : vector<8x128xf32>
    %42 = arith.mulf %33, %8 : vector<8x128xf32>
    %43 = arith.addf %41, %42 : vector<8x128xf32>
    %c8 = arith.constant 8 : index
    %c0_26 = arith.constant 0 : index
    %44 = vector.load %arg7[%c8, %c0_26] : memref<64x512xf32, #tpu.memory_space<vmem>>, vector<8x512xf32>
    %c0_27 = arith.constant 0 : index
    %c0_28 = arith.constant 0 : index
    %45 = vector.load %arg3[%c0_27, %c0_28] : memref<128x512xf32, #tpu.memory_space<vmem>>, vector<128x512xf32>
    %cst_29 = arith.constant dense<0.000000e+00> : vector<8x512xf32>
    %46 = tpu.matmul %43, %45, %cst_29 {dimension_numbers = #tpu.dot_dimension_numbers<[1], [0], [0], [1], [0, 0, 1, 1], [], []>} : vector<8x128xf32>, vector<128x512xf32>, vector<8x512xf32> -> vector<8x512xf32>
    %47 = arith.addf %44, %46 : vector<8x512xf32>
    %48 = vector.extract_strided_slice %47 {offsets = [0, 0], sizes = [8, 128], strides = [1, 1]} : vector<8x512xf32> to vector<8x128xf32>
    %cst_30 = arith.constant 5.000000e-01 : f32
    %49 = vector.broadcast %cst_30 : f32 to vector<8x128xf32>
    %50 = arith.mulf %49, %48 : vector<8x128xf32>
    %51 = math.tanh %50 : vector<8x128xf32>
    %cst_31 = arith.constant 5.000000e-01 : f32
    %52 = vector.broadcast %cst_31 : f32 to vector<8x128xf32>
    %53 = arith.mulf %52, %51 : vector<8x128xf32>
    %cst_32 = arith.constant 5.000000e-01 : f32
    %54 = vector.broadcast %cst_32 : f32 to vector<8x128xf32>
    %55 = arith.addf %53, %54 : vector<8x128xf32>
    %56 = vector.extract_strided_slice %47 {offsets = [0, 128], sizes = [8, 128], strides = [1, 1]} : vector<8x512xf32> to vector<8x128xf32>
    %cst_33 = arith.constant 5.000000e-01 : f32
    %57 = vector.broadcast %cst_33 : f32 to vector<8x128xf32>
    %58 = arith.mulf %57, %56 : vector<8x128xf32>
    %59 = math.tanh %58 : vector<8x128xf32>
    %cst_34 = arith.constant 5.000000e-01 : f32
    %60 = vector.broadcast %cst_34 : f32 to vector<8x128xf32>
    %61 = arith.mulf %60, %59 : vector<8x128xf32>
    %cst_35 = arith.constant 5.000000e-01 : f32
    %62 = vector.broadcast %cst_35 : f32 to vector<8x128xf32>
    %63 = arith.addf %61, %62 : vector<8x128xf32>
    %64 = vector.extract_strided_slice %47 {offsets = [0, 256], sizes = [8, 128], strides = [1, 1]} : vector<8x512xf32> to vector<8x128xf32>
    %65 = vector.extract_strided_slice %47 {offsets = [0, 384], sizes = [8, 128], strides = [1, 1]} : vector<8x512xf32> to vector<8x128xf32>
    %66 = arith.mulf %55, %65 : vector<8x128xf32>
    %67 = arith.addf %64, %66 : vector<8x128xf32>
    %68 = math.tanh %67 : vector<8x128xf32>
    %cst_36 = arith.constant 1.000000e+00 : f32
    %69 = vector.broadcast %cst_36 : f32 to vector<8x128xf32>
    %70 = arith.subf %69, %63 : vector<8x128xf32>
    %71 = arith.mulf %70, %68 : vector<8x128xf32>
    %72 = arith.mulf %63, %43 : vector<8x128xf32>
    %73 = arith.addf %71, %72 : vector<8x128xf32>
    %74 = tpu.concatenate %43, %12 in 1 : vector<8x128xf32>, vector<8x128xf32> -> vector<8x256xf32>
    %c0_37 = arith.constant 0 : index
    %c0_38 = arith.constant 0 : index
    %c0_39 = arith.constant 0 : index
    %75 = vector.load %arg4[%c0_37, %c0_38, %c0_39] : memref<2x256x512xf32, #tpu.memory_space<vmem>>, vector<1x256x512xf32>
    %76 = vector.shape_cast %75 : vector<1x256x512xf32> to vector<256x512xf32>
    %cst_40 = arith.constant dense<0.000000e+00> : vector<8x512xf32>
    %77 = tpu.matmul %74, %76, %cst_40 {dimension_numbers = #tpu.dot_dimension_numbers<[1], [0], [0], [1], [0, 0, 1, 1], [], []>} : vector<8x256xf32>, vector<256x512xf32>, vector<8x512xf32> -> vector<8x512xf32>
    %c1 = arith.constant 1 : index
    %c0_41 = arith.constant 0 : index
    %c0_42 = arith.constant 0 : index
    %78 = vector.load %arg5[%c1, %c0_41, %c0_42] : memref<3x1x512xf32, #tpu.memory_space<vmem>>, vector<1x1x512xf32>
    %79 = vector.shape_cast %78 : vector<1x1x512xf32> to vector<1x512xf32>
    %80 = vector.broadcast %79 : vector<1x512xf32> to vector<8x512xf32>
    %81 = arith.addf %77, %80 : vector<8x512xf32>
    %82 = vector.extract_strided_slice %81 {offsets = [0, 0], sizes = [8, 128], strides = [1, 1]} : vector<8x512xf32> to vector<8x128xf32>
    %cst_43 = arith.constant 5.000000e-01 : f32
    %83 = vector.broadcast %cst_43 : f32 to vector<8x128xf32>
    %84 = arith.mulf %83, %82 : vector<8x128xf32>
    %85 = math.tanh %84 : vector<8x128xf32>
    %cst_44 = arith.constant 5.000000e-01 : f32
    %86 = vector.broadcast %cst_44 : f32 to vector<8x128xf32>
    %87 = arith.mulf %86, %85 : vector<8x128xf32>
    %cst_45 = arith.constant 5.000000e-01 : f32
    %88 = vector.broadcast %cst_45 : f32 to vector<8x128xf32>
    %89 = arith.addf %87, %88 : vector<8x128xf32>
    %90 = vector.extract_strided_slice %81 {offsets = [0, 128], sizes = [8, 128], strides = [1, 1]} : vector<8x512xf32> to vector<8x128xf32>
    %cst_46 = arith.constant 5.000000e-01 : f32
    %91 = vector.broadcast %cst_46 : f32 to vector<8x128xf32>
    %92 = arith.mulf %91, %90 : vector<8x128xf32>
    %93 = math.tanh %92 : vector<8x128xf32>
    %cst_47 = arith.constant 5.000000e-01 : f32
    %94 = vector.broadcast %cst_47 : f32 to vector<8x128xf32>
    %95 = arith.mulf %94, %93 : vector<8x128xf32>
    %cst_48 = arith.constant 5.000000e-01 : f32
    %96 = vector.broadcast %cst_48 : f32 to vector<8x128xf32>
    %97 = arith.addf %95, %96 : vector<8x128xf32>
    %98 = vector.extract_strided_slice %81 {offsets = [0, 256], sizes = [8, 128], strides = [1, 1]} : vector<8x512xf32> to vector<8x128xf32>
    %99 = vector.extract_strided_slice %81 {offsets = [0, 384], sizes = [8, 128], strides = [1, 1]} : vector<8x512xf32> to vector<8x128xf32>
    %100 = arith.mulf %89, %99 : vector<8x128xf32>
    %101 = arith.addf %98, %100 : vector<8x128xf32>
    %102 = math.tanh %101 : vector<8x128xf32>
    %cst_49 = arith.constant 1.000000e+00 : f32
    %103 = vector.broadcast %cst_49 : f32 to vector<8x128xf32>
    %104 = arith.subf %103, %97 : vector<8x128xf32>
    %105 = arith.mulf %104, %102 : vector<8x128xf32>
    %106 = arith.mulf %97, %9 : vector<8x128xf32>
    %107 = arith.addf %105, %106 : vector<8x128xf32>
    %c16 = arith.constant 16 : index
    %c0_50 = arith.constant 0 : index
    %108 = vector.load %arg7[%c16, %c0_50] : memref<64x512xf32, #tpu.memory_space<vmem>>, vector<8x512xf32>
    %c0_51 = arith.constant 0 : index
    %c0_52 = arith.constant 0 : index
    %109 = vector.load %arg3[%c0_51, %c0_52] : memref<128x512xf32, #tpu.memory_space<vmem>>, vector<128x512xf32>
    %cst_53 = arith.constant dense<0.000000e+00> : vector<8x512xf32>
    %110 = tpu.matmul %73, %109, %cst_53 {dimension_numbers = #tpu.dot_dimension_numbers<[1], [0], [0], [1], [0, 0, 1, 1], [], []>} : vector<8x128xf32>, vector<128x512xf32>, vector<8x512xf32> -> vector<8x512xf32>
    %111 = arith.addf %108, %110 : vector<8x512xf32>
    %112 = vector.extract_strided_slice %111 {offsets = [0, 0], sizes = [8, 128], strides = [1, 1]} : vector<8x512xf32> to vector<8x128xf32>
    %cst_54 = arith.constant 5.000000e-01 : f32
    %113 = vector.broadcast %cst_54 : f32 to vector<8x128xf32>
    %114 = arith.mulf %113, %112 : vector<8x128xf32>
    %115 = math.tanh %114 : vector<8x128xf32>
    %cst_55 = arith.constant 5.000000e-01 : f32
    %116 = vector.broadcast %cst_55 : f32 to vector<8x128xf32>
    %117 = arith.mulf %116, %115 : vector<8x128xf32>
    %cst_56 = arith.constant 5.000000e-01 : f32
    %118 = vector.broadcast %cst_56 : f32 to vector<8x128xf32>
    %119 = arith.addf %117, %118 : vector<8x128xf32>
    %120 = vector.extract_strided_slice %111 {offsets = [0, 128], sizes = [8, 128], strides = [1, 1]} : vector<8x512xf32> to vector<8x128xf32>
    %cst_57 = arith.constant 5.000000e-01 : f32
    %121 = vector.broadcast %cst_57 : f32 to vector<8x128xf32>
    %122 = arith.mulf %121, %120 : vector<8x128xf32>
    %123 = math.tanh %122 : vector<8x128xf32>
    %cst_58 = arith.constant 5.000000e-01 : f32
    %124 = vector.broadcast %cst_58 : f32 to vector<8x128xf32>
    %125 = arith.mulf %124, %123 : vector<8x128xf32>
    %cst_59 = arith.constant 5.000000e-01 : f32
    %126 = vector.broadcast %cst_59 : f32 to vector<8x128xf32>
    %127 = arith.addf %125, %126 : vector<8x128xf32>
    %128 = vector.extract_strided_slice %111 {offsets = [0, 256], sizes = [8, 128], strides = [1, 1]} : vector<8x512xf32> to vector<8x128xf32>
    %129 = vector.extract_strided_slice %111 {offsets = [0, 384], sizes = [8, 128], strides = [1, 1]} : vector<8x512xf32> to vector<8x128xf32>
    %130 = arith.mulf %119, %129 : vector<8x128xf32>
    %131 = arith.addf %128, %130 : vector<8x128xf32>
    %132 = math.tanh %131 : vector<8x128xf32>
    %cst_60 = arith.constant 1.000000e+00 : f32
    %133 = vector.broadcast %cst_60 : f32 to vector<8x128xf32>
    %134 = arith.subf %133, %127 : vector<8x128xf32>
    %135 = arith.mulf %134, %132 : vector<8x128xf32>
    %136 = arith.mulf %127, %73 : vector<8x128xf32>
    %137 = arith.addf %135, %136 : vector<8x128xf32>
    %138 = tpu.concatenate %73, %107 in 1 : vector<8x128xf32>, vector<8x128xf32> -> vector<8x256xf32>
    %c0_61 = arith.constant 0 : index
    %c0_62 = arith.constant 0 : index
    %c0_63 = arith.constant 0 : index
    %139 = vector.load %arg4[%c0_61, %c0_62, %c0_63] : memref<2x256x512xf32, #tpu.memory_space<vmem>>, vector<1x256x512xf32>
    %140 = vector.shape_cast %139 : vector<1x256x512xf32> to vector<256x512xf32>
    %cst_64 = arith.constant dense<0.000000e+00> : vector<8x512xf32>
    %141 = tpu.matmul %138, %140, %cst_64 {dimension_numbers = #tpu.dot_dimension_numbers<[1], [0], [0], [1], [0, 0, 1, 1], [], []>} : vector<8x256xf32>, vector<256x512xf32>, vector<8x512xf32> -> vector<8x512xf32>
    %c1_65 = arith.constant 1 : index
    %c0_66 = arith.constant 0 : index
    %c0_67 = arith.constant 0 : index
    %142 = vector.load %arg5[%c1_65, %c0_66, %c0_67] : memref<3x1x512xf32, #tpu.memory_space<vmem>>, vector<1x1x512xf32>
    %143 = vector.shape_cast %142 : vector<1x1x512xf32> to vector<1x512xf32>
    %144 = vector.broadcast %143 : vector<1x512xf32> to vector<8x512xf32>
    %145 = arith.addf %141, %144 : vector<8x512xf32>
    %146 = vector.extract_strided_slice %145 {offsets = [0, 0], sizes = [8, 128], strides = [1, 1]} : vector<8x512xf32> to vector<8x128xf32>
    %cst_68 = arith.constant 5.000000e-01 : f32
    %147 = vector.broadcast %cst_68 : f32 to vector<8x128xf32>
    %148 = arith.mulf %147, %146 : vector<8x128xf32>
    %149 = math.tanh %148 : vector<8x128xf32>
    %cst_69 = arith.constant 5.000000e-01 : f32
    %150 = vector.broadcast %cst_69 : f32 to vector<8x128xf32>
    %151 = arith.mulf %150, %149 : vector<8x128xf32>
    %cst_70 = arith.constant 5.000000e-01 : f32
    %152 = vector.broadcast %cst_70 : f32 to vector<8x128xf32>
    %153 = arith.addf %151, %152 : vector<8x128xf32>
    %154 = vector.extract_strided_slice %145 {offsets = [0, 128], sizes = [8, 128], strides = [1, 1]} : vector<8x512xf32> to vector<8x128xf32>
    %cst_71 = arith.constant 5.000000e-01 : f32
    %155 = vector.broadcast %cst_71 : f32 to vector<8x128xf32>
    %156 = arith.mulf %155, %154 : vector<8x128xf32>
    %157 = math.tanh %156 : vector<8x128xf32>
    %cst_72 = arith.constant 5.000000e-01 : f32
    %158 = vector.broadcast %cst_72 : f32 to vector<8x128xf32>
    %159 = arith.mulf %158, %157 : vector<8x128xf32>
    %cst_73 = arith.constant 5.000000e-01 : f32
    %160 = vector.broadcast %cst_73 : f32 to vector<8x128xf32>
    %161 = arith.addf %159, %160 : vector<8x128xf32>
    %162 = vector.extract_strided_slice %145 {offsets = [0, 256], sizes = [8, 128], strides = [1, 1]} : vector<8x512xf32> to vector<8x128xf32>
    %163 = vector.extract_strided_slice %145 {offsets = [0, 384], sizes = [8, 128], strides = [1, 1]} : vector<8x512xf32> to vector<8x128xf32>
    %164 = arith.mulf %153, %163 : vector<8x128xf32>
    %165 = arith.addf %162, %164 : vector<8x128xf32>
    %166 = math.tanh %165 : vector<8x128xf32>
    %cst_74 = arith.constant 1.000000e+00 : f32
    %167 = vector.broadcast %cst_74 : f32 to vector<8x128xf32>
    %168 = arith.subf %167, %161 : vector<8x128xf32>
    %169 = arith.mulf %168, %166 : vector<8x128xf32>
    %170 = arith.mulf %161, %107 : vector<8x128xf32>
    %171 = arith.addf %169, %170 : vector<8x128xf32>
    %172 = tpu.concatenate %107, %13 in 1 : vector<8x128xf32>, vector<8x128xf32> -> vector<8x256xf32>
    %c1_75 = arith.constant 1 : index
    %c0_76 = arith.constant 0 : index
    %c0_77 = arith.constant 0 : index
    %173 = vector.load %arg4[%c1_75, %c0_76, %c0_77] : memref<2x256x512xf32, #tpu.memory_space<vmem>>, vector<1x256x512xf32>
    %174 = vector.shape_cast %173 : vector<1x256x512xf32> to vector<256x512xf32>
    %cst_78 = arith.constant dense<0.000000e+00> : vector<8x512xf32>
    %175 = tpu.matmul %172, %174, %cst_78 {dimension_numbers = #tpu.dot_dimension_numbers<[1], [0], [0], [1], [0, 0, 1, 1], [], []>} : vector<8x256xf32>, vector<256x512xf32>, vector<8x512xf32> -> vector<8x512xf32>
    %c2 = arith.constant 2 : index
    %c0_79 = arith.constant 0 : index
    %c0_80 = arith.constant 0 : index
    %176 = vector.load %arg5[%c2, %c0_79, %c0_80] : memref<3x1x512xf32, #tpu.memory_space<vmem>>, vector<1x1x512xf32>
    %177 = vector.shape_cast %176 : vector<1x1x512xf32> to vector<1x512xf32>
    %178 = vector.broadcast %177 : vector<1x512xf32> to vector<8x512xf32>
    %179 = arith.addf %175, %178 : vector<8x512xf32>
    %180 = vector.extract_strided_slice %179 {offsets = [0, 0], sizes = [8, 128], strides = [1, 1]} : vector<8x512xf32> to vector<8x128xf32>
    %cst_81 = arith.constant 5.000000e-01 : f32
    %181 = vector.broadcast %cst_81 : f32 to vector<8x128xf32>
    %182 = arith.mulf %181, %180 : vector<8x128xf32>
    %183 = math.tanh %182 : vector<8x128xf32>
    %cst_82 = arith.constant 5.000000e-01 : f32
    %184 = vector.broadcast %cst_82 : f32 to vector<8x128xf32>
    %185 = arith.mulf %184, %183 : vector<8x128xf32>
    %cst_83 = arith.constant 5.000000e-01 : f32
    %186 = vector.broadcast %cst_83 : f32 to vector<8x128xf32>
    %187 = arith.addf %185, %186 : vector<8x128xf32>
    %188 = vector.extract_strided_slice %179 {offsets = [0, 128], sizes = [8, 128], strides = [1, 1]} : vector<8x512xf32> to vector<8x128xf32>
    %cst_84 = arith.constant 5.000000e-01 : f32
    %189 = vector.broadcast %cst_84 : f32 to vector<8x128xf32>
    %190 = arith.mulf %189, %188 : vector<8x128xf32>
    %191 = math.tanh %190 : vector<8x128xf32>
    %cst_85 = arith.constant 5.000000e-01 : f32
    %192 = vector.broadcast %cst_85 : f32 to vector<8x128xf32>
    %193 = arith.mulf %192, %191 : vector<8x128xf32>
    %cst_86 = arith.constant 5.000000e-01 : f32
    %194 = vector.broadcast %cst_86 : f32 to vector<8x128xf32>
    %195 = arith.addf %193, %194 : vector<8x128xf32>
    %196 = vector.extract_strided_slice %179 {offsets = [0, 256], sizes = [8, 128], strides = [1, 1]} : vector<8x512xf32> to vector<8x128xf32>
    %197 = vector.extract_strided_slice %179 {offsets = [0, 384], sizes = [8, 128], strides = [1, 1]} : vector<8x512xf32> to vector<8x128xf32>
    %198 = arith.mulf %187, %197 : vector<8x128xf32>
    %199 = arith.addf %196, %198 : vector<8x128xf32>
    %200 = math.tanh %199 : vector<8x128xf32>
    %cst_87 = arith.constant 1.000000e+00 : f32
    %201 = vector.broadcast %cst_87 : f32 to vector<8x128xf32>
    %202 = arith.subf %201, %195 : vector<8x128xf32>
    %203 = arith.mulf %202, %200 : vector<8x128xf32>
    %204 = arith.mulf %195, %10 : vector<8x128xf32>
    %205 = arith.addf %203, %204 : vector<8x128xf32>
    %206 = vector.extract_strided_slice %205 {offsets = [1, 0], sizes = [1, 128], strides = [1, 1]} : vector<8x128xf32> to vector<1x128xf32>
    %c24 = arith.constant 24 : index
    %c0_88 = arith.constant 0 : index
    %207 = vector.load %arg7[%c24, %c0_88] : memref<64x512xf32, #tpu.memory_space<vmem>>, vector<8x512xf32>
    %c0_89 = arith.constant 0 : index
    %c0_90 = arith.constant 0 : index
    %208 = vector.load %arg3[%c0_89, %c0_90] : memref<128x512xf32, #tpu.memory_space<vmem>>, vector<128x512xf32>
    %cst_91 = arith.constant dense<0.000000e+00> : vector<8x512xf32>
    %209 = tpu.matmul %137, %208, %cst_91 {dimension_numbers = #tpu.dot_dimension_numbers<[1], [0], [0], [1], [0, 0, 1, 1], [], []>} : vector<8x128xf32>, vector<128x512xf32>, vector<8x512xf32> -> vector<8x512xf32>
    %210 = arith.addf %207, %209 : vector<8x512xf32>
    %211 = vector.extract_strided_slice %210 {offsets = [0, 0], sizes = [8, 128], strides = [1, 1]} : vector<8x512xf32> to vector<8x128xf32>
    %cst_92 = arith.constant 5.000000e-01 : f32
    %212 = vector.broadcast %cst_92 : f32 to vector<8x128xf32>
    %213 = arith.mulf %212, %211 : vector<8x128xf32>
    %214 = math.tanh %213 : vector<8x128xf32>
    %cst_93 = arith.constant 5.000000e-01 : f32
    %215 = vector.broadcast %cst_93 : f32 to vector<8x128xf32>
    %216 = arith.mulf %215, %214 : vector<8x128xf32>
    %cst_94 = arith.constant 5.000000e-01 : f32
    %217 = vector.broadcast %cst_94 : f32 to vector<8x128xf32>
    %218 = arith.addf %216, %217 : vector<8x128xf32>
    %219 = vector.extract_strided_slice %210 {offsets = [0, 128], sizes = [8, 128], strides = [1, 1]} : vector<8x512xf32> to vector<8x128xf32>
    %cst_95 = arith.constant 5.000000e-01 : f32
    %220 = vector.broadcast %cst_95 : f32 to vector<8x128xf32>
    %221 = arith.mulf %220, %219 : vector<8x128xf32>
    %222 = math.tanh %221 : vector<8x128xf32>
    %cst_96 = arith.constant 5.000000e-01 : f32
    %223 = vector.broadcast %cst_96 : f32 to vector<8x128xf32>
    %224 = arith.mulf %223, %222 : vector<8x128xf32>
    %cst_97 = arith.constant 5.000000e-01 : f32
    %225 = vector.broadcast %cst_97 : f32 to vector<8x128xf32>
    %226 = arith.addf %224, %225 : vector<8x128xf32>
    %227 = vector.extract_strided_slice %210 {offsets = [0, 256], sizes = [8, 128], strides = [1, 1]} : vector<8x512xf32> to vector<8x128xf32>
    %228 = vector.extract_strided_slice %210 {offsets = [0, 384], sizes = [8, 128], strides = [1, 1]} : vector<8x512xf32> to vector<8x128xf32>
    %229 = arith.mulf %218, %228 : vector<8x128xf32>
    %230 = arith.addf %227, %229 : vector<8x128xf32>
    %231 = math.tanh %230 : vector<8x128xf32>
    %cst_98 = arith.constant 1.000000e+00 : f32
    %232 = vector.broadcast %cst_98 : f32 to vector<8x128xf32>
    %233 = arith.subf %232, %226 : vector<8x128xf32>
    %234 = arith.mulf %233, %231 : vector<8x128xf32>
    %235 = arith.mulf %226, %137 : vector<8x128xf32>
    %236 = arith.addf %234, %235 : vector<8x128xf32>
    %237 = tpu.concatenate %137, %171 in 1 : vector<8x128xf32>, vector<8x128xf32> -> vector<8x256xf32>
    %c0_99 = arith.constant 0 : index
    %c0_100 = arith.constant 0 : index
    %c0_101 = arith.constant 0 : index
    %238 = vector.load %arg4[%c0_99, %c0_100, %c0_101] : memref<2x256x512xf32, #tpu.memory_space<vmem>>, vector<1x256x512xf32>
    %239 = vector.shape_cast %238 : vector<1x256x512xf32> to vector<256x512xf32>
    %cst_102 = arith.constant dense<0.000000e+00> : vector<8x512xf32>
    %240 = tpu.matmul %237, %239, %cst_102 {dimension_numbers = #tpu.dot_dimension_numbers<[1], [0], [0], [1], [0, 0, 1, 1], [], []>} : vector<8x256xf32>, vector<256x512xf32>, vector<8x512xf32> -> vector<8x512xf32>
    %c1_103 = arith.constant 1 : index
    %c0_104 = arith.constant 0 : index
    %c0_105 = arith.constant 0 : index
    %241 = vector.load %arg5[%c1_103, %c0_104, %c0_105] : memref<3x1x512xf32, #tpu.memory_space<vmem>>, vector<1x1x512xf32>
    %242 = vector.shape_cast %241 : vector<1x1x512xf32> to vector<1x512xf32>
    %243 = vector.broadcast %242 : vector<1x512xf32> to vector<8x512xf32>
    %244 = arith.addf %240, %243 : vector<8x512xf32>
    %245 = vector.extract_strided_slice %244 {offsets = [0, 0], sizes = [8, 128], strides = [1, 1]} : vector<8x512xf32> to vector<8x128xf32>
    %cst_106 = arith.constant 5.000000e-01 : f32
    %246 = vector.broadcast %cst_106 : f32 to vector<8x128xf32>
    %247 = arith.mulf %246, %245 : vector<8x128xf32>
    %248 = math.tanh %247 : vector<8x128xf32>
    %cst_107 = arith.constant 5.000000e-01 : f32
    %249 = vector.broadcast %cst_107 : f32 to vector<8x128xf32>
    %250 = arith.mulf %249, %248 : vector<8x128xf32>
    %cst_108 = arith.constant 5.000000e-01 : f32
    %251 = vector.broadcast %cst_108 : f32 to vector<8x128xf32>
    %252 = arith.addf %250, %251 : vector<8x128xf32>
    %253 = vector.extract_strided_slice %244 {offsets = [0, 128], sizes = [8, 128], strides = [1, 1]} : vector<8x512xf32> to vector<8x128xf32>
    %cst_109 = arith.constant 5.000000e-01 : f32
    %254 = vector.broadcast %cst_109 : f32 to vector<8x128xf32>
    %255 = arith.mulf %254, %253 : vector<8x128xf32>
    %256 = math.tanh %255 : vector<8x128xf32>
    %cst_110 = arith.constant 5.000000e-01 : f32
    %257 = vector.broadcast %cst_110 : f32 to vector<8x128xf32>
    %258 = arith.mulf %257, %256 : vector<8x128xf32>
    %cst_111 = arith.constant 5.000000e-01 : f32
    %259 = vector.broadcast %cst_111 : f32 to vector<8x128xf32>
    %260 = arith.addf %258, %259 : vector<8x128xf32>
    %261 = vector.extract_strided_slice %244 {offsets = [0, 256], sizes = [8, 128], strides = [1, 1]} : vector<8x512xf32> to vector<8x128xf32>
    %262 = vector.extract_strided_slice %244 {offsets = [0, 384], sizes = [8, 128], strides = [1, 1]} : vector<8x512xf32> to vector<8x128xf32>
    %263 = arith.mulf %252, %262 : vector<8x128xf32>
    %264 = arith.addf %261, %263 : vector<8x128xf32>
    %265 = math.tanh %264 : vector<8x128xf32>
    %cst_112 = arith.constant 1.000000e+00 : f32
    %266 = vector.broadcast %cst_112 : f32 to vector<8x128xf32>
    %267 = arith.subf %266, %260 : vector<8x128xf32>
    %268 = arith.mulf %267, %265 : vector<8x128xf32>
    %269 = arith.mulf %260, %171 : vector<8x128xf32>
    %270 = arith.addf %268, %269 : vector<8x128xf32>
    %271 = tpu.concatenate %171, %205 in 1 : vector<8x128xf32>, vector<8x128xf32> -> vector<8x256xf32>
    %c1_113 = arith.constant 1 : index
    %c0_114 = arith.constant 0 : index
    %c0_115 = arith.constant 0 : index
    %272 = vector.load %arg4[%c1_113, %c0_114, %c0_115] : memref<2x256x512xf32, #tpu.memory_space<vmem>>, vector<1x256x512xf32>
    %273 = vector.shape_cast %272 : vector<1x256x512xf32> to vector<256x512xf32>
    %cst_116 = arith.constant dense<0.000000e+00> : vector<8x512xf32>
    %274 = tpu.matmul %271, %273, %cst_116 {dimension_numbers = #tpu.dot_dimension_numbers<[1], [0], [0], [1], [0, 0, 1, 1], [], []>} : vector<8x256xf32>, vector<256x512xf32>, vector<8x512xf32> -> vector<8x512xf32>
    %c2_117 = arith.constant 2 : index
    %c0_118 = arith.constant 0 : index
    %c0_119 = arith.constant 0 : index
    %275 = vector.load %arg5[%c2_117, %c0_118, %c0_119] : memref<3x1x512xf32, #tpu.memory_space<vmem>>, vector<1x1x512xf32>
    %276 = vector.shape_cast %275 : vector<1x1x512xf32> to vector<1x512xf32>
    %277 = vector.broadcast %276 : vector<1x512xf32> to vector<8x512xf32>
    %278 = arith.addf %274, %277 : vector<8x512xf32>
    %279 = vector.extract_strided_slice %278 {offsets = [0, 0], sizes = [8, 128], strides = [1, 1]} : vector<8x512xf32> to vector<8x128xf32>
    %cst_120 = arith.constant 5.000000e-01 : f32
    %280 = vector.broadcast %cst_120 : f32 to vector<8x128xf32>
    %281 = arith.mulf %280, %279 : vector<8x128xf32>
    %282 = math.tanh %281 : vector<8x128xf32>
    %cst_121 = arith.constant 5.000000e-01 : f32
    %283 = vector.broadcast %cst_121 : f32 to vector<8x128xf32>
    %284 = arith.mulf %283, %282 : vector<8x128xf32>
    %cst_122 = arith.constant 5.000000e-01 : f32
    %285 = vector.broadcast %cst_122 : f32 to vector<8x128xf32>
    %286 = arith.addf %284, %285 : vector<8x128xf32>
    %287 = vector.extract_strided_slice %278 {offsets = [0, 128], sizes = [8, 128], strides = [1, 1]} : vector<8x512xf32> to vector<8x128xf32>
    %cst_123 = arith.constant 5.000000e-01 : f32
    %288 = vector.broadcast %cst_123 : f32 to vector<8x128xf32>
    %289 = arith.mulf %288, %287 : vector<8x128xf32>
    %290 = math.tanh %289 : vector<8x128xf32>
    %cst_124 = arith.constant 5.000000e-01 : f32
    %291 = vector.broadcast %cst_124 : f32 to vector<8x128xf32>
    %292 = arith.mulf %291, %290 : vector<8x128xf32>
    %cst_125 = arith.constant 5.000000e-01 : f32
    %293 = vector.broadcast %cst_125 : f32 to vector<8x128xf32>
    %294 = arith.addf %292, %293 : vector<8x128xf32>
    %295 = vector.extract_strided_slice %278 {offsets = [0, 256], sizes = [8, 128], strides = [1, 1]} : vector<8x512xf32> to vector<8x128xf32>
    %296 = vector.extract_strided_slice %278 {offsets = [0, 384], sizes = [8, 128], strides = [1, 1]} : vector<8x512xf32> to vector<8x128xf32>
    %297 = arith.mulf %286, %296 : vector<8x128xf32>
    %298 = arith.addf %295, %297 : vector<8x128xf32>
    %299 = math.tanh %298 : vector<8x128xf32>
    %cst_126 = arith.constant 1.000000e+00 : f32
    %300 = vector.broadcast %cst_126 : f32 to vector<8x128xf32>
    %301 = arith.subf %300, %294 : vector<8x128xf32>
    %302 = arith.mulf %301, %299 : vector<8x128xf32>
    %303 = arith.mulf %294, %205 : vector<8x128xf32>
    %304 = arith.addf %302, %303 : vector<8x128xf32>
    %305 = vector.extract_strided_slice %304 {offsets = [1, 0], sizes = [1, 128], strides = [1, 1]} : vector<8x128xf32> to vector<1x128xf32>
    %c32 = arith.constant 32 : index
    %c0_127 = arith.constant 0 : index
    %306 = vector.load %arg7[%c32, %c0_127] : memref<64x512xf32, #tpu.memory_space<vmem>>, vector<8x512xf32>
    %c0_128 = arith.constant 0 : index
    %c0_129 = arith.constant 0 : index
    %307 = vector.load %arg3[%c0_128, %c0_129] : memref<128x512xf32, #tpu.memory_space<vmem>>, vector<128x512xf32>
    %cst_130 = arith.constant dense<0.000000e+00> : vector<8x512xf32>
    %308 = tpu.matmul %236, %307, %cst_130 {dimension_numbers = #tpu.dot_dimension_numbers<[1], [0], [0], [1], [0, 0, 1, 1], [], []>} : vector<8x128xf32>, vector<128x512xf32>, vector<8x512xf32> -> vector<8x512xf32>
    %309 = arith.addf %306, %308 : vector<8x512xf32>
    %310 = vector.extract_strided_slice %309 {offsets = [0, 0], sizes = [8, 128], strides = [1, 1]} : vector<8x512xf32> to vector<8x128xf32>
    %cst_131 = arith.constant 5.000000e-01 : f32
    %311 = vector.broadcast %cst_131 : f32 to vector<8x128xf32>
    %312 = arith.mulf %311, %310 : vector<8x128xf32>
    %313 = math.tanh %312 : vector<8x128xf32>
    %cst_132 = arith.constant 5.000000e-01 : f32
    %314 = vector.broadcast %cst_132 : f32 to vector<8x128xf32>
    %315 = arith.mulf %314, %313 : vector<8x128xf32>
    %cst_133 = arith.constant 5.000000e-01 : f32
    %316 = vector.broadcast %cst_133 : f32 to vector<8x128xf32>
    %317 = arith.addf %315, %316 : vector<8x128xf32>
    %318 = vector.extract_strided_slice %309 {offsets = [0, 128], sizes = [8, 128], strides = [1, 1]} : vector<8x512xf32> to vector<8x128xf32>
    %cst_134 = arith.constant 5.000000e-01 : f32
    %319 = vector.broadcast %cst_134 : f32 to vector<8x128xf32>
    %320 = arith.mulf %319, %318 : vector<8x128xf32>
    %321 = math.tanh %320 : vector<8x128xf32>
    %cst_135 = arith.constant 5.000000e-01 : f32
    %322 = vector.broadcast %cst_135 : f32 to vector<8x128xf32>
    %323 = arith.mulf %322, %321 : vector<8x128xf32>
    %cst_136 = arith.constant 5.000000e-01 : f32
    %324 = vector.broadcast %cst_136 : f32 to vector<8x128xf32>
    %325 = arith.addf %323, %324 : vector<8x128xf32>
    %326 = vector.extract_strided_slice %309 {offsets = [0, 256], sizes = [8, 128], strides = [1, 1]} : vector<8x512xf32> to vector<8x128xf32>
    %327 = vector.extract_strided_slice %309 {offsets = [0, 384], sizes = [8, 128], strides = [1, 1]} : vector<8x512xf32> to vector<8x128xf32>
    %328 = arith.mulf %317, %327 : vector<8x128xf32>
    %329 = arith.addf %326, %328 : vector<8x128xf32>
    %330 = math.tanh %329 : vector<8x128xf32>
    %cst_137 = arith.constant 1.000000e+00 : f32
    %331 = vector.broadcast %cst_137 : f32 to vector<8x128xf32>
    %332 = arith.subf %331, %325 : vector<8x128xf32>
    %333 = arith.mulf %332, %330 : vector<8x128xf32>
    %334 = arith.mulf %325, %236 : vector<8x128xf32>
    %335 = arith.addf %333, %334 : vector<8x128xf32>
    %336 = tpu.concatenate %236, %270 in 1 : vector<8x128xf32>, vector<8x128xf32> -> vector<8x256xf32>
    %c0_138 = arith.constant 0 : index
    %c0_139 = arith.constant 0 : index
    %c0_140 = arith.constant 0 : index
    %337 = vector.load %arg4[%c0_138, %c0_139, %c0_140] : memref<2x256x512xf32, #tpu.memory_space<vmem>>, vector<1x256x512xf32>
    %338 = vector.shape_cast %337 : vector<1x256x512xf32> to vector<256x512xf32>
    %cst_141 = arith.constant dense<0.000000e+00> : vector<8x512xf32>
    %339 = tpu.matmul %336, %338, %cst_141 {dimension_numbers = #tpu.dot_dimension_numbers<[1], [0], [0], [1], [0, 0, 1, 1], [], []>} : vector<8x256xf32>, vector<256x512xf32>, vector<8x512xf32> -> vector<8x512xf32>
    %c1_142 = arith.constant 1 : index
    %c0_143 = arith.constant 0 : index
    %c0_144 = arith.constant 0 : index
    %340 = vector.load %arg5[%c1_142, %c0_143, %c0_144] : memref<3x1x512xf32, #tpu.memory_space<vmem>>, vector<1x1x512xf32>
    %341 = vector.shape_cast %340 : vector<1x1x512xf32> to vector<1x512xf32>
    %342 = vector.broadcast %341 : vector<1x512xf32> to vector<8x512xf32>
    %343 = arith.addf %339, %342 : vector<8x512xf32>
    %344 = vector.extract_strided_slice %343 {offsets = [0, 0], sizes = [8, 128], strides = [1, 1]} : vector<8x512xf32> to vector<8x128xf32>
    %cst_145 = arith.constant 5.000000e-01 : f32
    %345 = vector.broadcast %cst_145 : f32 to vector<8x128xf32>
    %346 = arith.mulf %345, %344 : vector<8x128xf32>
    %347 = math.tanh %346 : vector<8x128xf32>
    %cst_146 = arith.constant 5.000000e-01 : f32
    %348 = vector.broadcast %cst_146 : f32 to vector<8x128xf32>
    %349 = arith.mulf %348, %347 : vector<8x128xf32>
    %cst_147 = arith.constant 5.000000e-01 : f32
    %350 = vector.broadcast %cst_147 : f32 to vector<8x128xf32>
    %351 = arith.addf %349, %350 : vector<8x128xf32>
    %352 = vector.extract_strided_slice %343 {offsets = [0, 128], sizes = [8, 128], strides = [1, 1]} : vector<8x512xf32> to vector<8x128xf32>
    %cst_148 = arith.constant 5.000000e-01 : f32
    %353 = vector.broadcast %cst_148 : f32 to vector<8x128xf32>
    %354 = arith.mulf %353, %352 : vector<8x128xf32>
    %355 = math.tanh %354 : vector<8x128xf32>
    %cst_149 = arith.constant 5.000000e-01 : f32
    %356 = vector.broadcast %cst_149 : f32 to vector<8x128xf32>
    %357 = arith.mulf %356, %355 : vector<8x128xf32>
    %cst_150 = arith.constant 5.000000e-01 : f32
    %358 = vector.broadcast %cst_150 : f32 to vector<8x128xf32>
    %359 = arith.addf %357, %358 : vector<8x128xf32>
    %360 = vector.extract_strided_slice %343 {offsets = [0, 256], sizes = [8, 128], strides = [1, 1]} : vector<8x512xf32> to vector<8x128xf32>
    %361 = vector.extract_strided_slice %343 {offsets = [0, 384], sizes = [8, 128], strides = [1, 1]} : vector<8x512xf32> to vector<8x128xf32>
    %362 = arith.mulf %351, %361 : vector<8x128xf32>
    %363 = arith.addf %360, %362 : vector<8x128xf32>
    %364 = math.tanh %363 : vector<8x128xf32>
    %cst_151 = arith.constant 1.000000e+00 : f32
    %365 = vector.broadcast %cst_151 : f32 to vector<8x128xf32>
    %366 = arith.subf %365, %359 : vector<8x128xf32>
    %367 = arith.mulf %366, %364 : vector<8x128xf32>
    %368 = arith.mulf %359, %270 : vector<8x128xf32>
    %369 = arith.addf %367, %368 : vector<8x128xf32>
    %370 = tpu.concatenate %270, %304 in 1 : vector<8x128xf32>, vector<8x128xf32> -> vector<8x256xf32>
    %c1_152 = arith.constant 1 : index
    %c0_153 = arith.constant 0 : index
    %c0_154 = arith.constant 0 : index
    %371 = vector.load %arg4[%c1_152, %c0_153, %c0_154] : memref<2x256x512xf32, #tpu.memory_space<vmem>>, vector<1x256x512xf32>
    %372 = vector.shape_cast %371 : vector<1x256x512xf32> to vector<256x512xf32>
    %cst_155 = arith.constant dense<0.000000e+00> : vector<8x512xf32>
    %373 = tpu.matmul %370, %372, %cst_155 {dimension_numbers = #tpu.dot_dimension_numbers<[1], [0], [0], [1], [0, 0, 1, 1], [], []>} : vector<8x256xf32>, vector<256x512xf32>, vector<8x512xf32> -> vector<8x512xf32>
    %c2_156 = arith.constant 2 : index
    %c0_157 = arith.constant 0 : index
    %c0_158 = arith.constant 0 : index
    %374 = vector.load %arg5[%c2_156, %c0_157, %c0_158] : memref<3x1x512xf32, #tpu.memory_space<vmem>>, vector<1x1x512xf32>
    %375 = vector.shape_cast %374 : vector<1x1x512xf32> to vector<1x512xf32>
    %376 = vector.broadcast %375 : vector<1x512xf32> to vector<8x512xf32>
    %377 = arith.addf %373, %376 : vector<8x512xf32>
    %378 = vector.extract_strided_slice %377 {offsets = [0, 0], sizes = [8, 128], strides = [1, 1]} : vector<8x512xf32> to vector<8x128xf32>
    %cst_159 = arith.constant 5.000000e-01 : f32
    %379 = vector.broadcast %cst_159 : f32 to vector<8x128xf32>
    %380 = arith.mulf %379, %378 : vector<8x128xf32>
    %381 = math.tanh %380 : vector<8x128xf32>
    %cst_160 = arith.constant 5.000000e-01 : f32
    %382 = vector.broadcast %cst_160 : f32 to vector<8x128xf32>
    %383 = arith.mulf %382, %381 : vector<8x128xf32>
    %cst_161 = arith.constant 5.000000e-01 : f32
    %384 = vector.broadcast %cst_161 : f32 to vector<8x128xf32>
    %385 = arith.addf %383, %384 : vector<8x128xf32>
    %386 = vector.extract_strided_slice %377 {offsets = [0, 128], sizes = [8, 128], strides = [1, 1]} : vector<8x512xf32> to vector<8x128xf32>
    %cst_162 = arith.constant 5.000000e-01 : f32
    %387 = vector.broadcast %cst_162 : f32 to vector<8x128xf32>
    %388 = arith.mulf %387, %386 : vector<8x128xf32>
    %389 = math.tanh %388 : vector<8x128xf32>
    %cst_163 = arith.constant 5.000000e-01 : f32
    %390 = vector.broadcast %cst_163 : f32 to vector<8x128xf32>
    %391 = arith.mulf %390, %389 : vector<8x128xf32>
    %cst_164 = arith.constant 5.000000e-01 : f32
    %392 = vector.broadcast %cst_164 : f32 to vector<8x128xf32>
    %393 = arith.addf %391, %392 : vector<8x128xf32>
    %394 = vector.extract_strided_slice %377 {offsets = [0, 256], sizes = [8, 128], strides = [1, 1]} : vector<8x512xf32> to vector<8x128xf32>
    %395 = vector.extract_strided_slice %377 {offsets = [0, 384], sizes = [8, 128], strides = [1, 1]} : vector<8x512xf32> to vector<8x128xf32>
    %396 = arith.mulf %385, %395 : vector<8x128xf32>
    %397 = arith.addf %394, %396 : vector<8x128xf32>
    %398 = math.tanh %397 : vector<8x128xf32>
    %cst_165 = arith.constant 1.000000e+00 : f32
    %399 = vector.broadcast %cst_165 : f32 to vector<8x128xf32>
    %400 = arith.subf %399, %393 : vector<8x128xf32>
    %401 = arith.mulf %400, %398 : vector<8x128xf32>
    %402 = arith.mulf %393, %304 : vector<8x128xf32>
    %403 = arith.addf %401, %402 : vector<8x128xf32>
    %404 = vector.extract_strided_slice %403 {offsets = [1, 0], sizes = [1, 128], strides = [1, 1]} : vector<8x128xf32> to vector<1x128xf32>
    %c40 = arith.constant 40 : index
    %c0_166 = arith.constant 0 : index
    %405 = vector.load %arg7[%c40, %c0_166] : memref<64x512xf32, #tpu.memory_space<vmem>>, vector<8x512xf32>
    %c0_167 = arith.constant 0 : index
    %c0_168 = arith.constant 0 : index
    %406 = vector.load %arg3[%c0_167, %c0_168] : memref<128x512xf32, #tpu.memory_space<vmem>>, vector<128x512xf32>
    %cst_169 = arith.constant dense<0.000000e+00> : vector<8x512xf32>
    %407 = tpu.matmul %335, %406, %cst_169 {dimension_numbers = #tpu.dot_dimension_numbers<[1], [0], [0], [1], [0, 0, 1, 1], [], []>} : vector<8x128xf32>, vector<128x512xf32>, vector<8x512xf32> -> vector<8x512xf32>
    %408 = arith.addf %405, %407 : vector<8x512xf32>
    %409 = vector.extract_strided_slice %408 {offsets = [0, 0], sizes = [8, 128], strides = [1, 1]} : vector<8x512xf32> to vector<8x128xf32>
    %cst_170 = arith.constant 5.000000e-01 : f32
    %410 = vector.broadcast %cst_170 : f32 to vector<8x128xf32>
    %411 = arith.mulf %410, %409 : vector<8x128xf32>
    %412 = math.tanh %411 : vector<8x128xf32>
    %cst_171 = arith.constant 5.000000e-01 : f32
    %413 = vector.broadcast %cst_171 : f32 to vector<8x128xf32>
    %414 = arith.mulf %413, %412 : vector<8x128xf32>
    %cst_172 = arith.constant 5.000000e-01 : f32
    %415 = vector.broadcast %cst_172 : f32 to vector<8x128xf32>
    %416 = arith.addf %414, %415 : vector<8x128xf32>
    %417 = vector.extract_strided_slice %408 {offsets = [0, 128], sizes = [8, 128], strides = [1, 1]} : vector<8x512xf32> to vector<8x128xf32>
    %cst_173 = arith.constant 5.000000e-01 : f32
    %418 = vector.broadcast %cst_173 : f32 to vector<8x128xf32>
    %419 = arith.mulf %418, %417 : vector<8x128xf32>
    %420 = math.tanh %419 : vector<8x128xf32>
    %cst_174 = arith.constant 5.000000e-01 : f32
    %421 = vector.broadcast %cst_174 : f32 to vector<8x128xf32>
    %422 = arith.mulf %421, %420 : vector<8x128xf32>
    %cst_175 = arith.constant 5.000000e-01 : f32
    %423 = vector.broadcast %cst_175 : f32 to vector<8x128xf32>
    %424 = arith.addf %422, %423 : vector<8x128xf32>
    %425 = vector.extract_strided_slice %408 {offsets = [0, 256], sizes = [8, 128], strides = [1, 1]} : vector<8x512xf32> to vector<8x128xf32>
    %426 = vector.extract_strided_slice %408 {offsets = [0, 384], sizes = [8, 128], strides = [1, 1]} : vector<8x512xf32> to vector<8x128xf32>
    %427 = arith.mulf %416, %426 : vector<8x128xf32>
    %428 = arith.addf %425, %427 : vector<8x128xf32>
    %429 = math.tanh %428 : vector<8x128xf32>
    %cst_176 = arith.constant 1.000000e+00 : f32
    %430 = vector.broadcast %cst_176 : f32 to vector<8x128xf32>
    %431 = arith.subf %430, %424 : vector<8x128xf32>
    %432 = arith.mulf %431, %429 : vector<8x128xf32>
    %433 = arith.mulf %424, %335 : vector<8x128xf32>
    %434 = arith.addf %432, %433 : vector<8x128xf32>
    %435 = tpu.concatenate %335, %369 in 1 : vector<8x128xf32>, vector<8x128xf32> -> vector<8x256xf32>
    %c0_177 = arith.constant 0 : index
    %c0_178 = arith.constant 0 : index
    %c0_179 = arith.constant 0 : index
    %436 = vector.load %arg4[%c0_177, %c0_178, %c0_179] : memref<2x256x512xf32, #tpu.memory_space<vmem>>, vector<1x256x512xf32>
    %437 = vector.shape_cast %436 : vector<1x256x512xf32> to vector<256x512xf32>
    %cst_180 = arith.constant dense<0.000000e+00> : vector<8x512xf32>
    %438 = tpu.matmul %435, %437, %cst_180 {dimension_numbers = #tpu.dot_dimension_numbers<[1], [0], [0], [1], [0, 0, 1, 1], [], []>} : vector<8x256xf32>, vector<256x512xf32>, vector<8x512xf32> -> vector<8x512xf32>
    %c1_181 = arith.constant 1 : index
    %c0_182 = arith.constant 0 : index
    %c0_183 = arith.constant 0 : index
    %439 = vector.load %arg5[%c1_181, %c0_182, %c0_183] : memref<3x1x512xf32, #tpu.memory_space<vmem>>, vector<1x1x512xf32>
    %440 = vector.shape_cast %439 : vector<1x1x512xf32> to vector<1x512xf32>
    %441 = vector.broadcast %440 : vector<1x512xf32> to vector<8x512xf32>
    %442 = arith.addf %438, %441 : vector<8x512xf32>
    %443 = vector.extract_strided_slice %442 {offsets = [0, 0], sizes = [8, 128], strides = [1, 1]} : vector<8x512xf32> to vector<8x128xf32>
    %cst_184 = arith.constant 5.000000e-01 : f32
    %444 = vector.broadcast %cst_184 : f32 to vector<8x128xf32>
    %445 = arith.mulf %444, %443 : vector<8x128xf32>
    %446 = math.tanh %445 : vector<8x128xf32>
    %cst_185 = arith.constant 5.000000e-01 : f32
    %447 = vector.broadcast %cst_185 : f32 to vector<8x128xf32>
    %448 = arith.mulf %447, %446 : vector<8x128xf32>
    %cst_186 = arith.constant 5.000000e-01 : f32
    %449 = vector.broadcast %cst_186 : f32 to vector<8x128xf32>
    %450 = arith.addf %448, %449 : vector<8x128xf32>
    %451 = vector.extract_strided_slice %442 {offsets = [0, 128], sizes = [8, 128], strides = [1, 1]} : vector<8x512xf32> to vector<8x128xf32>
    %cst_187 = arith.constant 5.000000e-01 : f32
    %452 = vector.broadcast %cst_187 : f32 to vector<8x128xf32>
    %453 = arith.mulf %452, %451 : vector<8x128xf32>
    %454 = math.tanh %453 : vector<8x128xf32>
    %cst_188 = arith.constant 5.000000e-01 : f32
    %455 = vector.broadcast %cst_188 : f32 to vector<8x128xf32>
    %456 = arith.mulf %455, %454 : vector<8x128xf32>
    %cst_189 = arith.constant 5.000000e-01 : f32
    %457 = vector.broadcast %cst_189 : f32 to vector<8x128xf32>
    %458 = arith.addf %456, %457 : vector<8x128xf32>
    %459 = vector.extract_strided_slice %442 {offsets = [0, 256], sizes = [8, 128], strides = [1, 1]} : vector<8x512xf32> to vector<8x128xf32>
    %460 = vector.extract_strided_slice %442 {offsets = [0, 384], sizes = [8, 128], strides = [1, 1]} : vector<8x512xf32> to vector<8x128xf32>
    %461 = arith.mulf %450, %460 : vector<8x128xf32>
    %462 = arith.addf %459, %461 : vector<8x128xf32>
    %463 = math.tanh %462 : vector<8x128xf32>
    %cst_190 = arith.constant 1.000000e+00 : f32
    %464 = vector.broadcast %cst_190 : f32 to vector<8x128xf32>
    %465 = arith.subf %464, %458 : vector<8x128xf32>
    %466 = arith.mulf %465, %463 : vector<8x128xf32>
    %467 = arith.mulf %458, %369 : vector<8x128xf32>
    %468 = arith.addf %466, %467 : vector<8x128xf32>
    %469 = tpu.concatenate %369, %403 in 1 : vector<8x128xf32>, vector<8x128xf32> -> vector<8x256xf32>
    %c1_191 = arith.constant 1 : index
    %c0_192 = arith.constant 0 : index
    %c0_193 = arith.constant 0 : index
    %470 = vector.load %arg4[%c1_191, %c0_192, %c0_193] : memref<2x256x512xf32, #tpu.memory_space<vmem>>, vector<1x256x512xf32>
    %471 = vector.shape_cast %470 : vector<1x256x512xf32> to vector<256x512xf32>
    %cst_194 = arith.constant dense<0.000000e+00> : vector<8x512xf32>
    %472 = tpu.matmul %469, %471, %cst_194 {dimension_numbers = #tpu.dot_dimension_numbers<[1], [0], [0], [1], [0, 0, 1, 1], [], []>} : vector<8x256xf32>, vector<256x512xf32>, vector<8x512xf32> -> vector<8x512xf32>
    %c2_195 = arith.constant 2 : index
    %c0_196 = arith.constant 0 : index
    %c0_197 = arith.constant 0 : index
    %473 = vector.load %arg5[%c2_195, %c0_196, %c0_197] : memref<3x1x512xf32, #tpu.memory_space<vmem>>, vector<1x1x512xf32>
    %474 = vector.shape_cast %473 : vector<1x1x512xf32> to vector<1x512xf32>
    %475 = vector.broadcast %474 : vector<1x512xf32> to vector<8x512xf32>
    %476 = arith.addf %472, %475 : vector<8x512xf32>
    %477 = vector.extract_strided_slice %476 {offsets = [0, 0], sizes = [8, 128], strides = [1, 1]} : vector<8x512xf32> to vector<8x128xf32>
    %cst_198 = arith.constant 5.000000e-01 : f32
    %478 = vector.broadcast %cst_198 : f32 to vector<8x128xf32>
    %479 = arith.mulf %478, %477 : vector<8x128xf32>
    %480 = math.tanh %479 : vector<8x128xf32>
    %cst_199 = arith.constant 5.000000e-01 : f32
    %481 = vector.broadcast %cst_199 : f32 to vector<8x128xf32>
    %482 = arith.mulf %481, %480 : vector<8x128xf32>
    %cst_200 = arith.constant 5.000000e-01 : f32
    %483 = vector.broadcast %cst_200 : f32 to vector<8x128xf32>
    %484 = arith.addf %482, %483 : vector<8x128xf32>
    %485 = vector.extract_strided_slice %476 {offsets = [0, 128], sizes = [8, 128], strides = [1, 1]} : vector<8x512xf32> to vector<8x128xf32>
    %cst_201 = arith.constant 5.000000e-01 : f32
    %486 = vector.broadcast %cst_201 : f32 to vector<8x128xf32>
    %487 = arith.mulf %486, %485 : vector<8x128xf32>
    %488 = math.tanh %487 : vector<8x128xf32>
    %cst_202 = arith.constant 5.000000e-01 : f32
    %489 = vector.broadcast %cst_202 : f32 to vector<8x128xf32>
    %490 = arith.mulf %489, %488 : vector<8x128xf32>
    %cst_203 = arith.constant 5.000000e-01 : f32
    %491 = vector.broadcast %cst_203 : f32 to vector<8x128xf32>
    %492 = arith.addf %490, %491 : vector<8x128xf32>
    %493 = vector.extract_strided_slice %476 {offsets = [0, 256], sizes = [8, 128], strides = [1, 1]} : vector<8x512xf32> to vector<8x128xf32>
    %494 = vector.extract_strided_slice %476 {offsets = [0, 384], sizes = [8, 128], strides = [1, 1]} : vector<8x512xf32> to vector<8x128xf32>
    %495 = arith.mulf %484, %494 : vector<8x128xf32>
    %496 = arith.addf %493, %495 : vector<8x128xf32>
    %497 = math.tanh %496 : vector<8x128xf32>
    %cst_204 = arith.constant 1.000000e+00 : f32
    %498 = vector.broadcast %cst_204 : f32 to vector<8x128xf32>
    %499 = arith.subf %498, %492 : vector<8x128xf32>
    %500 = arith.mulf %499, %497 : vector<8x128xf32>
    %501 = arith.mulf %492, %403 : vector<8x128xf32>
    %502 = arith.addf %500, %501 : vector<8x128xf32>
    %503 = vector.extract_strided_slice %502 {offsets = [1, 0], sizes = [1, 128], strides = [1, 1]} : vector<8x128xf32> to vector<1x128xf32>
    %c48 = arith.constant 48 : index
    %c0_205 = arith.constant 0 : index
    %504 = vector.load %arg7[%c48, %c0_205] : memref<64x512xf32, #tpu.memory_space<vmem>>, vector<8x512xf32>
    %c0_206 = arith.constant 0 : index
    %c0_207 = arith.constant 0 : index
    %505 = vector.load %arg3[%c0_206, %c0_207] : memref<128x512xf32, #tpu.memory_space<vmem>>, vector<128x512xf32>
    %cst_208 = arith.constant dense<0.000000e+00> : vector<8x512xf32>
    %506 = tpu.matmul %434, %505, %cst_208 {dimension_numbers = #tpu.dot_dimension_numbers<[1], [0], [0], [1], [0, 0, 1, 1], [], []>} : vector<8x128xf32>, vector<128x512xf32>, vector<8x512xf32> -> vector<8x512xf32>
    %507 = arith.addf %504, %506 : vector<8x512xf32>
    %508 = vector.extract_strided_slice %507 {offsets = [0, 0], sizes = [8, 128], strides = [1, 1]} : vector<8x512xf32> to vector<8x128xf32>
    %cst_209 = arith.constant 5.000000e-01 : f32
    %509 = vector.broadcast %cst_209 : f32 to vector<8x128xf32>
    %510 = arith.mulf %509, %508 : vector<8x128xf32>
    %511 = math.tanh %510 : vector<8x128xf32>
    %cst_210 = arith.constant 5.000000e-01 : f32
    %512 = vector.broadcast %cst_210 : f32 to vector<8x128xf32>
    %513 = arith.mulf %512, %511 : vector<8x128xf32>
    %cst_211 = arith.constant 5.000000e-01 : f32
    %514 = vector.broadcast %cst_211 : f32 to vector<8x128xf32>
    %515 = arith.addf %513, %514 : vector<8x128xf32>
    %516 = vector.extract_strided_slice %507 {offsets = [0, 128], sizes = [8, 128], strides = [1, 1]} : vector<8x512xf32> to vector<8x128xf32>
    %cst_212 = arith.constant 5.000000e-01 : f32
    %517 = vector.broadcast %cst_212 : f32 to vector<8x128xf32>
    %518 = arith.mulf %517, %516 : vector<8x128xf32>
    %519 = math.tanh %518 : vector<8x128xf32>
    %cst_213 = arith.constant 5.000000e-01 : f32
    %520 = vector.broadcast %cst_213 : f32 to vector<8x128xf32>
    %521 = arith.mulf %520, %519 : vector<8x128xf32>
    %cst_214 = arith.constant 5.000000e-01 : f32
    %522 = vector.broadcast %cst_214 : f32 to vector<8x128xf32>
    %523 = arith.addf %521, %522 : vector<8x128xf32>
    %524 = vector.extract_strided_slice %507 {offsets = [0, 256], sizes = [8, 128], strides = [1, 1]} : vector<8x512xf32> to vector<8x128xf32>
    %525 = vector.extract_strided_slice %507 {offsets = [0, 384], sizes = [8, 128], strides = [1, 1]} : vector<8x512xf32> to vector<8x128xf32>
    %526 = arith.mulf %515, %525 : vector<8x128xf32>
    %527 = arith.addf %524, %526 : vector<8x128xf32>
    %528 = math.tanh %527 : vector<8x128xf32>
    %cst_215 = arith.constant 1.000000e+00 : f32
    %529 = vector.broadcast %cst_215 : f32 to vector<8x128xf32>
    %530 = arith.subf %529, %523 : vector<8x128xf32>
    %531 = arith.mulf %530, %528 : vector<8x128xf32>
    %532 = arith.mulf %523, %434 : vector<8x128xf32>
    %533 = arith.addf %531, %532 : vector<8x128xf32>
    %534 = tpu.concatenate %434, %468 in 1 : vector<8x128xf32>, vector<8x128xf32> -> vector<8x256xf32>
    %c0_216 = arith.constant 0 : index
    %c0_217 = arith.constant 0 : index
    %c0_218 = arith.constant 0 : index
    %535 = vector.load %arg4[%c0_216, %c0_217, %c0_218] : memref<2x256x512xf32, #tpu.memory_space<vmem>>, vector<1x256x512xf32>
    %536 = vector.shape_cast %535 : vector<1x256x512xf32> to vector<256x512xf32>
    %cst_219 = arith.constant dense<0.000000e+00> : vector<8x512xf32>
    %537 = tpu.matmul %534, %536, %cst_219 {dimension_numbers = #tpu.dot_dimension_numbers<[1], [0], [0], [1], [0, 0, 1, 1], [], []>} : vector<8x256xf32>, vector<256x512xf32>, vector<8x512xf32> -> vector<8x512xf32>
    %c1_220 = arith.constant 1 : index
    %c0_221 = arith.constant 0 : index
    %c0_222 = arith.constant 0 : index
    %538 = vector.load %arg5[%c1_220, %c0_221, %c0_222] : memref<3x1x512xf32, #tpu.memory_space<vmem>>, vector<1x1x512xf32>
    %539 = vector.shape_cast %538 : vector<1x1x512xf32> to vector<1x512xf32>
    %540 = vector.broadcast %539 : vector<1x512xf32> to vector<8x512xf32>
    %541 = arith.addf %537, %540 : vector<8x512xf32>
    %542 = vector.extract_strided_slice %541 {offsets = [0, 0], sizes = [8, 128], strides = [1, 1]} : vector<8x512xf32> to vector<8x128xf32>
    %cst_223 = arith.constant 5.000000e-01 : f32
    %543 = vector.broadcast %cst_223 : f32 to vector<8x128xf32>
    %544 = arith.mulf %543, %542 : vector<8x128xf32>
    %545 = math.tanh %544 : vector<8x128xf32>
    %cst_224 = arith.constant 5.000000e-01 : f32
    %546 = vector.broadcast %cst_224 : f32 to vector<8x128xf32>
    %547 = arith.mulf %546, %545 : vector<8x128xf32>
    %cst_225 = arith.constant 5.000000e-01 : f32
    %548 = vector.broadcast %cst_225 : f32 to vector<8x128xf32>
    %549 = arith.addf %547, %548 : vector<8x128xf32>
    %550 = vector.extract_strided_slice %541 {offsets = [0, 128], sizes = [8, 128], strides = [1, 1]} : vector<8x512xf32> to vector<8x128xf32>
    %cst_226 = arith.constant 5.000000e-01 : f32
    %551 = vector.broadcast %cst_226 : f32 to vector<8x128xf32>
    %552 = arith.mulf %551, %550 : vector<8x128xf32>
    %553 = math.tanh %552 : vector<8x128xf32>
    %cst_227 = arith.constant 5.000000e-01 : f32
    %554 = vector.broadcast %cst_227 : f32 to vector<8x128xf32>
    %555 = arith.mulf %554, %553 : vector<8x128xf32>
    %cst_228 = arith.constant 5.000000e-01 : f32
    %556 = vector.broadcast %cst_228 : f32 to vector<8x128xf32>
    %557 = arith.addf %555, %556 : vector<8x128xf32>
    %558 = vector.extract_strided_slice %541 {offsets = [0, 256], sizes = [8, 128], strides = [1, 1]} : vector<8x512xf32> to vector<8x128xf32>
    %559 = vector.extract_strided_slice %541 {offsets = [0, 384], sizes = [8, 128], strides = [1, 1]} : vector<8x512xf32> to vector<8x128xf32>
    %560 = arith.mulf %549, %559 : vector<8x128xf32>
    %561 = arith.addf %558, %560 : vector<8x128xf32>
    %562 = math.tanh %561 : vector<8x128xf32>
    %cst_229 = arith.constant 1.000000e+00 : f32
    %563 = vector.broadcast %cst_229 : f32 to vector<8x128xf32>
    %564 = arith.subf %563, %557 : vector<8x128xf32>
    %565 = arith.mulf %564, %562 : vector<8x128xf32>
    %566 = arith.mulf %557, %468 : vector<8x128xf32>
    %567 = arith.addf %565, %566 : vector<8x128xf32>
    %568 = tpu.concatenate %468, %502 in 1 : vector<8x128xf32>, vector<8x128xf32> -> vector<8x256xf32>
    %c1_230 = arith.constant 1 : index
    %c0_231 = arith.constant 0 : index
    %c0_232 = arith.constant 0 : index
    %569 = vector.load %arg4[%c1_230, %c0_231, %c0_232] : memref<2x256x512xf32, #tpu.memory_space<vmem>>, vector<1x256x512xf32>
    %570 = vector.shape_cast %569 : vector<1x256x512xf32> to vector<256x512xf32>
    %cst_233 = arith.constant dense<0.000000e+00> : vector<8x512xf32>
    %571 = tpu.matmul %568, %570, %cst_233 {dimension_numbers = #tpu.dot_dimension_numbers<[1], [0], [0], [1], [0, 0, 1, 1], [], []>} : vector<8x256xf32>, vector<256x512xf32>, vector<8x512xf32> -> vector<8x512xf32>
    %c2_234 = arith.constant 2 : index
    %c0_235 = arith.constant 0 : index
    %c0_236 = arith.constant 0 : index
    %572 = vector.load %arg5[%c2_234, %c0_235, %c0_236] : memref<3x1x512xf32, #tpu.memory_space<vmem>>, vector<1x1x512xf32>
    %573 = vector.shape_cast %572 : vector<1x1x512xf32> to vector<1x512xf32>
    %574 = vector.broadcast %573 : vector<1x512xf32> to vector<8x512xf32>
    %575 = arith.addf %571, %574 : vector<8x512xf32>
    %576 = vector.extract_strided_slice %575 {offsets = [0, 0], sizes = [8, 128], strides = [1, 1]} : vector<8x512xf32> to vector<8x128xf32>
    %cst_237 = arith.constant 5.000000e-01 : f32
    %577 = vector.broadcast %cst_237 : f32 to vector<8x128xf32>
    %578 = arith.mulf %577, %576 : vector<8x128xf32>
    %579 = math.tanh %578 : vector<8x128xf32>
    %cst_238 = arith.constant 5.000000e-01 : f32
    %580 = vector.broadcast %cst_238 : f32 to vector<8x128xf32>
    %581 = arith.mulf %580, %579 : vector<8x128xf32>
    %cst_239 = arith.constant 5.000000e-01 : f32
    %582 = vector.broadcast %cst_239 : f32 to vector<8x128xf32>
    %583 = arith.addf %581, %582 : vector<8x128xf32>
    %584 = vector.extract_strided_slice %575 {offsets = [0, 128], sizes = [8, 128], strides = [1, 1]} : vector<8x512xf32> to vector<8x128xf32>
    %cst_240 = arith.constant 5.000000e-01 : f32
    %585 = vector.broadcast %cst_240 : f32 to vector<8x128xf32>
    %586 = arith.mulf %585, %584 : vector<8x128xf32>
    %587 = math.tanh %586 : vector<8x128xf32>
    %cst_241 = arith.constant 5.000000e-01 : f32
    %588 = vector.broadcast %cst_241 : f32 to vector<8x128xf32>
    %589 = arith.mulf %588, %587 : vector<8x128xf32>
    %cst_242 = arith.constant 5.000000e-01 : f32
    %590 = vector.broadcast %cst_242 : f32 to vector<8x128xf32>
    %591 = arith.addf %589, %590 : vector<8x128xf32>
    %592 = vector.extract_strided_slice %575 {offsets = [0, 256], sizes = [8, 128], strides = [1, 1]} : vector<8x512xf32> to vector<8x128xf32>
    %593 = vector.extract_strided_slice %575 {offsets = [0, 384], sizes = [8, 128], strides = [1, 1]} : vector<8x512xf32> to vector<8x128xf32>
    %594 = arith.mulf %583, %593 : vector<8x128xf32>
    %595 = arith.addf %592, %594 : vector<8x128xf32>
    %596 = math.tanh %595 : vector<8x128xf32>
    %cst_243 = arith.constant 1.000000e+00 : f32
    %597 = vector.broadcast %cst_243 : f32 to vector<8x128xf32>
    %598 = arith.subf %597, %591 : vector<8x128xf32>
    %599 = arith.mulf %598, %596 : vector<8x128xf32>
    %600 = arith.mulf %591, %502 : vector<8x128xf32>
    %601 = arith.addf %599, %600 : vector<8x128xf32>
    %602 = vector.extract_strided_slice %601 {offsets = [1, 0], sizes = [1, 128], strides = [1, 1]} : vector<8x128xf32> to vector<1x128xf32>
    %c56 = arith.constant 56 : index
    %c0_244 = arith.constant 0 : index
    %603 = vector.load %arg7[%c56, %c0_244] : memref<64x512xf32, #tpu.memory_space<vmem>>, vector<8x512xf32>
    %c0_245 = arith.constant 0 : index
    %c0_246 = arith.constant 0 : index
    %604 = vector.load %arg3[%c0_245, %c0_246] : memref<128x512xf32, #tpu.memory_space<vmem>>, vector<128x512xf32>
    %cst_247 = arith.constant dense<0.000000e+00> : vector<8x512xf32>
    %605 = tpu.matmul %533, %604, %cst_247 {dimension_numbers = #tpu.dot_dimension_numbers<[1], [0], [0], [1], [0, 0, 1, 1], [], []>} : vector<8x128xf32>, vector<128x512xf32>, vector<8x512xf32> -> vector<8x512xf32>
    %606 = arith.addf %603, %605 : vector<8x512xf32>
    %607 = vector.extract_strided_slice %606 {offsets = [0, 0], sizes = [8, 128], strides = [1, 1]} : vector<8x512xf32> to vector<8x128xf32>
    %cst_248 = arith.constant 5.000000e-01 : f32
    %608 = vector.broadcast %cst_248 : f32 to vector<8x128xf32>
    %609 = arith.mulf %608, %607 : vector<8x128xf32>
    %610 = math.tanh %609 : vector<8x128xf32>
    %cst_249 = arith.constant 5.000000e-01 : f32
    %611 = vector.broadcast %cst_249 : f32 to vector<8x128xf32>
    %612 = arith.mulf %611, %610 : vector<8x128xf32>
    %cst_250 = arith.constant 5.000000e-01 : f32
    %613 = vector.broadcast %cst_250 : f32 to vector<8x128xf32>
    %614 = arith.addf %612, %613 : vector<8x128xf32>
    %615 = vector.extract_strided_slice %606 {offsets = [0, 128], sizes = [8, 128], strides = [1, 1]} : vector<8x512xf32> to vector<8x128xf32>
    %cst_251 = arith.constant 5.000000e-01 : f32
    %616 = vector.broadcast %cst_251 : f32 to vector<8x128xf32>
    %617 = arith.mulf %616, %615 : vector<8x128xf32>
    %618 = math.tanh %617 : vector<8x128xf32>
    %cst_252 = arith.constant 5.000000e-01 : f32
    %619 = vector.broadcast %cst_252 : f32 to vector<8x128xf32>
    %620 = arith.mulf %619, %618 : vector<8x128xf32>
    %cst_253 = arith.constant 5.000000e-01 : f32
    %621 = vector.broadcast %cst_253 : f32 to vector<8x128xf32>
    %622 = arith.addf %620, %621 : vector<8x128xf32>
    %623 = vector.extract_strided_slice %606 {offsets = [0, 256], sizes = [8, 128], strides = [1, 1]} : vector<8x512xf32> to vector<8x128xf32>
    %624 = vector.extract_strided_slice %606 {offsets = [0, 384], sizes = [8, 128], strides = [1, 1]} : vector<8x512xf32> to vector<8x128xf32>
    %625 = arith.mulf %614, %624 : vector<8x128xf32>
    %626 = arith.addf %623, %625 : vector<8x128xf32>
    %627 = math.tanh %626 : vector<8x128xf32>
    %cst_254 = arith.constant 1.000000e+00 : f32
    %628 = vector.broadcast %cst_254 : f32 to vector<8x128xf32>
    %629 = arith.subf %628, %622 : vector<8x128xf32>
    %630 = arith.mulf %629, %627 : vector<8x128xf32>
    %631 = arith.mulf %622, %533 : vector<8x128xf32>
    %632 = arith.addf %630, %631 : vector<8x128xf32>
    %633 = tpu.concatenate %533, %567 in 1 : vector<8x128xf32>, vector<8x128xf32> -> vector<8x256xf32>
    %c0_255 = arith.constant 0 : index
    %c0_256 = arith.constant 0 : index
    %c0_257 = arith.constant 0 : index
    %634 = vector.load %arg4[%c0_255, %c0_256, %c0_257] : memref<2x256x512xf32, #tpu.memory_space<vmem>>, vector<1x256x512xf32>
    %635 = vector.shape_cast %634 : vector<1x256x512xf32> to vector<256x512xf32>
    %cst_258 = arith.constant dense<0.000000e+00> : vector<8x512xf32>
    %636 = tpu.matmul %633, %635, %cst_258 {dimension_numbers = #tpu.dot_dimension_numbers<[1], [0], [0], [1], [0, 0, 1, 1], [], []>} : vector<8x256xf32>, vector<256x512xf32>, vector<8x512xf32> -> vector<8x512xf32>
    %c1_259 = arith.constant 1 : index
    %c0_260 = arith.constant 0 : index
    %c0_261 = arith.constant 0 : index
    %637 = vector.load %arg5[%c1_259, %c0_260, %c0_261] : memref<3x1x512xf32, #tpu.memory_space<vmem>>, vector<1x1x512xf32>
    %638 = vector.shape_cast %637 : vector<1x1x512xf32> to vector<1x512xf32>
    %639 = vector.broadcast %638 : vector<1x512xf32> to vector<8x512xf32>
    %640 = arith.addf %636, %639 : vector<8x512xf32>
    %641 = vector.extract_strided_slice %640 {offsets = [0, 0], sizes = [8, 128], strides = [1, 1]} : vector<8x512xf32> to vector<8x128xf32>
    %cst_262 = arith.constant 5.000000e-01 : f32
    %642 = vector.broadcast %cst_262 : f32 to vector<8x128xf32>
    %643 = arith.mulf %642, %641 : vector<8x128xf32>
    %644 = math.tanh %643 : vector<8x128xf32>
    %cst_263 = arith.constant 5.000000e-01 : f32
    %645 = vector.broadcast %cst_263 : f32 to vector<8x128xf32>
    %646 = arith.mulf %645, %644 : vector<8x128xf32>
    %cst_264 = arith.constant 5.000000e-01 : f32
    %647 = vector.broadcast %cst_264 : f32 to vector<8x128xf32>
    %648 = arith.addf %646, %647 : vector<8x128xf32>
    %649 = vector.extract_strided_slice %640 {offsets = [0, 128], sizes = [8, 128], strides = [1, 1]} : vector<8x512xf32> to vector<8x128xf32>
    %cst_265 = arith.constant 5.000000e-01 : f32
    %650 = vector.broadcast %cst_265 : f32 to vector<8x128xf32>
    %651 = arith.mulf %650, %649 : vector<8x128xf32>
    %652 = math.tanh %651 : vector<8x128xf32>
    %cst_266 = arith.constant 5.000000e-01 : f32
    %653 = vector.broadcast %cst_266 : f32 to vector<8x128xf32>
    %654 = arith.mulf %653, %652 : vector<8x128xf32>
    %cst_267 = arith.constant 5.000000e-01 : f32
    %655 = vector.broadcast %cst_267 : f32 to vector<8x128xf32>
    %656 = arith.addf %654, %655 : vector<8x128xf32>
    %657 = vector.extract_strided_slice %640 {offsets = [0, 256], sizes = [8, 128], strides = [1, 1]} : vector<8x512xf32> to vector<8x128xf32>
    %658 = vector.extract_strided_slice %640 {offsets = [0, 384], sizes = [8, 128], strides = [1, 1]} : vector<8x512xf32> to vector<8x128xf32>
    %659 = arith.mulf %648, %658 : vector<8x128xf32>
    %660 = arith.addf %657, %659 : vector<8x128xf32>
    %661 = math.tanh %660 : vector<8x128xf32>
    %cst_268 = arith.constant 1.000000e+00 : f32
    %662 = vector.broadcast %cst_268 : f32 to vector<8x128xf32>
    %663 = arith.subf %662, %656 : vector<8x128xf32>
    %664 = arith.mulf %663, %661 : vector<8x128xf32>
    %665 = arith.mulf %656, %567 : vector<8x128xf32>
    %666 = arith.addf %664, %665 : vector<8x128xf32>
    %667 = tpu.concatenate %567, %601 in 1 : vector<8x128xf32>, vector<8x128xf32> -> vector<8x256xf32>
    %c1_269 = arith.constant 1 : index
    %c0_270 = arith.constant 0 : index
    %c0_271 = arith.constant 0 : index
    %668 = vector.load %arg4[%c1_269, %c0_270, %c0_271] : memref<2x256x512xf32, #tpu.memory_space<vmem>>, vector<1x256x512xf32>
    %669 = vector.shape_cast %668 : vector<1x256x512xf32> to vector<256x512xf32>
    %cst_272 = arith.constant dense<0.000000e+00> : vector<8x512xf32>
    %670 = tpu.matmul %667, %669, %cst_272 {dimension_numbers = #tpu.dot_dimension_numbers<[1], [0], [0], [1], [0, 0, 1, 1], [], []>} : vector<8x256xf32>, vector<256x512xf32>, vector<8x512xf32> -> vector<8x512xf32>
    %c2_273 = arith.constant 2 : index
    %c0_274 = arith.constant 0 : index
    %c0_275 = arith.constant 0 : index
    %671 = vector.load %arg5[%c2_273, %c0_274, %c0_275] : memref<3x1x512xf32, #tpu.memory_space<vmem>>, vector<1x1x512xf32>
    %672 = vector.shape_cast %671 : vector<1x1x512xf32> to vector<1x512xf32>
    %673 = vector.broadcast %672 : vector<1x512xf32> to vector<8x512xf32>
    %674 = arith.addf %670, %673 : vector<8x512xf32>
    %675 = vector.extract_strided_slice %674 {offsets = [0, 0], sizes = [8, 128], strides = [1, 1]} : vector<8x512xf32> to vector<8x128xf32>
    %cst_276 = arith.constant 5.000000e-01 : f32
    %676 = vector.broadcast %cst_276 : f32 to vector<8x128xf32>
    %677 = arith.mulf %676, %675 : vector<8x128xf32>
    %678 = math.tanh %677 : vector<8x128xf32>
    %cst_277 = arith.constant 5.000000e-01 : f32
    %679 = vector.broadcast %cst_277 : f32 to vector<8x128xf32>
    %680 = arith.mulf %679, %678 : vector<8x128xf32>
    %cst_278 = arith.constant 5.000000e-01 : f32
    %681 = vector.broadcast %cst_278 : f32 to vector<8x128xf32>
    %682 = arith.addf %680, %681 : vector<8x128xf32>
    %683 = vector.extract_strided_slice %674 {offsets = [0, 128], sizes = [8, 128], strides = [1, 1]} : vector<8x512xf32> to vector<8x128xf32>
    %cst_279 = arith.constant 5.000000e-01 : f32
    %684 = vector.broadcast %cst_279 : f32 to vector<8x128xf32>
    %685 = arith.mulf %684, %683 : vector<8x128xf32>
    %686 = math.tanh %685 : vector<8x128xf32>
    %cst_280 = arith.constant 5.000000e-01 : f32
    %687 = vector.broadcast %cst_280 : f32 to vector<8x128xf32>
    %688 = arith.mulf %687, %686 : vector<8x128xf32>
    %cst_281 = arith.constant 5.000000e-01 : f32
    %689 = vector.broadcast %cst_281 : f32 to vector<8x128xf32>
    %690 = arith.addf %688, %689 : vector<8x128xf32>
    %691 = vector.extract_strided_slice %674 {offsets = [0, 256], sizes = [8, 128], strides = [1, 1]} : vector<8x512xf32> to vector<8x128xf32>
    %692 = vector.extract_strided_slice %674 {offsets = [0, 384], sizes = [8, 128], strides = [1, 1]} : vector<8x512xf32> to vector<8x128xf32>
    %693 = arith.mulf %682, %692 : vector<8x128xf32>
    %694 = arith.addf %691, %693 : vector<8x128xf32>
    %695 = math.tanh %694 : vector<8x128xf32>
    %cst_282 = arith.constant 1.000000e+00 : f32
    %696 = vector.broadcast %cst_282 : f32 to vector<8x128xf32>
    %697 = arith.subf %696, %690 : vector<8x128xf32>
    %698 = arith.mulf %697, %695 : vector<8x128xf32>
    %699 = arith.mulf %690, %601 : vector<8x128xf32>
    %700 = arith.addf %698, %699 : vector<8x128xf32>
    %701 = vector.extract_strided_slice %700 {offsets = [1, 0], sizes = [1, 128], strides = [1, 1]} : vector<8x128xf32> to vector<1x128xf32>
    %702 = tpu.concatenate %632, %666 in 1 : vector<8x128xf32>, vector<8x128xf32> -> vector<8x256xf32>
    %c0_283 = arith.constant 0 : index
    %c0_284 = arith.constant 0 : index
    %c0_285 = arith.constant 0 : index
    %703 = vector.load %arg4[%c0_283, %c0_284, %c0_285] : memref<2x256x512xf32, #tpu.memory_space<vmem>>, vector<1x256x512xf32>
    %704 = vector.shape_cast %703 : vector<1x256x512xf32> to vector<256x512xf32>
    %cst_286 = arith.constant dense<0.000000e+00> : vector<8x512xf32>
    %705 = tpu.matmul %702, %704, %cst_286 {dimension_numbers = #tpu.dot_dimension_numbers<[1], [0], [0], [1], [0, 0, 1, 1], [], []>} : vector<8x256xf32>, vector<256x512xf32>, vector<8x512xf32> -> vector<8x512xf32>
    %c1_287 = arith.constant 1 : index
    %c0_288 = arith.constant 0 : index
    %c0_289 = arith.constant 0 : index
    %706 = vector.load %arg5[%c1_287, %c0_288, %c0_289] : memref<3x1x512xf32, #tpu.memory_space<vmem>>, vector<1x1x512xf32>
    %707 = vector.shape_cast %706 : vector<1x1x512xf32> to vector<1x512xf32>
    %708 = vector.broadcast %707 : vector<1x512xf32> to vector<8x512xf32>
    %709 = arith.addf %705, %708 : vector<8x512xf32>
    %710 = vector.extract_strided_slice %709 {offsets = [0, 0], sizes = [8, 128], strides = [1, 1]} : vector<8x512xf32> to vector<8x128xf32>
    %cst_290 = arith.constant 5.000000e-01 : f32
    %711 = vector.broadcast %cst_290 : f32 to vector<8x128xf32>
    %712 = arith.mulf %711, %710 : vector<8x128xf32>
    %713 = math.tanh %712 : vector<8x128xf32>
    %cst_291 = arith.constant 5.000000e-01 : f32
    %714 = vector.broadcast %cst_291 : f32 to vector<8x128xf32>
    %715 = arith.mulf %714, %713 : vector<8x128xf32>
    %cst_292 = arith.constant 5.000000e-01 : f32
    %716 = vector.broadcast %cst_292 : f32 to vector<8x128xf32>
    %717 = arith.addf %715, %716 : vector<8x128xf32>
    %718 = vector.extract_strided_slice %709 {offsets = [0, 128], sizes = [8, 128], strides = [1, 1]} : vector<8x512xf32> to vector<8x128xf32>
    %cst_293 = arith.constant 5.000000e-01 : f32
    %719 = vector.broadcast %cst_293 : f32 to vector<8x128xf32>
    %720 = arith.mulf %719, %718 : vector<8x128xf32>
    %721 = math.tanh %720 : vector<8x128xf32>
    %cst_294 = arith.constant 5.000000e-01 : f32
    %722 = vector.broadcast %cst_294 : f32 to vector<8x128xf32>
    %723 = arith.mulf %722, %721 : vector<8x128xf32>
    %cst_295 = arith.constant 5.000000e-01 : f32
    %724 = vector.broadcast %cst_295 : f32 to vector<8x128xf32>
    %725 = arith.addf %723, %724 : vector<8x128xf32>
    %726 = vector.extract_strided_slice %709 {offsets = [0, 256], sizes = [8, 128], strides = [1, 1]} : vector<8x512xf32> to vector<8x128xf32>
    %727 = vector.extract_strided_slice %709 {offsets = [0, 384], sizes = [8, 128], strides = [1, 1]} : vector<8x512xf32> to vector<8x128xf32>
    %728 = arith.mulf %717, %727 : vector<8x128xf32>
    %729 = arith.addf %726, %728 : vector<8x128xf32>
    %730 = math.tanh %729 : vector<8x128xf32>
    %cst_296 = arith.constant 1.000000e+00 : f32
    %731 = vector.broadcast %cst_296 : f32 to vector<8x128xf32>
    %732 = arith.subf %731, %725 : vector<8x128xf32>
    %733 = arith.mulf %732, %730 : vector<8x128xf32>
    %734 = arith.mulf %725, %666 : vector<8x128xf32>
    %735 = arith.addf %733, %734 : vector<8x128xf32>
    %736 = tpu.concatenate %666, %700 in 1 : vector<8x128xf32>, vector<8x128xf32> -> vector<8x256xf32>
    %c1_297 = arith.constant 1 : index
    %c0_298 = arith.constant 0 : index
    %c0_299 = arith.constant 0 : index
    %737 = vector.load %arg4[%c1_297, %c0_298, %c0_299] : memref<2x256x512xf32, #tpu.memory_space<vmem>>, vector<1x256x512xf32>
    %738 = vector.shape_cast %737 : vector<1x256x512xf32> to vector<256x512xf32>
    %cst_300 = arith.constant dense<0.000000e+00> : vector<8x512xf32>
    %739 = tpu.matmul %736, %738, %cst_300 {dimension_numbers = #tpu.dot_dimension_numbers<[1], [0], [0], [1], [0, 0, 1, 1], [], []>} : vector<8x256xf32>, vector<256x512xf32>, vector<8x512xf32> -> vector<8x512xf32>
    %c2_301 = arith.constant 2 : index
    %c0_302 = arith.constant 0 : index
    %c0_303 = arith.constant 0 : index
    %740 = vector.load %arg5[%c2_301, %c0_302, %c0_303] : memref<3x1x512xf32, #tpu.memory_space<vmem>>, vector<1x1x512xf32>
    %741 = vector.shape_cast %740 : vector<1x1x512xf32> to vector<1x512xf32>
    %742 = vector.broadcast %741 : vector<1x512xf32> to vector<8x512xf32>
    %743 = arith.addf %739, %742 : vector<8x512xf32>
    %744 = vector.extract_strided_slice %743 {offsets = [0, 0], sizes = [8, 128], strides = [1, 1]} : vector<8x512xf32> to vector<8x128xf32>
    %cst_304 = arith.constant 5.000000e-01 : f32
    %745 = vector.broadcast %cst_304 : f32 to vector<8x128xf32>
    %746 = arith.mulf %745, %744 : vector<8x128xf32>
    %747 = math.tanh %746 : vector<8x128xf32>
    %cst_305 = arith.constant 5.000000e-01 : f32
    %748 = vector.broadcast %cst_305 : f32 to vector<8x128xf32>
    %749 = arith.mulf %748, %747 : vector<8x128xf32>
    %cst_306 = arith.constant 5.000000e-01 : f32
    %750 = vector.broadcast %cst_306 : f32 to vector<8x128xf32>
    %751 = arith.addf %749, %750 : vector<8x128xf32>
    %752 = vector.extract_strided_slice %743 {offsets = [0, 128], sizes = [8, 128], strides = [1, 1]} : vector<8x512xf32> to vector<8x128xf32>
    %cst_307 = arith.constant 5.000000e-01 : f32
    %753 = vector.broadcast %cst_307 : f32 to vector<8x128xf32>
    %754 = arith.mulf %753, %752 : vector<8x128xf32>
    %755 = math.tanh %754 : vector<8x128xf32>
    %cst_308 = arith.constant 5.000000e-01 : f32
    %756 = vector.broadcast %cst_308 : f32 to vector<8x128xf32>
    %757 = arith.mulf %756, %755 : vector<8x128xf32>
    %cst_309 = arith.constant 5.000000e-01 : f32
    %758 = vector.broadcast %cst_309 : f32 to vector<8x128xf32>
    %759 = arith.addf %757, %758 : vector<8x128xf32>
    %760 = vector.extract_strided_slice %743 {offsets = [0, 256], sizes = [8, 128], strides = [1, 1]} : vector<8x512xf32> to vector<8x128xf32>
    %761 = vector.extract_strided_slice %743 {offsets = [0, 384], sizes = [8, 128], strides = [1, 1]} : vector<8x512xf32> to vector<8x128xf32>
    %762 = arith.mulf %751, %761 : vector<8x128xf32>
    %763 = arith.addf %760, %762 : vector<8x128xf32>
    %764 = math.tanh %763 : vector<8x128xf32>
    %cst_310 = arith.constant 1.000000e+00 : f32
    %765 = vector.broadcast %cst_310 : f32 to vector<8x128xf32>
    %766 = arith.subf %765, %759 : vector<8x128xf32>
    %767 = arith.mulf %766, %764 : vector<8x128xf32>
    %768 = arith.mulf %759, %700 : vector<8x128xf32>
    %769 = arith.addf %767, %768 : vector<8x128xf32>
    %770 = vector.extract_strided_slice %769 {offsets = [1, 0], sizes = [1, 128], strides = [1, 1]} : vector<8x128xf32> to vector<1x128xf32>
    %771 = tpu.concatenate %735, %769 in 1 : vector<8x128xf32>, vector<8x128xf32> -> vector<8x256xf32>
    %c1_311 = arith.constant 1 : index
    %c0_312 = arith.constant 0 : index
    %c0_313 = arith.constant 0 : index
    %772 = vector.load %arg4[%c1_311, %c0_312, %c0_313] : memref<2x256x512xf32, #tpu.memory_space<vmem>>, vector<1x256x512xf32>
    %773 = vector.shape_cast %772 : vector<1x256x512xf32> to vector<256x512xf32>
    %cst_314 = arith.constant dense<0.000000e+00> : vector<8x512xf32>
    %774 = tpu.matmul %771, %773, %cst_314 {dimension_numbers = #tpu.dot_dimension_numbers<[1], [0], [0], [1], [0, 0, 1, 1], [], []>} : vector<8x256xf32>, vector<256x512xf32>, vector<8x512xf32> -> vector<8x512xf32>
    %c2_315 = arith.constant 2 : index
    %c0_316 = arith.constant 0 : index
    %c0_317 = arith.constant 0 : index
    %775 = vector.load %arg5[%c2_315, %c0_316, %c0_317] : memref<3x1x512xf32, #tpu.memory_space<vmem>>, vector<1x1x512xf32>
    %776 = vector.shape_cast %775 : vector<1x1x512xf32> to vector<1x512xf32>
    %777 = vector.broadcast %776 : vector<1x512xf32> to vector<8x512xf32>
    %778 = arith.addf %774, %777 : vector<8x512xf32>
    %779 = vector.extract_strided_slice %778 {offsets = [0, 0], sizes = [8, 128], strides = [1, 1]} : vector<8x512xf32> to vector<8x128xf32>
    %cst_318 = arith.constant 5.000000e-01 : f32
    %780 = vector.broadcast %cst_318 : f32 to vector<8x128xf32>
    %781 = arith.mulf %780, %779 : vector<8x128xf32>
    %782 = math.tanh %781 : vector<8x128xf32>
    %cst_319 = arith.constant 5.000000e-01 : f32
    %783 = vector.broadcast %cst_319 : f32 to vector<8x128xf32>
    %784 = arith.mulf %783, %782 : vector<8x128xf32>
    %cst_320 = arith.constant 5.000000e-01 : f32
    %785 = vector.broadcast %cst_320 : f32 to vector<8x128xf32>
    %786 = arith.addf %784, %785 : vector<8x128xf32>
    %787 = vector.extract_strided_slice %778 {offsets = [0, 128], sizes = [8, 128], strides = [1, 1]} : vector<8x512xf32> to vector<8x128xf32>
    %cst_321 = arith.constant 5.000000e-01 : f32
    %788 = vector.broadcast %cst_321 : f32 to vector<8x128xf32>
    %789 = arith.mulf %788, %787 : vector<8x128xf32>
    %790 = math.tanh %789 : vector<8x128xf32>
    %cst_322 = arith.constant 5.000000e-01 : f32
    %791 = vector.broadcast %cst_322 : f32 to vector<8x128xf32>
    %792 = arith.mulf %791, %790 : vector<8x128xf32>
    %cst_323 = arith.constant 5.000000e-01 : f32
    %793 = vector.broadcast %cst_323 : f32 to vector<8x128xf32>
    %794 = arith.addf %792, %793 : vector<8x128xf32>
    %795 = vector.extract_strided_slice %778 {offsets = [0, 256], sizes = [8, 128], strides = [1, 1]} : vector<8x512xf32> to vector<8x128xf32>
    %796 = vector.extract_strided_slice %778 {offsets = [0, 384], sizes = [8, 128], strides = [1, 1]} : vector<8x512xf32> to vector<8x128xf32>
    %797 = arith.mulf %786, %796 : vector<8x128xf32>
    %798 = arith.addf %795, %797 : vector<8x128xf32>
    %799 = math.tanh %798 : vector<8x128xf32>
    %cst_324 = arith.constant 1.000000e+00 : f32
    %800 = vector.broadcast %cst_324 : f32 to vector<8x128xf32>
    %801 = arith.subf %800, %794 : vector<8x128xf32>
    %802 = arith.mulf %801, %799 : vector<8x128xf32>
    %803 = arith.mulf %794, %769 : vector<8x128xf32>
    %804 = arith.addf %802, %803 : vector<8x128xf32>
    %805 = vector.extract_strided_slice %804 {offsets = [1, 0], sizes = [1, 128], strides = [1, 1]} : vector<8x128xf32> to vector<1x128xf32>
    %806 = tpu.concatenate %206, %305, %404, %503, %602, %701, %770, %805 in 0 : vector<1x128xf32>, vector<1x128xf32>, vector<1x128xf32>, vector<1x128xf32>, vector<1x128xf32>, vector<1x128xf32>, vector<1x128xf32>, vector<1x128xf32> -> vector<8x128xf32>
    %c0_325 = arith.constant 0 : index
    %c0_326 = arith.constant 0 : index
    %807 = vector.load %arg1[%c0_325, %c0_326] : memref<8x128xf32, #tpu.memory_space<vmem>>, vector<8x128xf32>
    %808 = arith.mulf %806, %807 : vector<8x128xf32>
    %c0_327 = arith.constant 0 : index
    %c0_328 = arith.constant 0 : index
    %809 = vector.load %arg6[%c0_327, %c0_328] : memref<8x128xf32, #tpu.memory_space<vmem>>, vector<8x128xf32>
    tpu.vector_store %arg6[%c0_327, %c0_328], %808 {strides = array<i32>} : memref<8x128xf32, #tpu.memory_space<vmem>>, vector<8x128xf32>,
    return
  }
}

</mosaic_0001>

<llo_original>
// kernel: tpu_custom_call.1
$region0: #{tpu_custom_call.1}
  #allocation0 [shape = 'u32[]', space=smem, size = 0x4, offset = 0x4, fixed_abs, tag = 'smem constant byte address 0x4 - core index']
  #allocation1 [shape = 'u32[72,128]{1,0:T(1,128)}', space=vmem, size = 0x9000, scoped, tag = 'internal scratch']
  #allocation2 [shape = 'f32[64,512]{1,0:T(8,128)}', space=vmem, size = 0x20000, scoped, tag = 'scratch operand']
  %s0 = inlined_call_operand.hbm [shape: f32[64,128], index: 0, kind: input, shape index: {}]
  %s1 = inlined_call_operand.hbm [shape: f32[8,128], index: 1, kind: input, shape index: {}]
  %s2 = inlined_call_operand.hbm [shape: f32[128,512], index: 2, kind: input, shape index: {}]
  %s3 = inlined_call_operand.hbm [shape: f32[128,512], index: 3, kind: input, shape index: {}]
  %s4 = inlined_call_operand.hbm [shape: f32[2,256,512], index: 4, kind: input, shape index: {}]
  %s5 = inlined_call_operand.hbm [shape: f32[3,1,512], index: 5, kind: input, shape index: {}]
  %s6 = inlined_call_operand.hbm [shape: f32[8,128], index: 6, kind: output, shape index: {}]
  %s7 = sld [smem:[#allocation0]]
  $region58: #{tpu_custom_call.1} parent=0
    _
  %s9 = ssub.s32 1, %s7
  %s10 = scalar_select 0, %s9, %s7
  $region1: #{tpu_custom_call.1} parent=0
    #allocation3 [shape = 'u8[32768]{0}', space=vmem, size = 0x8000, scoped, tag = 'input window, operand 0, single buffered']
    #allocation4 [shape = 's32[1]{0}', space=sflag, size = 0x4, scoped, tag = 'scoped memory for tpu_custom_call.1']
    #allocation5 [shape = 's32[1]{0}', space=sflag, size = 0x4, scoped, tag = 'scoped memory for tpu_custom_call.1']
    #allocation6 [shape = 'u8[4096]{0}', space=vmem, size = 0x1000, scoped, tag = 'input window, operand 1, single buffered']
    #allocation7 [shape = 's32[1]{0}', space=sflag, size = 0x4, scoped, tag = 'scoped memory for tpu_custom_call.1']
    #allocation8 [shape = 'u8[262144]{0}', space=vmem, size = 0x40000, scoped, tag = 'input window, operand 2, single buffered']
    #allocation9 [shape = 'u8[262144]{0}', space=vmem, size = 0x40000, scoped, tag = 'input window, operand 3, single buffered']
    #allocation10 [shape = 's32[1]{0}', space=sflag, size = 0x4, scoped, tag = 'scoped memory for tpu_custom_call.1']
    #allocation11 [shape = 'u8[1048576]{0}', space=vmem, size = 0x100000, scoped, tag = 'input window, operand 4, single buffered']
    #allocation12 [shape = 'u8[6144]{0}', space=vmem, size = 0x1800, scoped, tag = 'input window, operand 5, single buffered']
    #allocation13 [shape = 's32[1]{0}', space=sflag, size = 0x4, scoped, tag = 'scoped memory for tpu_custom_call.1']
    #allocation14 [shape = 'u8[4096]{0}', space=vmem, size = 0x1000, scoped, tag = 'output window, operand 0, single buffered']
    %11 = vsyncpa [#allocation4], 0
    %12 = vsyncpa [#allocation7], 0
    %13 = vsyncpa [#allocation10], 0
    %14 = vsyncpa [#allocation13], 0
    %15 = vsyncpa [#allocation5], 0
    // Predicated region
    $region2: #{tpu_custom_call.1} parent=1 // pred_check
      _
    $region3: #{tpu_custom_call.1} parent=1 // pred_check_branch
      %17 = sbr.rel (0) target = $region5
    $region4: #{tpu_custom_call.1} parent=1 // pred_region
      %19 = vsyncadd [#allocation4], 0
      %s20 = sshll.u32 %s0, 4
      %s21 = int_to_ptr.hbm [resolvable:$true] %s20
      %s22 = sshll.u32 [#allocation3], 4
      %s23 = int_to_ptr.vmem [resolvable:$true] %s22
      %28 = dma.hbm_to_vmem [thread:$0]  %s21, 1024, %s23, [#allocation4], 128, 128, 8
    $region5: #{tpu_custom_call.1} parent=1 // pred_fallthru
      _
    // Predicated region
    $region6: #{tpu_custom_call.1} parent=1 // pred_check
      _
    $region7: #{tpu_custom_call.1} parent=1 // pred_check_branch
      %30 = sbr.rel (0) target = $region9
    $region8: #{tpu_custom_call.1} parent=1 // pred_region
      %32 = vsyncadd [#allocation7], 0
      %s34 = sshll.u32 %s1, 4
      %s35 = int_to_ptr.hbm [resolvable:$true] %s34
      %s36 = sshll.u32 [#allocation6], 4
      %s37 = int_to_ptr.vmem [resolvable:$true] %s36
      %39 = dma.hbm_to_vmem [thread:$0]  %s35, 128, %s37, [#allocation7]
    $region9: #{tpu_custom_call.1} parent=1 // pred_fallthru
      _
    // Predicated region
    $region10: #{tpu_custom_call.1} parent=1 // pred_check
      _
    $region11: #{tpu_custom_call.1} parent=1 // pred_check_branch
      %41 = sbr.rel (0) target = $region13
    $region12: #{tpu_custom_call.1} parent=1 // pred_region
      %43 = vsyncadd [#allocation7], 0
      %s44 = sshll.u32 %s2, 4
      %s45 = int_to_ptr.hbm [resolvable:$true] %s44
      %s46 = sshll.u32 [#allocation8], 4
      %s47 = int_to_ptr.vmem [resolvable:$true] %s46
      %52 = dma.hbm_to_vmem [thread:$0]  %s45, 8192, %s47, [#allocation7], 512, 512, 32
    $region13: #{tpu_custom_call.1} parent=1 // pred_fallthru
      _
    // Predicated region
    $region14: #{tpu_custom_call.1} parent=1 // pred_check
      _
    $region15: #{tpu_custom_call.1} parent=1 // pred_check_branch
      %54 = sbr.rel (0) target = $region17
    $region16: #{tpu_custom_call.1} parent=1 // pred_region
      %56 = vsyncadd [#allocation10], 0
      %s57 = sshll.u32 %s3, 4
      %s58 = int_to_ptr.hbm [resolvable:$true] %s57
      %s59 = sshll.u32 [#allocation9], 4
      %s60 = int_to_ptr.vmem [resolvable:$true] %s59
      %65 = dma.hbm_to_vmem [thread:$0]  %s58, 8192, %s60, [#allocation10], 512, 512, 32
    $region17: #{tpu_custom_call.1} parent=1 // pred_fallthru
      _
    // Predicated region
    $region18: #{tpu_custom_call.1} parent=1 // pred_check
      _
    $region19: #{tpu_custom_call.1} parent=1 // pred_check_branch
      %67 = sbr.rel (0) target = $region21
    $region20: #{tpu_custom_call.1} parent=1 // pred_region
      %69 = vsyncadd [#allocation10], 0
      %s70 = sshll.u32 %s4, 4
      %s71 = int_to_ptr.hbm [resolvable:$true] %s70
      %s72 = sshll.u32 [#allocation11], 4
      %s73 = int_to_ptr.vmem [resolvable:$true] %s72
      %78 = dma.hbm_to_vmem [thread:$0]  %s71, 32768, %s73, [#allocation10], 512, 512, 32
    $region21: #{tpu_custom_call.1} parent=1 // pred_fallthru
      _
    // Predicated region
    $region22: #{tpu_custom_call.1} parent=1 // pred_check
      _
    $region23: #{tpu_custom_call.1} parent=1 // pred_check_branch
      %80 = sbr.rel (0) target = $region25
    $region24: #{tpu_custom_call.1} parent=1 // pred_region
      %82 = vsyncadd [#allocation13], 0
      %s83 = sshll.u32 %s5, 4
      %s84 = int_to_ptr.hbm [resolvable:$true] %s83
      %s85 = sshll.u32 [#allocation12], 4
      %s86 = int_to_ptr.vmem [resolvable:$true] %s85
      %91 = dma.hbm_to_vmem [thread:$0]  %s84, 192, %s86, [#allocation13], 64, 64, 4
    $region25: #{tpu_custom_call.1} parent=1 // pred_fallthru
      _
    // Predicated region
    $region26: #{tpu_custom_call.1} parent=1 // pred_check
      _
    $region27: #{tpu_custom_call.1} parent=1 // pred_check_branch
      %93 = sbr.rel (0) target = $region29
    $region28: #{tpu_custom_call.1} parent=1 // pred_region
      %95 = dma.done [#allocation4], 1024
    $region29: #{tpu_custom_call.1} parent=1 // pred_fallthru
      _
    // Predicated region
    $region30: #{tpu_custom_call.1} parent=1 // pred_check
      _
    $region31: #{tpu_custom_call.1} parent=1 // pred_check_branch
      %97 = sbr.rel (0) target = $region33
    $region32: #{tpu_custom_call.1} parent=1 // pred_region
      %99 = dma.done [#allocation7], 128
    $region33: #{tpu_custom_call.1} parent=1 // pred_fallthru
      _
    // Predicated region
    $region34: #{tpu_custom_call.1} parent=1 // pred_check
      _
    $region35: #{tpu_custom_call.1} parent=1 // pred_check_branch
      %101 = sbr.rel (0) target = $region37
    $region36: #{tpu_custom_call.1} parent=1 // pred_region
      %103 = dma.done [#allocation7], 8192
    $region37: #{tpu_custom_call.1} parent=1 // pred_fallthru
      _
    // Predicated region
    $region38: #{tpu_custom_call.1} parent=1 // pred_check
      _
    $region39: #{tpu_custom_call.1} parent=1 // pred_check_branch
      %105 = sbr.rel (0) target = $region41
    $region40: #{tpu_custom_call.1} parent=1 // pred_region
      %107 = dma.done [#allocation10], 8192
    $region41: #{tpu_custom_call.1} parent=1 // pred_fallthru
      _
    // Predicated region
    $region42: #{tpu_custom_call.1} parent=1 // pred_check
      _
    $region43: #{tpu_custom_call.1} parent=1 // pred_check_branch
      %109 = sbr.rel (0) target = $region45
    $region44: #{tpu_custom_call.1} parent=1 // pred_region
      %111 = dma.done [#allocation10], 32768
    $region45: #{tpu_custom_call.1} parent=1 // pred_fallthru
      _
    // Predicated region
    $region46: #{tpu_custom_call.1} parent=1 // pred_check
      _
    $region47: #{tpu_custom_call.1} parent=1 // pred_check_branch
      %113 = sbr.rel (0) target = $region49
    $region48: #{tpu_custom_call.1} parent=1 // pred_region
      %115 = dma.done [#allocation13], 192
    $region49: #{tpu_custom_call.1} parent=1 // pred_fallthru
      _
    %v116 = vld [vmem:[#allocation3] sm:$0xff]
    %v117 = vld [vmem:[#allocation3 + $0x8] sm:$0xff]
    %v118 = vld [vmem:[#allocation3 + $0x10] sm:$0xff]
    %v119 = vld [vmem:[#allocation3 + $0x18] sm:$0xff]
    %v120 = vld [vmem:[#allocation3 + $0x20] sm:$0xff]
    %v121 = vld [vmem:[#allocation3 + $0x28] sm:$0xff]
    %v122 = vld [vmem:[#allocation3 + $0x30] sm:$0xff]
    %v123 = vld [vmem:[#allocation3 + $0x38] sm:$0xff]
    %v124 = vld [vmem:[#allocation8] sm:$0xff]
    %v125 = vld [vmem:[#allocation8 + $0x8] sm:$0xff]
    %v126 = vld [vmem:[#allocation8 + $0x10] sm:$0xff]
    %v127 = vld [vmem:[#allocation8 + $0x18] sm:$0xff]
    %v128 = vld [vmem:[#allocation8 + $0x20] sm:$0xff]
    %v129 = vld [vmem:[#allocation8 + $0x28] sm:$0xff]
    %v130 = vld [vmem:[#allocation8 + $0x30] sm:$0xff]
    %v131 = vld [vmem:[#allocation8 + $0x38] sm:$0xff]
    %v132 = vld [vmem:[#allocation8 + $0x40] sm:$0xff]
    %v133 = vld [vmem:[#allocation8 + $0x48] sm:$0xff]
    %v134 = vld [vmem:[#allocation8 + $0x50] sm:$0xff]
    %v135 = vld [vmem:[#allocation8 + $0x58] sm:$0xff]
    %v136 = vld [vmem:[#allocation8 + $0x60] sm:$0xff]
    %v137 = vld [vmem:[#allocation8 + $0x68] sm:$0xff]
    %v138 = vld [vmem:[#allocation8 + $0x70] sm:$0xff]
    %v139 = vld [vmem:[#allocation8 + $0x78] sm:$0xff]
    %v140 = vld [vmem:[#allocation8 + $0x80] sm:$0xff]
    %v141 = vld [vmem:[#allocation8 + $0x88] sm:$0xff]
    %v142 = vld [vmem:[#allocation8 + $0x90] sm:$0xff]
    %v143 = vld [vmem:[#allocation8 + $0x98] sm:$0xff]
    %v144 = vld [vmem:[#allocation8 + $0xa0] sm:$0xff]
    %v145 = vld [vmem:[#allocation8 + $0xa8] sm:$0xff]
    %v146 = vld [vmem:[#allocation8 + $0xb0] sm:$0xff]
    %v147 = vld [vmem:[#allocation8 + $0xb8] sm:$0xff]
    %v148 = vld [vmem:[#allocation8 + $0xc0] sm:$0xff]
    %v149 = vld [vmem:[#allocation8 + $0xc8] sm:$0xff]
    %v150 = vld [vmem:[#allocation8 + $0xd0] sm:$0xff]
    %v151 = vld [vmem:[#allocation8 + $0xd8] sm:$0xff]
    %v152 = vld [vmem:[#allocation8 + $0xe0] sm:$0xff]
    %v153 = vld [vmem:[#allocation8 + $0xe8] sm:$0xff]
    %v154 = vld [vmem:[#allocation8 + $0xf0] sm:$0xff]
    %v155 = vld [vmem:[#allocation8 + $0xf8] sm:$0xff]
    %v156 = vld [vmem:[#allocation8 + $0x100] sm:$0xff]
    %v157 = vld [vmem:[#allocation8 + $0x108] sm:$0xff]
    %v158 = vld [vmem:[#allocation8 + $0x110] sm:$0xff]
    %v159 = vld [vmem:[#allocation8 + $0x118] sm:$0xff]
    %v160 = vld [vmem:[#allocation8 + $0x120] sm:$0xff]
    %v161 = vld [vmem:[#allocation8 + $0x128] sm:$0xff]
    %v162 = vld [vmem:[#allocation8 + $0x130] sm:$0xff]
    %v163 = vld [vmem:[#allocation8 + $0x138] sm:$0xff]
    %v164 = vld [vmem:[#allocation8 + $0x140] sm:$0xff]
    %v165 = vld [vmem:[#allocation8 + $0x148] sm:$0xff]
    %v166 = vld [vmem:[#allocation8 + $0x150] sm:$0xff]
    %v167 = vld [vmem:[#allocation8 + $0x158] sm:$0xff]
    %v168 = vld [vmem:[#allocation8 + $0x160] sm:$0xff]
    %v169 = vld [vmem:[#allocation8 + $0x168] sm:$0xff]
    %v170 = vld [vmem:[#allocation8 + $0x170] sm:$0xff]
    %v171 = vld [vmem:[#allocation8 + $0x178] sm:$0xff]
    %v172 = vld [vmem:[#allocation8 + $0x180] sm:$0xff]
    %v173 = vld [vmem:[#allocation8 + $0x188] sm:$0xff]
    %v174 = vld [vmem:[#allocation8 + $0x190] sm:$0xff]
    %v175 = vld [vmem:[#allocation8 + $0x198] sm:$0xff]
    %v176 = vld [vmem:[#allocation8 + $0x1a0] sm:$0xff]
    %v177 = vld [vmem:[#allocation8 + $0x1a8] sm:$0xff]
    %v178 = vld [vmem:[#allocation8 + $0x1b0] sm:$0xff]
    %v179 = vld [vmem:[#allocation8 + $0x1b8] sm:$0xff]
    %v180 = vld [vmem:[#allocation8 + $0x1c0] sm:$0xff]
    %v181 = vld [vmem:[#allocation8 + $0x1c8] sm:$0xff]
    %v182 = vld [vmem:[#allocation8 + $0x1d0] sm:$0xff]
    %v183 = vld [vmem:[#allocation8 + $0x1d8] sm:$0xff]
    %v184 = vld [vmem:[#allocation8 + $0x1e0] sm:$0xff]
    %v185 = vld [vmem:[#allocation8 + $0x1e8] sm:$0xff]
    %v186 = vld [vmem:[#allocation8 + $0x1f0] sm:$0xff]
    %v187 = vld [vmem:[#allocation8 + $0x1f8] sm:$0xff]
    %v188 = vld [vmem:[#allocation12] sm:$0xf]
    %v190 = vperm.slane %v188, 0
    %v191 = vperm.slane %v188, 1
    %v192 = vperm.slane %v188, 2
    %v193 = vperm.slane %v188, 3
    %198 = vmatpush.msra.mxu0 %v184
    %199 = vmatpush.msra.mxu0 %v180
    %200 = vmatpush.msra.mxu0 %v176
    %201 = vmatpush.msra.mxu0 %v172
    %202 = vmatpush.msra.mxu0 %v168
    %203 = vmatpush.msra.mxu0 %v164
    %204 = vmatpush.msra.mxu0 %v160
    %205 = vmatpush.msra.mxu0 %v156
    %206 = vmatpush.msra.mxu0 %v152
    %207 = vmatpush.msra.mxu0 %v148
    %208 = vmatpush.msra.mxu0 %v144
    %209 = vmatpush.msra.mxu0 %v140
    %210 = vmatpush.msra.mxu0 %v136
    %211 = vmatpush.msra.mxu0 %v132
    %212 = vmatpush.msra.mxu0 %v128
    %213 = vmatpush.msra.mxu0 %v124
    %214 = vmatmul.f32.gmra.mxu0 %v116
    %v215 = vpop.f32.mrf.mxu0
    %v216 = vadd.f32 %v190, %v215
    %217 = vmatmul.f32.gmra.mxu0 %v117
    %v218 = vpop.f32.mrf.mxu0
    %v219 = vadd.f32 %v190, %v218
    %220 = vmatmul.f32.gmra.mxu0 %v118
    %v221 = vpop.f32.mrf.mxu0
    %v222 = vadd.f32 %v190, %v221
    %223 = vmatmul.f32.gmra.mxu0 %v119
    %v224 = vpop.f32.mrf.mxu0
    %v225 = vadd.f32 %v190, %v224
    %226 = vmatmul.f32.gmra.mxu0 %v120
    %v227 = vpop.f32.mrf.mxu0
    %v228 = vadd.f32 %v190, %v227
    %229 = vmatmul.f32.gmra.mxu0 %v121
    %v230 = vpop.f32.mrf.mxu0
    %v231 = vadd.f32 %v190, %v230
    %232 = vmatmul.f32.gmra.mxu0 %v122
    %v233 = vpop.f32.mrf.mxu0
    %v234 = vadd.f32 %v190, %v233
    %235 = vmatmul.f32.gmra.mxu0 %v123
    %v236 = vpop.f32.mrf.mxu0
    %v237 = vadd.f32 %v190, %v236
    %238 = vdwg.mxu0
    %239 = vmatpush.msra.mxu0 %v185
    %240 = vmatpush.msra.mxu0 %v181
    %241 = vmatpush.msra.mxu0 %v177
    %242 = vmatpush.msra.mxu0 %v173
    %243 = vmatpush.msra.mxu0 %v169
    %244 = vmatpush.msra.mxu0 %v165
    %245 = vmatpush.msra.mxu0 %v161
    %246 = vmatpush.msra.mxu0 %v157
    %247 = vmatpush.msra.mxu0 %v153
    %248 = vmatpush.msra.mxu0 %v149
    %249 = vmatpush.msra.mxu0 %v145
    %250 = vmatpush.msra.mxu0 %v141
    %251 = vmatpush.msra.mxu0 %v137
    %252 = vmatpush.msra.mxu0 %v133
    %253 = vmatpush.msra.mxu0 %v129
    %254 = vmatpush.msra.mxu0 %v125
    %255 = vmatmul.f32.gmra.mxu0 %v116
    %v256 = vpop.f32.mrf.mxu0
    %v257 = vadd.f32 %v191, %v256
    %258 = vmatmul.f32.gmra.mxu0 %v117
    %v259 = vpop.f32.mrf.mxu0
    %v260 = vadd.f32 %v191, %v259
    %261 = vmatmul.f32.gmra.mxu0 %v118
    %v262 = vpop.f32.mrf.mxu0
    %v263 = vadd.f32 %v191, %v262
    %264 = vmatmul.f32.gmra.mxu0 %v119
    %v265 = vpop.f32.mrf.mxu0
    %v266 = vadd.f32 %v191, %v265
    %267 = vmatmul.f32.gmra.mxu0 %v120
    %v268 = vpop.f32.mrf.mxu0
    %v269 = vadd.f32 %v191, %v268
    %270 = vmatmul.f32.gmra.mxu0 %v121
    %v271 = vpop.f32.mrf.mxu0
    %v272 = vadd.f32 %v191, %v271
    %273 = vmatmul.f32.gmra.mxu0 %v122
    %v274 = vpop.f32.mrf.mxu0
    %v275 = vadd.f32 %v191, %v274
    %276 = vmatmul.f32.gmra.mxu0 %v123
    %v277 = vpop.f32.mrf.mxu0
    %v278 = vadd.f32 %v191, %v277
    %279 = vdwg.mxu0
    %280 = vmatpush.msra.mxu0 %v186
    %281 = vmatpush.msra.mxu0 %v182
    %282 = vmatpush.msra.mxu0 %v178
    %283 = vmatpush.msra.mxu0 %v174
    %284 = vmatpush.msra.mxu0 %v170
    %285 = vmatpush.msra.mxu0 %v166
    %286 = vmatpush.msra.mxu0 %v162
    %287 = vmatpush.msra.mxu0 %v158
    %288 = vmatpush.msra.mxu0 %v154
    %289 = vmatpush.msra.mxu0 %v150
    %290 = vmatpush.msra.mxu0 %v146
    %291 = vmatpush.msra.mxu0 %v142
    %292 = vmatpush.msra.mxu0 %v138
    %293 = vmatpush.msra.mxu0 %v134
    %294 = vmatpush.msra.mxu0 %v130
    %295 = vmatpush.msra.mxu0 %v126
    %296 = vmatmul.f32.gmra.mxu0 %v116
    %v297 = vpop.f32.mrf.mxu0
    %v298 = vadd.f32 %v192, %v297
    %299 = vmatmul.f32.gmra.mxu0 %v117
    %v300 = vpop.f32.mrf.mxu0
    %v301 = vadd.f32 %v192, %v300
    %302 = vmatmul.f32.gmra.mxu0 %v118
    %v303 = vpop.f32.mrf.mxu0
    %v304 = vadd.f32 %v192, %v303
    %305 = vmatmul.f32.gmra.mxu0 %v119
    %v306 = vpop.f32.mrf.mxu0
    %v307 = vadd.f32 %v192, %v306
    %308 = vmatmul.f32.gmra.mxu0 %v120
    %v309 = vpop.f32.mrf.mxu0
    %v310 = vadd.f32 %v192, %v309
    %311 = vmatmul.f32.gmra.mxu0 %v121
    %v312 = vpop.f32.mrf.mxu0
    %v313 = vadd.f32 %v192, %v312
    %314 = vmatmul.f32.gmra.mxu0 %v122
    %v315 = vpop.f32.mrf.mxu0
    %v316 = vadd.f32 %v192, %v315
    %317 = vmatmul.f32.gmra.mxu0 %v123
    %v318 = vpop.f32.mrf.mxu0
    %v319 = vadd.f32 %v192, %v318
    %320 = vdwg.mxu0
    %321 = vmatpush.msra.mxu0 %v187
    %322 = vmatpush.msra.mxu0 %v183
    %323 = vmatpush.msra.mxu0 %v179
    %324 = vmatpush.msra.mxu0 %v175
    %325 = vmatpush.msra.mxu0 %v171
    %326 = vmatpush.msra.mxu0 %v167
    %327 = vmatpush.msra.mxu0 %v163
    %328 = vmatpush.msra.mxu0 %v159
    %329 = vmatpush.msra.mxu0 %v155
    %330 = vmatpush.msra.mxu0 %v151
    %331 = vmatpush.msra.mxu0 %v147
    %332 = vmatpush.msra.mxu0 %v143
    %333 = vmatpush.msra.mxu0 %v139
    %334 = vmatpush.msra.mxu0 %v135
    %335 = vmatpush.msra.mxu0 %v131
    %336 = vmatpush.msra.mxu0 %v127
    %337 = vmatmul.f32.gmra.mxu0 %v116
    %v338 = vpop.f32.mrf.mxu0
    %v339 = vadd.f32 %v193, %v338
    %340 = vmatmul.f32.gmra.mxu0 %v117
    %v341 = vpop.f32.mrf.mxu0
    %v342 = vadd.f32 %v193, %v341
    %343 = vmatmul.f32.gmra.mxu0 %v118
    %v344 = vpop.f32.mrf.mxu0
    %v345 = vadd.f32 %v193, %v344
    %346 = vmatmul.f32.gmra.mxu0 %v119
    %v347 = vpop.f32.mrf.mxu0
    %v348 = vadd.f32 %v193, %v347
    %349 = vmatmul.f32.gmra.mxu0 %v120
    %v350 = vpop.f32.mrf.mxu0
    %v351 = vadd.f32 %v193, %v350
    %352 = vmatmul.f32.gmra.mxu0 %v121
    %v353 = vpop.f32.mrf.mxu0
    %v354 = vadd.f32 %v193, %v353
    %355 = vmatmul.f32.gmra.mxu0 %v122
    %v356 = vpop.f32.mrf.mxu0
    %v357 = vadd.f32 %v193, %v356
    %358 = vmatmul.f32.gmra.mxu0 %v123
    %v359 = vpop.f32.mrf.mxu0
    %v360 = vadd.f32 %v193, %v359
    %361 = vdwg.mxu0
    %362 = vst [vmem:[#allocation2] sm:$0xff] %v216
    %363 = vst [vmem:[#allocation2 + $0x8] sm:$0xff] %v257
    %364 = vst [vmem:[#allocation2 + $0x10] sm:$0xff] %v298
    %365 = vst [vmem:[#allocation2 + $0x18] sm:$0xff] %v339
    %366 = vst [vmem:[#allocation2 + $0x20] sm:$0xff] %v219
    %367 = vst [vmem:[#allocation2 + $0x28] sm:$0xff] %v260
    %368 = vst [vmem:[#allocation2 + $0x30] sm:$0xff] %v301
    %369 = vst [vmem:[#allocation2 + $0x38] sm:$0xff] %v342
    %370 = vst [vmem:[#allocation2 + $0x40] sm:$0xff] %v222
    %371 = vst [vmem:[#allocation2 + $0x48] sm:$0xff] %v263
    %372 = vst [vmem:[#allocation2 + $0x50] sm:$0xff] %v304
    %373 = vst [vmem:[#allocation2 + $0x58] sm:$0xff] %v345
    %374 = vst [vmem:[#allocation2 + $0x60] sm:$0xff] %v225
    %375 = vst [vmem:[#allocation2 + $0x68] sm:$0xff] %v266
    %376 = vst [vmem:[#allocation2 + $0x70] sm:$0xff] %v307
    %377 = vst [vmem:[#allocation2 + $0x78] sm:$0xff] %v348
    %378 = vst [vmem:[#allocation2 + $0x80] sm:$0xff] %v228
    %379 = vst [vmem:[#allocation2 + $0x88] sm:$0xff] %v269
    %380 = vst [vmem:[#allocation2 + $0x90] sm:$0xff] %v310
    %381 = vst [vmem:[#allocation2 + $0x98] sm:$0xff] %v351
    %382 = vst [vmem:[#allocation2 + $0xa0] sm:$0xff] %v231
    %383 = vst [vmem:[#allocation2 + $0xa8] sm:$0xff] %v272
    %384 = vst [vmem:[#allocation2 + $0xb0] sm:$0xff] %v313
    %385 = vst [vmem:[#allocation2 + $0xb8] sm:$0xff] %v354
    %386 = vst [vmem:[#allocation2 + $0xc0] sm:$0xff] %v234
    %387 = vst [vmem:[#allocation2 + $0xc8] sm:$0xff] %v275
    %388 = vst [vmem:[#allocation2 + $0xd0] sm:$0xff] %v316
    %389 = vst [vmem:[#allocation2 + $0xd8] sm:$0xff] %v357
    %390 = vst [vmem:[#allocation2 + $0xe0] sm:$0xff] %v237
    %391 = vst [vmem:[#allocation2 + $0xe8] sm:$0xff] %v278
    %392 = vst [vmem:[#allocation2 + $0xf0] sm:$0xff] %v319
    %393 = vst [vmem:[#allocation2 + $0xf8] sm:$0xff] %v360
    %v394 = vld [vmem:[#allocation2] sm:$0xff]
    %v395 = vld [vmem:[#allocation2 + $0x8] sm:$0xff]
    %v396 = vld [vmem:[#allocation2 + $0x10] sm:$0xff]
    %v397 = vld [vmem:[#allocation2 + $0x18] sm:$0xff]
    %v398 = vld [vmem:[#allocation9] sm:$0xff]
    %v399 = vld [vmem:[#allocation9 + $0x8] sm:$0xff]
    %v400 = vld [vmem:[#allocation9 + $0x10] sm:$0xff]
    %v401 = vld [vmem:[#allocation9 + $0x18] sm:$0xff]
    %v402 = vld [vmem:[#allocation9 + $0x20] sm:$0xff]
    %v403 = vld [vmem:[#allocation9 + $0x28] sm:$0xff]
    %v404 = vld [vmem:[#allocation9 + $0x30] sm:$0xff]
    %v405 = vld [vmem:[#allocation9 + $0x38] sm:$0xff]
    %v406 = vld [vmem:[#allocation9 + $0x40] sm:$0xff]
    %v407 = vld [vmem:[#allocation9 + $0x48] sm:$0xff]
    %v408 = vld [vmem:[#allocation9 + $0x50] sm:$0xff]
    %v409 = vld [vmem:[#allocation9 + $0x58] sm:$0xff]
    %v410 = vld [vmem:[#allocation9 + $0x60] sm:$0xff]
    %v411 = vld [vmem:[#allocation9 + $0x68] sm:$0xff]
    %v412 = vld [vmem:[#allocation9 + $0x70] sm:$0xff]
    %v413 = vld [vmem:[#allocation9 + $0x78] sm:$0xff]
    %v414 = vld [vmem:[#allocation9 + $0x80] sm:$0xff]
    %v415 = vld [vmem:[#allocation9 + $0x88] sm:$0xff]
    %v416 = vld [vmem:[#allocation9 + $0x90] sm:$0xff]
    %v417 = vld [vmem:[#allocation9 + $0x98] sm:$0xff]
    %v418 = vld [vmem:[#allocation9 + $0xa0] sm:$0xff]
    %v419 = vld [vmem:[#allocation9 + $0xa8] sm:$0xff]
    %v420 = vld [vmem:[#allocation9 + $0xb0] sm:$0xff]
    %v421 = vld [vmem:[#allocation9 + $0xb8] sm:$0xff]
    %v422 = vld [vmem:[#allocation9 + $0xc0] sm:$0xff]
    %v423 = vld [vmem:[#allocation9 + $0xc8] sm:$0xff]
    %v424 = vld [vmem:[#allocation9 + $0xd0] sm:$0xff]
    %v425 = vld [vmem:[#allocation9 + $0xd8] sm:$0xff]
    %v426 = vld [vmem:[#allocation9 + $0xe0] sm:$0xff]
    %v427 = vld [vmem:[#allocation9 + $0xe8] sm:$0xff]
    %v428 = vld [vmem:[#allocation9 + $0xf0] sm:$0xff]
    %v429 = vld [vmem:[#allocation9 + $0xf8] sm:$0xff]
    %v430 = vld [vmem:[#allocation9 + $0x100] sm:$0xff]
    %v431 = vld [vmem:[#allocation9 + $0x108] sm:$0xff]
    %v432 = vld [vmem:[#allocation9 + $0x110] sm:$0xff]
    %v433 = vld [vmem:[#allocation9 + $0x118] sm:$0xff]
    %v434 = vld [vmem:[#allocation9 + $0x120] sm:$0xff]
    %v435 = vld [vmem:[#allocation9 + $0x128] sm:$0xff]
    %v436 = vld [vmem:[#allocation9 + $0x130] sm:$0xff]
    %v437 = vld [vmem:[#allocation9 + $0x138] sm:$0xff]
    %v438 = vld [vmem:[#allocation9 + $0x140] sm:$0xff]
    %v439 = vld [vmem:[#allocation9 + $0x148] sm:$0xff]
    %v440 = vld [vmem:[#allocation9 + $0x150] sm:$0xff]
    %v441 = vld [vmem:[#allocation9 + $0x158] sm:$0xff]
    %v442 = vld [vmem:[#allocation9 + $0x160] sm:$0xff]
    %v443 = vld [vmem:[#allocation9 + $0x168] sm:$0xff]
    %v444 = vld [vmem:[#allocation9 + $0x170] sm:$0xff]
    %v445 = vld [vmem:[#allocation9 + $0x178] sm:$0xff]
    %v446 = vld [vmem:[#allocation9 + $0x180] sm:$0xff]
    %v447 = vld [vmem:[#allocation9 + $0x188] sm:$0xff]
    %v448 = vld [vmem:[#allocation9 + $0x190] sm:$0xff]
    %v449 = vld [vmem:[#allocation9 + $0x198] sm:$0xff]
    %v450 = vld [vmem:[#allocation9 + $0x1a0] sm:$0xff]
    %v451 = vld [vmem:[#allocation9 + $0x1a8] sm:$0xff]
    %v452 = vld [vmem:[#allocation9 + $0x1b0] sm:$0xff]
    %v453 = vld [vmem:[#allocation9 + $0x1b8] sm:$0xff]
    %v454 = vld [vmem:[#allocation9 + $0x1c0] sm:$0xff]
    %v455 = vld [vmem:[#allocation9 + $0x1c8] sm:$0xff]
    %v456 = vld [vmem:[#allocation9 + $0x1d0] sm:$0xff]
    %v457 = vld [vmem:[#allocation9 + $0x1d8] sm:$0xff]
    %v458 = vld [vmem:[#allocation9 + $0x1e0] sm:$0xff]
    %v459 = vld [vmem:[#allocation9 + $0x1e8] sm:$0xff]
    %v460 = vld [vmem:[#allocation9 + $0x1f0] sm:$0xff]
    %v461 = vld [vmem:[#allocation9 + $0x1f8] sm:$0xff]
    %462 = vmatpush.msra.mxu0 %v458
    %463 = vmatpush.msra.mxu0 %v454
    %464 = vmatpush.msra.mxu0 %v450
    %465 = vmatpush.msra.mxu0 %v446
    %466 = vmatpush.msra.mxu0 %v442
    %467 = vmatpush.msra.mxu0 %v438
    %468 = vmatpush.msra.mxu0 %v434
    %469 = vmatpush.msra.mxu0 %v430
    %470 = vmatpush.msra.mxu0 %v426
    %471 = vmatpush.msra.mxu0 %v422
    %472 = vmatpush.msra.mxu0 %v418
    %473 = vmatpush.msra.mxu0 %v414
    %474 = vmatpush.msra.mxu0 %v410
    %475 = vmatpush.msra.mxu0 %v406
    %476 = vmatpush.msra.mxu0 %v402
    %477 = vmatpush.msra.mxu0 %v398
    %478 = vmatmul.f32.gmra.mxu0 0.0
    %v479 = vpop.f32.mrf.mxu0
    %v480 = vadd.f32 0.0, %v479
    %481 = vdwg.mxu0
    %482 = vmatpush.msra.mxu0 %v459
    %483 = vmatpush.msra.mxu0 %v455
    %484 = vmatpush.msra.mxu0 %v451
    %485 = vmatpush.msra.mxu0 %v447
    %486 = vmatpush.msra.mxu0 %v443
    %487 = vmatpush.msra.mxu0 %v439
    %488 = vmatpush.msra.mxu0 %v435
    %489 = vmatpush.msra.mxu0 %v431
    %490 = vmatpush.msra.mxu0 %v427
    %491 = vmatpush.msra.mxu0 %v423
    %492 = vmatpush.msra.mxu0 %v419
    %493 = vmatpush.msra.mxu0 %v415
    %494 = vmatpush.msra.mxu0 %v411
    %495 = vmatpush.msra.mxu0 %v407
    %496 = vmatpush.msra.mxu0 %v403
    %497 = vmatpush.msra.mxu0 %v399
    %498 = vmatmul.f32.gmra.mxu0 0.0
    %v499 = vpop.f32.mrf.mxu0
    %v500 = vadd.f32 0.0, %v499
    %501 = vdwg.mxu0
    %502 = vmatpush.msra.mxu0 %v460
    %503 = vmatpush.msra.mxu0 %v456
    %504 = vmatpush.msra.mxu0 %v452
    %505 = vmatpush.msra.mxu0 %v448
    %506 = vmatpush.msra.mxu0 %v444
    %507 = vmatpush.msra.mxu0 %v440
    %508 = vmatpush.msra.mxu0 %v436
    %509 = vmatpush.msra.mxu0 %v432
    %510 = vmatpush.msra.mxu0 %v428
    %511 = vmatpush.msra.mxu0 %v424
    %512 = vmatpush.msra.mxu0 %v420
    %513 = vmatpush.msra.mxu0 %v416
    %514 = vmatpush.msra.mxu0 %v412
    %515 = vmatpush.msra.mxu0 %v408
    %516 = vmatpush.msra.mxu0 %v404
    %517 = vmatpush.msra.mxu0 %v400
    %518 = vmatmul.f32.gmra.mxu0 0.0
    %v519 = vpop.f32.mrf.mxu0
    %v520 = vadd.f32 0.0, %v519
    %521 = vdwg.mxu0
    %522 = vmatpush.msra.mxu0 %v461
    %523 = vmatpush.msra.mxu0 %v457
    %524 = vmatpush.msra.mxu0 %v453
    %525 = vmatpush.msra.mxu0 %v449
    %526 = vmatpush.msra.mxu0 %v445
    %527 = vmatpush.msra.mxu0 %v441
    %528 = vmatpush.msra.mxu0 %v437
    %529 = vmatpush.msra.mxu0 %v433
    %530 = vmatpush.msra.mxu0 %v429
    %531 = vmatpush.msra.mxu0 %v425
    %532 = vmatpush.msra.mxu0 %v421
    %533 = vmatpush.msra.mxu0 %v417
    %534 = vmatpush.msra.mxu0 %v413
    %535 = vmatpush.msra.mxu0 %v409
    %536 = vmatpush.msra.mxu0 %v405
    %537 = vmatpush.msra.mxu0 %v401
    %538 = vmatmul.f32.gmra.mxu0 0.0
    %v539 = vpop.f32.mrf.mxu0
    %v540 = vadd.f32 0.0, %v539
    %541 = vdwg.mxu0
    %v542 = vadd.f32 %v394, %v480
    %v543 = vadd.f32 %v395, %v500
    %v544 = vadd.f32 %v396, %v520
    %v545 = vadd.f32 %v397, %v540
    %v546 = vmul.f32 %v542, 0.5
    %v547 = vtanh.pop %v546
    %v548 = vmul.f32 %v547, 0.5
    %v549 = vadd.f32 %v548, 0.5
    %v550 = vmul.f32 %v543, 0.5
    %v551 = vtanh.pop %v550
    %v552 = vmul.f32 %v551, 0.5
    %v553 = vadd.f32 %v552, 0.5
    %v554 = vmul.f32 %v549, %v545
    %v555 = vadd.f32 %v544, %v554
    %v556 = vtanh.pop %v555
    %v557 = vsub.f32 1.0, %v553
    %v558 = vmul.f32 %v557, %v556
    %v559 = vmul.f32 %v553, 0.0
    %v560 = vadd.f32 %v558, %v559
    %v561 = vld [vmem:[#allocation2 + $0x20] sm:$0xff]
    %v562 = vld [vmem:[#allocation2 + $0x28] sm:$0xff]
    %v563 = vld [vmem:[#allocation2 + $0x30] sm:$0xff]
    %v564 = vld [vmem:[#allocation2 + $0x38] sm:$0xff]
    %565 = vmatpush.msra.mxu0 %v458
    %566 = vmatpush.msra.mxu0 %v454
    %567 = vmatpush.msra.mxu0 %v450
    %568 = vmatpush.msra.mxu0 %v446
    %569 = vmatpush.msra.mxu0 %v442
    %570 = vmatpush.msra.mxu0 %v438
    %571 = vmatpush.msra.mxu0 %v434
    %572 = vmatpush.msra.mxu0 %v430
    %573 = vmatpush.msra.mxu0 %v426
    %574 = vmatpush.msra.mxu0 %v422
    %575 = vmatpush.msra.mxu0 %v418
    %576 = vmatpush.msra.mxu0 %v414
    %577 = vmatpush.msra.mxu0 %v410
    %578 = vmatpush.msra.mxu0 %v406
    %579 = vmatpush.msra.mxu0 %v402
    %580 = vmatpush.msra.mxu0 %v398
    %581 = vmatmul.f32.gmra.mxu0 %v560
    %v582 = vpop.f32.mrf.mxu0
    %v583 = vadd.f32 0.0, %v582
    %584 = vdwg.mxu0
    %585 = vmatpush.msra.mxu0 %v459
    %586 = vmatpush.msra.mxu0 %v455
    %587 = vmatpush.msra.mxu0 %v451
    %588 = vmatpush.msra.mxu0 %v447
    %589 = vmatpush.msra.mxu0 %v443
    %590 = vmatpush.msra.mxu0 %v439
    %591 = vmatpush.msra.mxu0 %v435
    %592 = vmatpush.msra.mxu0 %v431
    %593 = vmatpush.msra.mxu0 %v427
    %594 = vmatpush.msra.mxu0 %v423
    %595 = vmatpush.msra.mxu0 %v419
    %596 = vmatpush.msra.mxu0 %v415
    %597 = vmatpush.msra.mxu0 %v411
    %598 = vmatpush.msra.mxu0 %v407
    %599 = vmatpush.msra.mxu0 %v403
    %600 = vmatpush.msra.mxu0 %v399
    %601 = vmatmul.f32.gmra.mxu0 %v560
    %v602 = vpop.f32.mrf.mxu0
    %v603 = vadd.f32 0.0, %v602
    %604 = vdwg.mxu0
    %605 = vmatpush.msra.mxu0 %v460
    %606 = vmatpush.msra.mxu0 %v456
    %607 = vmatpush.msra.mxu0 %v452
    %608 = vmatpush.msra.mxu0 %v448
    %609 = vmatpush.msra.mxu0 %v444
    %610 = vmatpush.msra.mxu0 %v440
    %611 = vmatpush.msra.mxu0 %v436
    %612 = vmatpush.msra.mxu0 %v432
    %613 = vmatpush.msra.mxu0 %v428
    %614 = vmatpush.msra.mxu0 %v424
    %615 = vmatpush.msra.mxu0 %v420
    %616 = vmatpush.msra.mxu0 %v416
    %617 = vmatpush.msra.mxu0 %v412
    %618 = vmatpush.msra.mxu0 %v408
    %619 = vmatpush.msra.mxu0 %v404
    %620 = vmatpush.msra.mxu0 %v400
    %621 = vmatmul.f32.gmra.mxu0 %v560
    %v622 = vpop.f32.mrf.mxu0
    %v623 = vadd.f32 0.0, %v622
    %624 = vdwg.mxu0
    %625 = vmatpush.msra.mxu0 %v461
    %626 = vmatpush.msra.mxu0 %v457
    %627 = vmatpush.msra.mxu0 %v453
    %628 = vmatpush.msra.mxu0 %v449
    %629 = vmatpush.msra.mxu0 %v445
    %630 = vmatpush.msra.mxu0 %v441
    %631 = vmatpush.msra.mxu0 %v437
    %632 = vmatpush.msra.mxu0 %v433
    %633 = vmatpush.msra.mxu0 %v429
    %634 = vmatpush.msra.mxu0 %v425
    %635 = vmatpush.msra.mxu0 %v421
    %636 = vmatpush.msra.mxu0 %v417
    %637 = vmatpush.msra.mxu0 %v413
    %638 = vmatpush.msra.mxu0 %v409
    %639 = vmatpush.msra.mxu0 %v405
    %640 = vmatpush.msra.mxu0 %v401
    %641 = vmatmul.f32.gmra.mxu0 %v560
    %v642 = vpop.f32.mrf.mxu0
    %v643 = vadd.f32 0.0, %v642
    %644 = vdwg.mxu0
    %v645 = vadd.f32 %v561, %v583
    %v646 = vadd.f32 %v562, %v603
    %v647 = vadd.f32 %v563, %v623
    %v648 = vadd.f32 %v564, %v643
    %v649 = vmul.f32 %v645, 0.5
    %v650 = vtanh.pop %v649
    %v651 = vmul.f32 %v650, 0.5
    %v652 = vadd.f32 %v651, 0.5
    %v653 = vmul.f32 %v646, 0.5
    %v654 = vtanh.pop %v653
    %v655 = vmul.f32 %v654, 0.5
    %v656 = vadd.f32 %v655, 0.5
    %v657 = vmul.f32 %v652, %v648
    %v658 = vadd.f32 %v647, %v657
    %v659 = vtanh.pop %v658
    %v660 = vsub.f32 1.0, %v656
    %v661 = vmul.f32 %v660, %v659
    %v662 = vmul.f32 %v656, %v560
    %v663 = vadd.f32 %v661, %v662
    %v664 = vld [vmem:[#allocation11] sm:$0xff]
    %v665 = vld [vmem:[#allocation11 + $0x8] sm:$0xff]
    %v666 = vld [vmem:[#allocation11 + $0x10] sm:$0xff]
    %v667 = vld [vmem:[#allocation11 + $0x18] sm:$0xff]
    %v668 = vld [vmem:[#allocation11 + $0x20] sm:$0xff]
    %v669 = vld [vmem:[#allocation11 + $0x28] sm:$0xff]
    %v670 = vld [vmem:[#allocation11 + $0x30] sm:$0xff]
    %v671 = vld [vmem:[#allocation11 + $0x38] sm:$0xff]
    %v672 = vld [vmem:[#allocation11 + $0x40] sm:$0xff]
    %v673 = vld [vmem:[#allocation11 + $0x48] sm:$0xff]
    %v674 = vld [vmem:[#allocation11 + $0x50] sm:$0xff]
    %v675 = vld [vmem:[#allocation11 + $0x58] sm:$0xff]
    %v676 = vld [vmem:[#allocation11 + $0x60] sm:$0xff]
    %v677 = vld [vmem:[#allocation11 + $0x68] sm:$0xff]
    %v678 = vld [vmem:[#allocation11 + $0x70] sm:$0xff]
    %v679 = vld [vmem:[#allocation11 + $0x78] sm:$0xff]
    %v680 = vld [vmem:[#allocation11 + $0x80] sm:$0xff]
    %v681 = vld [vmem:[#allocation11 + $0x88] sm:$0xff]
    %v682 = vld [vmem:[#allocation11 + $0x90] sm:$0xff]
    %v683 = vld [vmem:[#allocation11 + $0x98] sm:$0xff]
    %v684 = vld [vmem:[#allocation11 + $0xa0] sm:$0xff]
    %v685 = vld [vmem:[#allocation11 + $0xa8] sm:$0xff]
    %v686 = vld [vmem:[#allocation11 + $0xb0] sm:$0xff]
    %v687 = vld [vmem:[#allocation11 + $0xb8] sm:$0xff]
    %v688 = vld [vmem:[#allocation11 + $0xc0] sm:$0xff]
    %v689 = vld [vmem:[#allocation11 + $0xc8] sm:$0xff]
    %v690 = vld [vmem:[#allocation11 + $0xd0] sm:$0xff]
    %v691 = vld [vmem:[#allocation11 + $0xd8] sm:$0xff]
    %v692 = vld [vmem:[#allocation11 + $0xe0] sm:$0xff]
    %v693 = vld [vmem:[#allocation11 + $0xe8] sm:$0xff]
    %v694 = vld [vmem:[#allocation11 + $0xf0] sm:$0xff]
    %v695 = vld [vmem:[#allocation11 + $0xf8] sm:$0xff]
    %v696 = vld [vmem:[#allocation11 + $0x100] sm:$0xff]
    %v697 = vld [vmem:[#allocation11 + $0x108] sm:$0xff]
    %v698 = vld [vmem:[#allocation11 + $0x110] sm:$0xff]
    %v699 = vld [vmem:[#allocation11 + $0x118] sm:$0xff]
    %v700 = vld [vmem:[#allocation11 + $0x120] sm:$0xff]
    %v701 = vld [vmem:[#allocation11 + $0x128] sm:$0xff]
    %v702 = vld [vmem:[#allocation11 + $0x130] sm:$0xff]
    %v703 = vld [vmem:[#allocation11 + $0x138] sm:$0xff]
    %v704 = vld [vmem:[#allocation11 + $0x140] sm:$0xff]
    %v705 = vld [vmem:[#allocation11 + $0x148] sm:$0xff]
    %v706 = vld [vmem:[#allocation11 + $0x150] sm:$0xff]
    %v707 = vld [vmem:[#allocation11 + $0x158] sm:$0xff]
    %v708 = vld [vmem:[#allocation11 + $0x160] sm:$0xff]
    %v709 = vld [vmem:[#allocation11 + $0x168] sm:$0xff]
    %v710 = vld [vmem:[#allocation11 + $0x170] sm:$0xff]
    %v711 = vld [vmem:[#allocation11 + $0x178] sm:$0xff]
    %v712 = vld [vmem:[#allocation11 + $0x180] sm:$0xff]
    %v713 = vld [vmem:[#allocation11 + $0x188] sm:$0xff]
    %v714 = vld [vmem:[#allocation11 + $0x190] sm:$0xff]
    %v715 = vld [vmem:[#allocation11 + $0x198] sm:$0xff]
    %v716 = vld [vmem:[#allocation11 + $0x1a0] sm:$0xff]
    %v717 = vld [vmem:[#allocation11 + $0x1a8] sm:$0xff]
    %v718 = vld [vmem:[#allocation11 + $0x1b0] sm:$0xff]
    %v719 = vld [vmem:[#allocation11 + $0x1b8] sm:$0xff]
    %v720 = vld [vmem:[#allocation11 + $0x1c0] sm:$0xff]
    %v721 = vld [vmem:[#allocation11 + $0x1c8] sm:$0xff]
    %v722 = vld [vmem:[#allocation11 + $0x1d0] sm:$0xff]
    %v723 = vld [vmem:[#allocation11 + $0x1d8] sm:$0xff]
    %v724 = vld [vmem:[#allocation11 + $0x1e0] sm:$0xff]
    %v725 = vld [vmem:[#allocation11 + $0x1e8] sm:$0xff]
    %v726 = vld [vmem:[#allocation11 + $0x1f0] sm:$0xff]
    %v727 = vld [vmem:[#allocation11 + $0x1f8] sm:$0xff]
    %v728 = vld [vmem:[#allocation11 + $0x200] sm:$0xff]
    %v729 = vld [vmem:[#allocation11 + $0x208] sm:$0xff]
    %v730 = vld [vmem:[#allocation11 + $0x210] sm:$0xff]
    %v731 = vld [vmem:[#allocation11 + $0x218] sm:$0xff]
    %v732 = vld [vmem:[#allocation11 + $0x220] sm:$0xff]
    %v733 = vld [vmem:[#allocation11 + $0x228] sm:$0xff]
    %v734 = vld [vmem:[#allocation11 + $0x230] sm:$0xff]
    %v735 = vld [vmem:[#allocation11 + $0x238] sm:$0xff]
    %v736 = vld [vmem:[#allocation11 + $0x240] sm:$0xff]
    %v737 = vld [vmem:[#allocation11 + $0x248] sm:$0xff]
    %v738 = vld [vmem:[#allocation11 + $0x250] sm:$0xff]
    %v739 = vld [vmem:[#allocation11 + $0x258] sm:$0xff]
    %v740 = vld [vmem:[#allocation11 + $0x260] sm:$0xff]
    %v741 = vld [vmem:[#allocation11 + $0x268] sm:$0xff]
    %v742 = vld [vmem:[#allocation11 + $0x270] sm:$0xff]
    %v743 = vld [vmem:[#allocation11 + $0x278] sm:$0xff]
    %v744 = vld [vmem:[#allocation11 + $0x280] sm:$0xff]
    %v745 = vld [vmem:[#allocation11 + $0x288] sm:$0xff]
    %v746 = vld [vmem:[#allocation11 + $0x290] sm:$0xff]
    %v747 = vld [vmem:[#allocation11 + $0x298] sm:$0xff]
    %v748 = vld [vmem:[#allocation11 + $0x2a0] sm:$0xff]
    %v749 = vld [vmem:[#allocation11 + $0x2a8] sm:$0xff]
    %v750 = vld [vmem:[#allocation11 + $0x2b0] sm:$0xff]
    %v751 = vld [vmem:[#allocation11 + $0x2b8] sm:$0xff]
    %v752 = vld [vmem:[#allocation11 + $0x2c0] sm:$0xff]
    %v753 = vld [vmem:[#allocation11 + $0x2c8] sm:$0xff]
    %v754 = vld [vmem:[#allocation11 + $0x2d0] sm:$0xff]
    %v755 = vld [vmem:[#allocation11 + $0x2d8] sm:$0xff]
    %v756 = vld [vmem:[#allocation11 + $0x2e0] sm:$0xff]
    %v757 = vld [vmem:[#allocation11 + $0x2e8] sm:$0xff]
    %v758 = vld [vmem:[#allocation11 + $0x2f0] sm:$0xff]
    %v759 = vld [vmem:[#allocation11 + $0x2f8] sm:$0xff]
    %v760 = vld [vmem:[#allocation11 + $0x300] sm:$0xff]
    %v761 = vld [vmem:[#allocation11 + $0x308] sm:$0xff]
    %v762 = vld [vmem:[#allocation11 + $0x310] sm:$0xff]
    %v763 = vld [vmem:[#allocation11 + $0x318] sm:$0xff]
    %v764 = vld [vmem:[#allocation11 + $0x320] sm:$0xff]
    %v765 = vld [vmem:[#allocation11 + $0x328] sm:$0xff]
    %v766 = vld [vmem:[#allocation11 + $0x330] sm:$0xff]
    %v767 = vld [vmem:[#allocation11 + $0x338] sm:$0xff]
    %v768 = vld [vmem:[#allocation11 + $0x340] sm:$0xff]
    %v769 = vld [vmem:[#allocation11 + $0x348] sm:$0xff]
    %v770 = vld [vmem:[#allocation11 + $0x350] sm:$0xff]
    %v771 = vld [vmem:[#allocation11 + $0x358] sm:$0xff]
    %v772 = vld [vmem:[#allocation11 + $0x360] sm:$0xff]
    %v773 = vld [vmem:[#allocation11 + $0x368] sm:$0xff]
    %v774 = vld [vmem:[#allocation11 + $0x370] sm:$0xff]
    %v775 = vld [vmem:[#allocation11 + $0x378] sm:$0xff]
    %v776 = vld [vmem:[#allocation11 + $0x380] sm:$0xff]
    %v777 = vld [vmem:[#allocation11 + $0x388] sm:$0xff]
    %v778 = vld [vmem:[#allocation11 + $0x390] sm:$0xff]
    %v779 = vld [vmem:[#allocation11 + $0x398] sm:$0xff]
    %v780 = vld [vmem:[#allocation11 + $0x3a0] sm:$0xff]
    %v781 = vld [vmem:[#allocation11 + $0x3a8] sm:$0xff]
    %v782 = vld [vmem:[#allocation11 + $0x3b0] sm:$0xff]
    %v783 = vld [vmem:[#allocation11 + $0x3b8] sm:$0xff]
    %v784 = vld [vmem:[#allocation11 + $0x3c0] sm:$0xff]
    %v785 = vld [vmem:[#allocation11 + $0x3c8] sm:$0xff]
    %v786 = vld [vmem:[#allocation11 + $0x3d0] sm:$0xff]
    %v787 = vld [vmem:[#allocation11 + $0x3d8] sm:$0xff]
    %v788 = vld [vmem:[#allocation11 + $0x3e0] sm:$0xff]
    %v789 = vld [vmem:[#allocation11 + $0x3e8] sm:$0xff]
    %v790 = vld [vmem:[#allocation11 + $0x3f0] sm:$0xff]
    %v791 = vld [vmem:[#allocation11 + $0x3f8] sm:$0xff]
    %s792 = scalar_lea.vmem [#allocation12], 4
    %v793 = vld [vmem:[%s792] sm:$0xf]
    %v795 = vperm.slane %v793, 0
    %v796 = vperm.slane %v793, 1
    %v797 = vperm.slane %v793, 2
    %v798 = vperm.slane %v793, 3
    %803 = vmatpush.msra.mxu0 %v724
    %804 = vmatpush.msra.mxu0 %v720
    %805 = vmatpush.msra.mxu0 %v716
    %806 = vmatpush.msra.mxu0 %v712
    %807 = vmatpush.msra.mxu0 %v708
    %808 = vmatpush.msra.mxu0 %v704
    %809 = vmatpush.msra.mxu0 %v700
    %810 = vmatpush.msra.mxu0 %v696
    %811 = vmatpush.msra.mxu0 %v692
    %812 = vmatpush.msra.mxu0 %v688
    %813 = vmatpush.msra.mxu0 %v684
    %814 = vmatpush.msra.mxu0 %v680
    %815 = vmatpush.msra.mxu0 %v676
    %816 = vmatpush.msra.mxu0 %v672
    %817 = vmatpush.msra.mxu0 %v668
    %818 = vmatpush.msra.mxu0 %v664
    %819 = vmatmul.f32.gmra.mxu0 %v560
    %v820 = vpop.f32.mrf.mxu0
    %v821 = vadd.f32 %v795, %v820
    %822 = vdwg.mxu0
    %823 = vmatpush.msra.mxu0 %v788
    %824 = vmatpush.msra.mxu0 %v784
    %825 = vmatpush.msra.mxu0 %v780
    %826 = vmatpush.msra.mxu0 %v776
    %827 = vmatpush.msra.mxu0 %v772
    %828 = vmatpush.msra.mxu0 %v768
    %829 = vmatpush.msra.mxu0 %v764
    %830 = vmatpush.msra.mxu0 %v760
    %831 = vmatpush.msra.mxu0 %v756
    %832 = vmatpush.msra.mxu0 %v752
    %833 = vmatpush.msra.mxu0 %v748
    %834 = vmatpush.msra.mxu0 %v744
    %835 = vmatpush.msra.mxu0 %v740
    %836 = vmatpush.msra.mxu0 %v736
    %837 = vmatpush.msra.mxu0 %v732
    %838 = vmatpush.msra.mxu0 %v728
    %839 = vmatmul.f32.gmra.mxu0 0.0
    %v840 = vpop.f32.mrf.mxu0
    %v841 = vadd.f32 %v821, %v840
    %842 = vdwg.mxu0
    %843 = vmatpush.msra.mxu0 %v725
    %844 = vmatpush.msra.mxu0 %v721
    %845 = vmatpush.msra.mxu0 %v717
    %846 = vmatpush.msra.mxu0 %v713
    %847 = vmatpush.msra.mxu0 %v709
    %848 = vmatpush.msra.mxu0 %v705
    %849 = vmatpush.msra.mxu0 %v701
    %850 = vmatpush.msra.mxu0 %v697
    %851 = vmatpush.msra.mxu0 %v693
    %852 = vmatpush.msra.mxu0 %v689
    %853 = vmatpush.msra.mxu0 %v685
    %854 = vmatpush.msra.mxu0 %v681
    %855 = vmatpush.msra.mxu0 %v677
    %856 = vmatpush.msra.mxu0 %v673
    %857 = vmatpush.msra.mxu0 %v669
    %858 = vmatpush.msra.mxu0 %v665
    %859 = vmatmul.f32.gmra.mxu0 %v560
    %v860 = vpop.f32.mrf.mxu0
    %v861 = vadd.f32 %v796, %v860
    %862 = vdwg.mxu0
    %863 = vmatpush.msra.mxu0 %v789
    %864 = vmatpush.msra.mxu0 %v785
    %865 = vmatpush.msra.mxu0 %v781
    %866 = vmatpush.msra.mxu0 %v777
    %867 = vmatpush.msra.mxu0 %v773
    %868 = vmatpush.msra.mxu0 %v769
    %869 = vmatpush.msra.mxu0 %v765
    %870 = vmatpush.msra.mxu0 %v761
    %871 = vmatpush.msra.mxu0 %v757
    %872 = vmatpush.msra.mxu0 %v753
    %873 = vmatpush.msra.mxu0 %v749
    %874 = vmatpush.msra.mxu0 %v745
    %875 = vmatpush.msra.mxu0 %v741
    %876 = vmatpush.msra.mxu0 %v737
    %877 = vmatpush.msra.mxu0 %v733
    %878 = vmatpush.msra.mxu0 %v729
    %879 = vmatmul.f32.gmra.mxu0 0.0
    %v880 = vpop.f32.mrf.mxu0
    %v881 = vadd.f32 %v861, %v880
    %882 = vdwg.mxu0
    %883 = vmatpush.msra.mxu0 %v726
    %884 = vmatpush.msra.mxu0 %v722
    %885 = vmatpush.msra.mxu0 %v718
    %886 = vmatpush.msra.mxu0 %v714
    %887 = vmatpush.msra.mxu0 %v710
    %888 = vmatpush.msra.mxu0 %v706
    %889 = vmatpush.msra.mxu0 %v702
    %890 = vmatpush.msra.mxu0 %v698
    %891 = vmatpush.msra.mxu0 %v694
    %892 = vmatpush.msra.mxu0 %v690
    %893 = vmatpush.msra.mxu0 %v686
    %894 = vmatpush.msra.mxu0 %v682
    %895 = vmatpush.msra.mxu0 %v678
    %896 = vmatpush.msra.mxu0 %v674
    %897 = vmatpush.msra.mxu0 %v670
    %898 = vmatpush.msra.mxu0 %v666
    %899 = vmatmul.f32.gmra.mxu0 %v560
    %v900 = vpop.f32.mrf.mxu0
    %v901 = vadd.f32 %v797, %v900
    %902 = vdwg.mxu0
    %903 = vmatpush.msra.mxu0 %v790
    %904 = vmatpush.msra.mxu0 %v786
    %905 = vmatpush.msra.mxu0 %v782
    %906 = vmatpush.msra.mxu0 %v778
    %907 = vmatpush.msra.mxu0 %v774
    %908 = vmatpush.msra.mxu0 %v770
    %909 = vmatpush.msra.mxu0 %v766
    %910 = vmatpush.msra.mxu0 %v762
    %911 = vmatpush.msra.mxu0 %v758
    %912 = vmatpush.msra.mxu0 %v754
    %913 = vmatpush.msra.mxu0 %v750
    %914 = vmatpush.msra.mxu0 %v746
    %915 = vmatpush.msra.mxu0 %v742
    %916 = vmatpush.msra.mxu0 %v738
    %917 = vmatpush.msra.mxu0 %v734
    %918 = vmatpush.msra.mxu0 %v730
    %919 = vmatmul.f32.gmra.mxu0 0.0
    %v920 = vpop.f32.mrf.mxu0
    %v921 = vadd.f32 %v901, %v920
    %922 = vdwg.mxu0
    %923 = vmatpush.msra.mxu0 %v727
    %924 = vmatpush.msra.mxu0 %v723
    %925 = vmatpush.msra.mxu0 %v719
    %926 = vmatpush.msra.mxu0 %v715
    %927 = vmatpush.msra.mxu0 %v711
    %928 = vmatpush.msra.mxu0 %v707
    %929 = vmatpush.msra.mxu0 %v703
    %930 = vmatpush.msra.mxu0 %v699
    %931 = vmatpush.msra.mxu0 %v695
    %932 = vmatpush.msra.mxu0 %v691
    %933 = vmatpush.msra.mxu0 %v687
    %934 = vmatpush.msra.mxu0 %v683
    %935 = vmatpush.msra.mxu0 %v679
    %936 = vmatpush.msra.mxu0 %v675
    %937 = vmatpush.msra.mxu0 %v671
    %938 = vmatpush.msra.mxu0 %v667
    %939 = vmatmul.f32.gmra.mxu0 %v560
    %v940 = vpop.f32.mrf.mxu0
    %v941 = vadd.f32 %v798, %v940
    %942 = vdwg.mxu0
    %943 = vmatpush.msra.mxu0 %v791
    %944 = vmatpush.msra.mxu0 %v787
    %945 = vmatpush.msra.mxu0 %v783
    %946 = vmatpush.msra.mxu0 %v779
    %947 = vmatpush.msra.mxu0 %v775
    %948 = vmatpush.msra.mxu0 %v771
    %949 = vmatpush.msra.mxu0 %v767
    %950 = vmatpush.msra.mxu0 %v763
    %951 = vmatpush.msra.mxu0 %v759
    %952 = vmatpush.msra.mxu0 %v755
    %953 = vmatpush.msra.mxu0 %v751
    %954 = vmatpush.msra.mxu0 %v747
    %955 = vmatpush.msra.mxu0 %v743
    %956 = vmatpush.msra.mxu0 %v739
    %957 = vmatpush.msra.mxu0 %v735
    %958 = vmatpush.msra.mxu0 %v731
    %959 = vmatmul.f32.gmra.mxu0 0.0
    %v960 = vpop.f32.mrf.mxu0
    %v961 = vadd.f32 %v941, %v960
    %962 = vdwg.mxu0
    %v963 = vmul.f32 %v841, 0.5
    %v964 = vtanh.pop %v963
    %v965 = vmul.f32 %v964, 0.5
    %v966 = vadd.f32 %v965, 0.5
    %v967 = vmul.f32 %v881, 0.5
    %v968 = vtanh.pop %v967
    %v969 = vmul.f32 %v968, 0.5
    %v970 = vadd.f32 %v969, 0.5
    %v971 = vmul.f32 %v966, %v961
    %v972 = vadd.f32 %v921, %v971
    %v973 = vtanh.pop %v972
    %v974 = vsub.f32 1.0, %v970
    %v975 = vmul.f32 %v974, %v973
    %v976 = vmul.f32 %v970, 0.0
    %v977 = vadd.f32 %v975, %v976
    %v978 = vld [vmem:[#allocation2 + $0x40] sm:$0xff]
    %v979 = vld [vmem:[#allocation2 + $0x48] sm:$0xff]
    %v980 = vld [vmem:[#allocation2 + $0x50] sm:$0xff]
    %v981 = vld [vmem:[#allocation2 + $0x58] sm:$0xff]
    %982 = vmatpush.msra.mxu0 %v458
    %983 = vmatpush.msra.mxu0 %v454
    %984 = vmatpush.msra.mxu0 %v450
    %985 = vmatpush.msra.mxu0 %v446
    %986 = vmatpush.msra.mxu0 %v442
    %987 = vmatpush.msra.mxu0 %v438
    %988 = vmatpush.msra.mxu0 %v434
    %989 = vmatpush.msra.mxu0 %v430
    %990 = vmatpush.msra.mxu0 %v426
    %991 = vmatpush.msra.mxu0 %v422
    %992 = vmatpush.msra.mxu0 %v418
    %993 = vmatpush.msra.mxu0 %v414
    %994 = vmatpush.msra.mxu0 %v410
    %995 = vmatpush.msra.mxu0 %v406
    %996 = vmatpush.msra.mxu0 %v402
    %997 = vmatpush.msra.mxu0 %v398
    %998 = vmatmul.f32.gmra.mxu0 %v663
    %v999 = vpop.f32.mrf.mxu0
    %v1000 = vadd.f32 0.0, %v999
    %1001 = vdwg.mxu0
    %1002 = vmatpush.msra.mxu0 %v459
    %1003 = vmatpush.msra.mxu0 %v455
    %1004 = vmatpush.msra.mxu0 %v451
    %1005 = vmatpush.msra.mxu0 %v447
    %1006 = vmatpush.msra.mxu0 %v443
    %1007 = vmatpush.msra.mxu0 %v439
    %1008 = vmatpush.msra.mxu0 %v435
    %1009 = vmatpush.msra.mxu0 %v431
    %1010 = vmatpush.msra.mxu0 %v427
    %1011 = vmatpush.msra.mxu0 %v423
    %1012 = vmatpush.msra.mxu0 %v419
    %1013 = vmatpush.msra.mxu0 %v415
    %1014 = vmatpush.msra.mxu0 %v411
    %1015 = vmatpush.msra.mxu0 %v407
    %1016 = vmatpush.msra.mxu0 %v403
    %1017 = vmatpush.msra.mxu0 %v399
    %1018 = vmatmul.f32.gmra.mxu0 %v663
    %v1019 = vpop.f32.mrf.mxu0
    %v1020 = vadd.f32 0.0, %v1019
    %1021 = vdwg.mxu0
    %1022 = vmatpush.msra.mxu0 %v460
    %1023 = vmatpush.msra.mxu0 %v456
    %1024 = vmatpush.msra.mxu0 %v452
    %1025 = vmatpush.msra.mxu0 %v448
    %1026 = vmatpush.msra.mxu0 %v444
    %1027 = vmatpush.msra.mxu0 %v440
    %1028 = vmatpush.msra.mxu0 %v436
    %1029 = vmatpush.msra.mxu0 %v432
    %1030 = vmatpush.msra.mxu0 %v428
    %1031 = vmatpush.msra.mxu0 %v424
    %1032 = vmatpush.msra.mxu0 %v420
    %1033 = vmatpush.msra.mxu0 %v416
    %1034 = vmatpush.msra.mxu0 %v412
    %1035 = vmatpush.msra.mxu0 %v408
    %1036 = vmatpush.msra.mxu0 %v404
    %1037 = vmatpush.msra.mxu0 %v400
    %1038 = vmatmul.f32.gmra.mxu0 %v663
    %v1039 = vpop.f32.mrf.mxu0
    %v1040 = vadd.f32 0.0, %v1039
    %1041 = vdwg.mxu0
    %1042 = vmatpush.msra.mxu0 %v461
    %1043 = vmatpush.msra.mxu0 %v457
    %1044 = vmatpush.msra.mxu0 %v453
    %1045 = vmatpush.msra.mxu0 %v449
    %1046 = vmatpush.msra.mxu0 %v445
    %1047 = vmatpush.msra.mxu0 %v441
    %1048 = vmatpush.msra.mxu0 %v437
    %1049 = vmatpush.msra.mxu0 %v433
    %1050 = vmatpush.msra.mxu0 %v429
    %1051 = vmatpush.msra.mxu0 %v425
    %1052 = vmatpush.msra.mxu0 %v421
    %1053 = vmatpush.msra.mxu0 %v417
    %1054 = vmatpush.msra.mxu0 %v413
    %1055 = vmatpush.msra.mxu0 %v409
    %1056 = vmatpush.msra.mxu0 %v405
    %1057 = vmatpush.msra.mxu0 %v401
    %1058 = vmatmul.f32.gmra.mxu0 %v663
    %v1059 = vpop.f32.mrf.mxu0
    %v1060 = vadd.f32 0.0, %v1059
    %1061 = vdwg.mxu0
    %v1062 = vadd.f32 %v978, %v1000
    %v1063 = vadd.f32 %v979, %v1020
    %v1064 = vadd.f32 %v980, %v1040
    %v1065 = vadd.f32 %v981, %v1060
    %v1066 = vmul.f32 %v1062, 0.5
    %v1067 = vtanh.pop %v1066
    %v1068 = vmul.f32 %v1067, 0.5
    %v1069 = vadd.f32 %v1068, 0.5
    %v1070 = vmul.f32 %v1063, 0.5
    %v1071 = vtanh.pop %v1070
    %v1072 = vmul.f32 %v1071, 0.5
    %v1073 = vadd.f32 %v1072, 0.5
    %v1074 = vmul.f32 %v1069, %v1065
    %v1075 = vadd.f32 %v1064, %v1074
    %v1076 = vtanh.pop %v1075
    %v1077 = vsub.f32 1.0, %v1073
    %v1078 = vmul.f32 %v1077, %v1076
    %v1079 = vmul.f32 %v1073, %v663
    %v1080 = vadd.f32 %v1078, %v1079
    %1081 = vmatpush.msra.mxu0 %v724
    %1082 = vmatpush.msra.mxu0 %v720
    %1083 = vmatpush.msra.mxu0 %v716
    %1084 = vmatpush.msra.mxu0 %v712
    %1085 = vmatpush.msra.mxu0 %v708
    %1086 = vmatpush.msra.mxu0 %v704
    %1087 = vmatpush.msra.mxu0 %v700
    %1088 = vmatpush.msra.mxu0 %v696
    %1089 = vmatpush.msra.mxu0 %v692
    %1090 = vmatpush.msra.mxu0 %v688
    %1091 = vmatpush.msra.mxu0 %v684
    %1092 = vmatpush.msra.mxu0 %v680
    %1093 = vmatpush.msra.mxu0 %v676
    %1094 = vmatpush.msra.mxu0 %v672
    %1095 = vmatpush.msra.mxu0 %v668
    %1096 = vmatpush.msra.mxu0 %v664
    %1097 = vmatmul.f32.gmra.mxu0 %v663
    %v1098 = vpop.f32.mrf.mxu0
    %v1099 = vadd.f32 %v795, %v1098
    %1100 = vdwg.mxu0
    %1101 = vmatpush.msra.mxu0 %v788
    %1102 = vmatpush.msra.mxu0 %v784
    %1103 = vmatpush.msra.mxu0 %v780
    %1104 = vmatpush.msra.mxu0 %v776
    %1105 = vmatpush.msra.mxu0 %v772
    %1106 = vmatpush.msra.mxu0 %v768
    %1107 = vmatpush.msra.mxu0 %v764
    %1108 = vmatpush.msra.mxu0 %v760
    %1109 = vmatpush.msra.mxu0 %v756
    %1110 = vmatpush.msra.mxu0 %v752
    %1111 = vmatpush.msra.mxu0 %v748
    %1112 = vmatpush.msra.mxu0 %v744
    %1113 = vmatpush.msra.mxu0 %v740
    %1114 = vmatpush.msra.mxu0 %v736
    %1115 = vmatpush.msra.mxu0 %v732
    %1116 = vmatpush.msra.mxu0 %v728
    %1117 = vmatmul.f32.gmra.mxu0 %v977
    %v1118 = vpop.f32.mrf.mxu0
    %v1119 = vadd.f32 %v1099, %v1118
    %1120 = vdwg.mxu0
    %1121 = vmatpush.msra.mxu0 %v725
    %1122 = vmatpush.msra.mxu0 %v721
    %1123 = vmatpush.msra.mxu0 %v717
    %1124 = vmatpush.msra.mxu0 %v713
    %1125 = vmatpush.msra.mxu0 %v709
    %1126 = vmatpush.msra.mxu0 %v705
    %1127 = vmatpush.msra.mxu0 %v701
    %1128 = vmatpush.msra.mxu0 %v697
    %1129 = vmatpush.msra.mxu0 %v693
    %1130 = vmatpush.msra.mxu0 %v689
    %1131 = vmatpush.msra.mxu0 %v685
    %1132 = vmatpush.msra.mxu0 %v681
    %1133 = vmatpush.msra.mxu0 %v677
    %1134 = vmatpush.msra.mxu0 %v673
    %1135 = vmatpush.msra.mxu0 %v669
    %1136 = vmatpush.msra.mxu0 %v665
    %1137 = vmatmul.f32.gmra.mxu0 %v663
    %v1138 = vpop.f32.mrf.mxu0
    %v1139 = vadd.f32 %v796, %v1138
    %1140 = vdwg.mxu0
    %1141 = vmatpush.msra.mxu0 %v789
    %1142 = vmatpush.msra.mxu0 %v785
    %1143 = vmatpush.msra.mxu0 %v781
    %1144 = vmatpush.msra.mxu0 %v777
    %1145 = vmatpush.msra.mxu0 %v773
    %1146 = vmatpush.msra.mxu0 %v769
    %1147 = vmatpush.msra.mxu0 %v765
    %1148 = vmatpush.msra.mxu0 %v761
    %1149 = vmatpush.msra.mxu0 %v757
    %1150 = vmatpush.msra.mxu0 %v753
    %1151 = vmatpush.msra.mxu0 %v749
    %1152 = vmatpush.msra.mxu0 %v745
    %1153 = vmatpush.msra.mxu0 %v741
    %1154 = vmatpush.msra.mxu0 %v737
    %1155 = vmatpush.msra.mxu0 %v733
    %1156 = vmatpush.msra.mxu0 %v729
    %1157 = vmatmul.f32.gmra.mxu0 %v977
    %v1158 = vpop.f32.mrf.mxu0
    %v1159 = vadd.f32 %v1139, %v1158
    %1160 = vdwg.mxu0
    %1161 = vmatpush.msra.mxu0 %v726
    %1162 = vmatpush.msra.mxu0 %v722
    %1163 = vmatpush.msra.mxu0 %v718
    %1164 = vmatpush.msra.mxu0 %v714
    %1165 = vmatpush.msra.mxu0 %v710
    %1166 = vmatpush.msra.mxu0 %v706
    %1167 = vmatpush.msra.mxu0 %v702
    %1168 = vmatpush.msra.mxu0 %v698
    %1169 = vmatpush.msra.mxu0 %v694
    %1170 = vmatpush.msra.mxu0 %v690
    %1171 = vmatpush.msra.mxu0 %v686
    %1172 = vmatpush.msra.mxu0 %v682
    %1173 = vmatpush.msra.mxu0 %v678
    %1174 = vmatpush.msra.mxu0 %v674
    %1175 = vmatpush.msra.mxu0 %v670
    %1176 = vmatpush.msra.mxu0 %v666
    %1177 = vmatmul.f32.gmra.mxu0 %v663
    %v1178 = vpop.f32.mrf.mxu0
    %v1179 = vadd.f32 %v797, %v1178
    %1180 = vdwg.mxu0
    %1181 = vmatpush.msra.mxu0 %v790
    %1182 = vmatpush.msra.mxu0 %v786
    %1183 = vmatpush.msra.mxu0 %v782
    %1184 = vmatpush.msra.mxu0 %v778
    %1185 = vmatpush.msra.mxu0 %v774
    %1186 = vmatpush.msra.mxu0 %v770
    %1187 = vmatpush.msra.mxu0 %v766
    %1188 = vmatpush.msra.mxu0 %v762
    %1189 = vmatpush.msra.mxu0 %v758
    %1190 = vmatpush.msra.mxu0 %v754
    %1191 = vmatpush.msra.mxu0 %v750
    %1192 = vmatpush.msra.mxu0 %v746
    %1193 = vmatpush.msra.mxu0 %v742
    %1194 = vmatpush.msra.mxu0 %v738
    %1195 = vmatpush.msra.mxu0 %v734
    %1196 = vmatpush.msra.mxu0 %v730
    %1197 = vmatmul.f32.gmra.mxu0 %v977
    %v1198 = vpop.f32.mrf.mxu0
    %v1199 = vadd.f32 %v1179, %v1198
    %1200 = vdwg.mxu0
    %1201 = vmatpush.msra.mxu0 %v727
    %1202 = vmatpush.msra.mxu0 %v723
    %1203 = vmatpush.msra.mxu0 %v719
    %1204 = vmatpush.msra.mxu0 %v715
    %1205 = vmatpush.msra.mxu0 %v711
    %1206 = vmatpush.msra.mxu0 %v707
    %1207 = vmatpush.msra.mxu0 %v703
    %1208 = vmatpush.msra.mxu0 %v699
    %1209 = vmatpush.msra.mxu0 %v695
    %1210 = vmatpush.msra.mxu0 %v691
    %1211 = vmatpush.msra.mxu0 %v687
    %1212 = vmatpush.msra.mxu0 %v683
    %1213 = vmatpush.msra.mxu0 %v679
    %1214 = vmatpush.msra.mxu0 %v675
    %1215 = vmatpush.msra.mxu0 %v671
    %1216 = vmatpush.msra.mxu0 %v667
    %1217 = vmatmul.f32.gmra.mxu0 %v663
    %v1218 = vpop.f32.mrf.mxu0
    %v1219 = vadd.f32 %v798, %v1218
    %1220 = vdwg.mxu0
    %1221 = vmatpush.msra.mxu0 %v791
    %1222 = vmatpush.msra.mxu0 %v787
    %1223 = vmatpush.msra.mxu0 %v783
    %1224 = vmatpush.msra.mxu0 %v779
    %1225 = vmatpush.msra.mxu0 %v775
    %1226 = vmatpush.msra.mxu0 %v771
    %1227 = vmatpush.msra.mxu0 %v767
    %1228 = vmatpush.msra.mxu0 %v763
    %1229 = vmatpush.msra.mxu0 %v759
    %1230 = vmatpush.msra.mxu0 %v755
    %1231 = vmatpush.msra.mxu0 %v751
    %1232 = vmatpush.msra.mxu0 %v747
    %1233 = vmatpush.msra.mxu0 %v743
    %1234 = vmatpush.msra.mxu0 %v739
    %1235 = vmatpush.msra.mxu0 %v735
    %1236 = vmatpush.msra.mxu0 %v731
    %1237 = vmatmul.f32.gmra.mxu0 %v977
    %v1238 = vpop.f32.mrf.mxu0
    %v1239 = vadd.f32 %v1219, %v1238
    %1240 = vdwg.mxu0
    %v1241 = vmul.f32 %v1119, 0.5
    %v1242 = vtanh.pop %v1241
    %v1243 = vmul.f32 %v1242, 0.5
    %v1244 = vadd.f32 %v1243, 0.5
    %v1245 = vmul.f32 %v1159, 0.5
    %v1246 = vtanh.pop %v1245
    %v1247 = vmul.f32 %v1246, 0.5
    %v1248 = vadd.f32 %v1247, 0.5
    %v1249 = vmul.f32 %v1244, %v1239
    %v1250 = vadd.f32 %v1199, %v1249
    %v1251 = vtanh.pop %v1250
    %v1252 = vsub.f32 1.0, %v1248
    %v1253 = vmul.f32 %v1252, %v1251
    %v1254 = vmul.f32 %v1248, %v977
    %v1255 = vadd.f32 %v1253, %v1254
    %s1256 = scalar_lea.vmem [#allocation11], 1024
    %v1257 = vld [vmem:[%s1256] sm:$0xff]
    %v1258 = vld [vmem:[%s1256 + $0x8] sm:$0xff]
    %v1259 = vld [vmem:[%s1256 + $0x10] sm:$0xff]
    %v1260 = vld [vmem:[%s1256 + $0x18] sm:$0xff]
    %v1261 = vld [vmem:[%s1256 + $0x20] sm:$0xff]
    %v1262 = vld [vmem:[%s1256 + $0x28] sm:$0xff]
    %v1263 = vld [vmem:[%s1256 + $0x30] sm:$0xff]
    %v1264 = vld [vmem:[%s1256 + $0x38] sm:$0xff]
    %v1265 = vld [vmem:[%s1256 + $0x40] sm:$0xff]
    %v1266 = vld [vmem:[%s1256 + $0x48] sm:$0xff]
    %v1267 = vld [vmem:[%s1256 + $0x50] sm:$0xff]
    %v1268 = vld [vmem:[%s1256 + $0x58] sm:$0xff]
    %v1269 = vld [vmem:[%s1256 + $0x60] sm:$0xff]
    %v1270 = vld [vmem:[%s1256 + $0x68] sm:$0xff]
    %v1271 = vld [vmem:[%s1256 + $0x70] sm:$0xff]
    %v1272 = vld [vmem:[%s1256 + $0x78] sm:$0xff]
    %v1273 = vld [vmem:[%s1256 + $0x80] sm:$0xff]
    %v1274 = vld [vmem:[%s1256 + $0x88] sm:$0xff]
    %v1275 = vld [vmem:[%s1256 + $0x90] sm:$0xff]
    %v1276 = vld [vmem:[%s1256 + $0x98] sm:$0xff]
    %v1277 = vld [vmem:[%s1256 + $0xa0] sm:$0xff]
    %v1278 = vld [vmem:[%s1256 + $0xa8] sm:$0xff]
    %v1279 = vld [vmem:[%s1256 + $0xb0] sm:$0xff]
    %v1280 = vld [vmem:[%s1256 + $0xb8] sm:$0xff]
    %v1281 = vld [vmem:[%s1256 + $0xc0] sm:$0xff]
    %v1282 = vld [vmem:[%s1256 + $0xc8] sm:$0xff]
    %v1283 = vld [vmem:[%s1256 + $0xd0] sm:$0xff]
    %v1284 = vld [vmem:[%s1256 + $0xd8] sm:$0xff]
    %v1285 = vld [vmem:[%s1256 + $0xe0] sm:$0xff]
    %v1286 = vld [vmem:[%s1256 + $0xe8] sm:$0xff]
    %v1287 = vld [vmem:[%s1256 + $0xf0] sm:$0xff]
    %v1288 = vld [vmem:[%s1256 + $0xf8] sm:$0xff]
    %v1289 = vld [vmem:[%s1256 + $0x100] sm:$0xff]
    %v1290 = vld [vmem:[%s1256 + $0x108] sm:$0xff]
    %v1291 = vld [vmem:[%s1256 + $0x110] sm:$0xff]
    %v1292 = vld [vmem:[%s1256 + $0x118] sm:$0xff]
    %v1293 = vld [vmem:[%s1256 + $0x120] sm:$0xff]
    %v1294 = vld [vmem:[%s1256 + $0x128] sm:$0xff]
    %v1295 = vld [vmem:[%s1256 + $0x130] sm:$0xff]
    %v1296 = vld [vmem:[%s1256 + $0x138] sm:$0xff]
    %v1297 = vld [vmem:[%s1256 + $0x140] sm:$0xff]
    %v1298 = vld [vmem:[%s1256 + $0x148] sm:$0xff]
    %v1299 = vld [vmem:[%s1256 + $0x150] sm:$0xff]
    %v1300 = vld [vmem:[%s1256 + $0x158] sm:$0xff]
    %v1301 = vld [vmem:[%s1256 + $0x160] sm:$0xff]
    %v1302 = vld [vmem:[%s1256 + $0x168] sm:$0xff]
    %v1303 = vld [vmem:[%s1256 + $0x170] sm:$0xff]
    %v1304 = vld [vmem:[%s1256 + $0x178] sm:$0xff]
    %v1305 = vld [vmem:[%s1256 + $0x180] sm:$0xff]
    %v1306 = vld [vmem:[%s1256 + $0x188] sm:$0xff]
    %v1307 = vld [vmem:[%s1256 + $0x190] sm:$0xff]
    %v1308 = vld [vmem:[%s1256 + $0x198] sm:$0xff]
    %v1309 = vld [vmem:[%s1256 + $0x1a0] sm:$0xff]
    %v1310 = vld [vmem:[%s1256 + $0x1a8] sm:$0xff]
    %v1311 = vld [vmem:[%s1256 + $0x1b0] sm:$0xff]
    %v1312 = vld [vmem:[%s1256 + $0x1b8] sm:$0xff]
    %v1313 = vld [vmem:[%s1256 + $0x1c0] sm:$0xff]
    %v1314 = vld [vmem:[%s1256 + $0x1c8] sm:$0xff]
    %v1315 = vld [vmem:[%s1256 + $0x1d0] sm:$0xff]
    %v1316 = vld [vmem:[%s1256 + $0x1d8] sm:$0xff]
    %v1317 = vld [vmem:[%s1256 + $0x1e0] sm:$0xff]
    %v1318 = vld [vmem:[%s1256 + $0x1e8] sm:$0xff]
    %v1319 = vld [vmem:[%s1256 + $0x1f0] sm:$0xff]
    %v1320 = vld [vmem:[%s1256 + $0x1f8] sm:$0xff]
    %v1321 = vld [vmem:[%s1256 + $0x200] sm:$0xff]
    %v1322 = vld [vmem:[%s1256 + $0x208] sm:$0xff]
    %v1323 = vld [vmem:[%s1256 + $0x210] sm:$0xff]
    %v1324 = vld [vmem:[%s1256 + $0x218] sm:$0xff]
    %v1325 = vld [vmem:[%s1256 + $0x220] sm:$0xff]
    %v1326 = vld [vmem:[%s1256 + $0x228] sm:$0xff]
    %v1327 = vld [vmem:[%s1256 + $0x230] sm:$0xff]
    %v1328 = vld [vmem:[%s1256 + $0x238] sm:$0xff]
    %v1329 = vld [vmem:[%s1256 + $0x240] sm:$0xff]
    %v1330 = vld [vmem:[%s1256 + $0x248] sm:$0xff]
    %v1331 = vld [vmem:[%s1256 + $0x250] sm:$0xff]
    %v1332 = vld [vmem:[%s1256 + $0x258] sm:$0xff]
    %v1333 = vld [vmem:[%s1256 + $0x260] sm:$0xff]
    %v1334 = vld [vmem:[%s1256 + $0x268] sm:$0xff]
    %v1335 = vld [vmem:[%s1256 + $0x270] sm:$0xff]
    %v1336 = vld [vmem:[%s1256 + $0x278] sm:$0xff]
    %v1337 = vld [vmem:[%s1256 + $0x280] sm:$0xff]
    %v1338 = vld [vmem:[%s1256 + $0x288] sm:$0xff]
    %v1339 = vld [vmem:[%s1256 + $0x290] sm:$0xff]
    %v1340 = vld [vmem:[%s1256 + $0x298] sm:$0xff]
    %v1341 = vld [vmem:[%s1256 + $0x2a0] sm:$0xff]
    %v1342 = vld [vmem:[%s1256 + $0x2a8] sm:$0xff]
    %v1343 = vld [vmem:[%s1256 + $0x2b0] sm:$0xff]
    %v1344 = vld [vmem:[%s1256 + $0x2b8] sm:$0xff]
    %v1345 = vld [vmem:[%s1256 + $0x2c0] sm:$0xff]
    %v1346 = vld [vmem:[%s1256 + $0x2c8] sm:$0xff]
    %v1347 = vld [vmem:[%s1256 + $0x2d0] sm:$0xff]
    %v1348 = vld [vmem:[%s1256 + $0x2d8] sm:$0xff]
    %v1349 = vld [vmem:[%s1256 + $0x2e0] sm:$0xff]
    %v1350 = vld [vmem:[%s1256 + $0x2e8] sm:$0xff]
    %v1351 = vld [vmem:[%s1256 + $0x2f0] sm:$0xff]
    %v1352 = vld [vmem:[%s1256 + $0x2f8] sm:$0xff]
    %v1353 = vld [vmem:[%s1256 + $0x300] sm:$0xff]
    %v1354 = vld [vmem:[%s1256 + $0x308] sm:$0xff]
    %v1355 = vld [vmem:[%s1256 + $0x310] sm:$0xff]
    %v1356 = vld [vmem:[%s1256 + $0x318] sm:$0xff]
    %v1357 = vld [vmem:[%s1256 + $0x320] sm:$0xff]
    %v1358 = vld [vmem:[%s1256 + $0x328] sm:$0xff]
    %v1359 = vld [vmem:[%s1256 + $0x330] sm:$0xff]
    %v1360 = vld [vmem:[%s1256 + $0x338] sm:$0xff]
    %v1361 = vld [vmem:[%s1256 + $0x340] sm:$0xff]
    %v1362 = vld [vmem:[%s1256 + $0x348] sm:$0xff]
    %v1363 = vld [vmem:[%s1256 + $0x350] sm:$0xff]
    %v1364 = vld [vmem:[%s1256 + $0x358] sm:$0xff]
    %v1365 = vld [vmem:[%s1256 + $0x360] sm:$0xff]
    %v1366 = vld [vmem:[%s1256 + $0x368] sm:$0xff]
    %v1367 = vld [vmem:[%s1256 + $0x370] sm:$0xff]
    %v1368 = vld [vmem:[%s1256 + $0x378] sm:$0xff]
    %v1369 = vld [vmem:[%s1256 + $0x380] sm:$0xff]
    %v1370 = vld [vmem:[%s1256 + $0x388] sm:$0xff]
    %v1371 = vld [vmem:[%s1256 + $0x390] sm:$0xff]
    %v1372 = vld [vmem:[%s1256 + $0x398] sm:$0xff]
    %v1373 = vld [vmem:[%s1256 + $0x3a0] sm:$0xff]
    %v1374 = vld [vmem:[%s1256 + $0x3a8] sm:$0xff]
    %v1375 = vld [vmem:[%s1256 + $0x3b0] sm:$0xff]
    %v1376 = vld [vmem:[%s1256 + $0x3b8] sm:$0xff]
    %v1377 = vld [vmem:[%s1256 + $0x3c0] sm:$0xff]
    %v1378 = vld [vmem:[%s1256 + $0x3c8] sm:$0xff]
    %v1379 = vld [vmem:[%s1256 + $0x3d0] sm:$0xff]
    %v1380 = vld [vmem:[%s1256 + $0x3d8] sm:$0xff]
    %v1381 = vld [vmem:[%s1256 + $0x3e0] sm:$0xff]
    %v1382 = vld [vmem:[%s1256 + $0x3e8] sm:$0xff]
    %v1383 = vld [vmem:[%s1256 + $0x3f0] sm:$0xff]
    %v1384 = vld [vmem:[%s1256 + $0x3f8] sm:$0xff]
    %s1385 = scalar_lea.vmem [#allocation12], 8
    %v1386 = vld [vmem:[%s1385] sm:$0xf]
    %v1388 = vperm.slane %v1386, 0
    %v1389 = vperm.slane %v1386, 1
    %v1390 = vperm.slane %v1386, 2
    %v1391 = vperm.slane %v1386, 3
    %1396 = vmatpush.msra.mxu0 %v1317
    %1397 = vmatpush.msra.mxu0 %v1313
    %1398 = vmatpush.msra.mxu0 %v1309
    %1399 = vmatpush.msra.mxu0 %v1305
    %1400 = vmatpush.msra.mxu0 %v1301
    %1401 = vmatpush.msra.mxu0 %v1297
    %1402 = vmatpush.msra.mxu0 %v1293
    %1403 = vmatpush.msra.mxu0 %v1289
    %1404 = vmatpush.msra.mxu0 %v1285
    %1405 = vmatpush.msra.mxu0 %v1281
    %1406 = vmatpush.msra.mxu0 %v1277
    %1407 = vmatpush.msra.mxu0 %v1273
    %1408 = vmatpush.msra.mxu0 %v1269
    %1409 = vmatpush.msra.mxu0 %v1265
    %1410 = vmatpush.msra.mxu0 %v1261
    %1411 = vmatpush.msra.mxu0 %v1257
    %1412 = vmatmul.f32.gmra.mxu0 %v977
    %v1413 = vpop.f32.mrf.mxu0
    %v1414 = vadd.f32 %v1388, %v1413
    %1415 = vdwg.mxu0
    %1416 = vmatpush.msra.mxu0 %v1381
    %1417 = vmatpush.msra.mxu0 %v1377
    %1418 = vmatpush.msra.mxu0 %v1373
    %1419 = vmatpush.msra.mxu0 %v1369
    %1420 = vmatpush.msra.mxu0 %v1365
    %1421 = vmatpush.msra.mxu0 %v1361
    %1422 = vmatpush.msra.mxu0 %v1357
    %1423 = vmatpush.msra.mxu0 %v1353
    %1424 = vmatpush.msra.mxu0 %v1349
    %1425 = vmatpush.msra.mxu0 %v1345
    %1426 = vmatpush.msra.mxu0 %v1341
    %1427 = vmatpush.msra.mxu0 %v1337
    %1428 = vmatpush.msra.mxu0 %v1333
    %1429 = vmatpush.msra.mxu0 %v1329
    %1430 = vmatpush.msra.mxu0 %v1325
    %1431 = vmatpush.msra.mxu0 %v1321
    %1432 = vmatmul.f32.gmra.mxu0 0.0
    %v1433 = vpop.f32.mrf.mxu0
    %v1434 = vadd.f32 %v1414, %v1433
    %1435 = vdwg.mxu0
    %1436 = vmatpush.msra.mxu0 %v1318
    %1437 = vmatpush.msra.mxu0 %v1314
    %1438 = vmatpush.msra.mxu0 %v1310
    %1439 = vmatpush.msra.mxu0 %v1306
    %1440 = vmatpush.msra.mxu0 %v1302
    %1441 = vmatpush.msra.mxu0 %v1298
    %1442 = vmatpush.msra.mxu0 %v1294
    %1443 = vmatpush.msra.mxu0 %v1290
    %1444 = vmatpush.msra.mxu0 %v1286
    %1445 = vmatpush.msra.mxu0 %v1282
    %1446 = vmatpush.msra.mxu0 %v1278
    %1447 = vmatpush.msra.mxu0 %v1274
    %1448 = vmatpush.msra.mxu0 %v1270
    %1449 = vmatpush.msra.mxu0 %v1266
    %1450 = vmatpush.msra.mxu0 %v1262
    %1451 = vmatpush.msra.mxu0 %v1258
    %1452 = vmatmul.f32.gmra.mxu0 %v977
    %v1453 = vpop.f32.mrf.mxu0
    %v1454 = vadd.f32 %v1389, %v1453
    %1455 = vdwg.mxu0
    %1456 = vmatpush.msra.mxu0 %v1382
    %1457 = vmatpush.msra.mxu0 %v1378
    %1458 = vmatpush.msra.mxu0 %v1374
    %1459 = vmatpush.msra.mxu0 %v1370
    %1460 = vmatpush.msra.mxu0 %v1366
    %1461 = vmatpush.msra.mxu0 %v1362
    %1462 = vmatpush.msra.mxu0 %v1358
    %1463 = vmatpush.msra.mxu0 %v1354
    %1464 = vmatpush.msra.mxu0 %v1350
    %1465 = vmatpush.msra.mxu0 %v1346
    %1466 = vmatpush.msra.mxu0 %v1342
    %1467 = vmatpush.msra.mxu0 %v1338
    %1468 = vmatpush.msra.mxu0 %v1334
    %1469 = vmatpush.msra.mxu0 %v1330
    %1470 = vmatpush.msra.mxu0 %v1326
    %1471 = vmatpush.msra.mxu0 %v1322
    %1472 = vmatmul.f32.gmra.mxu0 0.0
    %v1473 = vpop.f32.mrf.mxu0
    %v1474 = vadd.f32 %v1454, %v1473
    %1475 = vdwg.mxu0
    %1476 = vmatpush.msra.mxu0 %v1319
    %1477 = vmatpush.msra.mxu0 %v1315
    %1478 = vmatpush.msra.mxu0 %v1311
    %1479 = vmatpush.msra.mxu0 %v1307
    %1480 = vmatpush.msra.mxu0 %v1303
    %1481 = vmatpush.msra.mxu0 %v1299
    %1482 = vmatpush.msra.mxu0 %v1295
    %1483 = vmatpush.msra.mxu0 %v1291
    %1484 = vmatpush.msra.mxu0 %v1287
    %1485 = vmatpush.msra.mxu0 %v1283
    %1486 = vmatpush.msra.mxu0 %v1279
    %1487 = vmatpush.msra.mxu0 %v1275
    %1488 = vmatpush.msra.mxu0 %v1271
    %1489 = vmatpush.msra.mxu0 %v1267
    %1490 = vmatpush.msra.mxu0 %v1263
    %1491 = vmatpush.msra.mxu0 %v1259
    %1492 = vmatmul.f32.gmra.mxu0 %v977
    %v1493 = vpop.f32.mrf.mxu0
    %v1494 = vadd.f32 %v1390, %v1493
    %1495 = vdwg.mxu0
    %1496 = vmatpush.msra.mxu0 %v1383
    %1497 = vmatpush.msra.mxu0 %v1379
    %1498 = vmatpush.msra.mxu0 %v1375
    %1499 = vmatpush.msra.mxu0 %v1371
    %1500 = vmatpush.msra.mxu0 %v1367
    %1501 = vmatpush.msra.mxu0 %v1363
    %1502 = vmatpush.msra.mxu0 %v1359
    %1503 = vmatpush.msra.mxu0 %v1355
    %1504 = vmatpush.msra.mxu0 %v1351
    %1505 = vmatpush.msra.mxu0 %v1347
    %1506 = vmatpush.msra.mxu0 %v1343
    %1507 = vmatpush.msra.mxu0 %v1339
    %1508 = vmatpush.msra.mxu0 %v1335
    %1509 = vmatpush.msra.mxu0 %v1331
    %1510 = vmatpush.msra.mxu0 %v1327
    %1511 = vmatpush.msra.mxu0 %v1323
    %1512 = vmatmul.f32.gmra.mxu0 0.0
    %v1513 = vpop.f32.mrf.mxu0
    %v1514 = vadd.f32 %v1494, %v1513
    %1515 = vdwg.mxu0
    %1516 = vmatpush.msra.mxu0 %v1320
    %1517 = vmatpush.msra.mxu0 %v1316
    %1518 = vmatpush.msra.mxu0 %v1312
    %1519 = vmatpush.msra.mxu0 %v1308
    %1520 = vmatpush.msra.mxu0 %v1304
    %1521 = vmatpush.msra.mxu0 %v1300
    %1522 = vmatpush.msra.mxu0 %v1296
    %1523 = vmatpush.msra.mxu0 %v1292
    %1524 = vmatpush.msra.mxu0 %v1288
    %1525 = vmatpush.msra.mxu0 %v1284
    %1526 = vmatpush.msra.mxu0 %v1280
    %1527 = vmatpush.msra.mxu0 %v1276
    %1528 = vmatpush.msra.mxu0 %v1272
    %1529 = vmatpush.msra.mxu0 %v1268
    %1530 = vmatpush.msra.mxu0 %v1264
    %1531 = vmatpush.msra.mxu0 %v1260
    %1532 = vmatmul.f32.gmra.mxu0 %v977
    %v1533 = vpop.f32.mrf.mxu0
    %v1534 = vadd.f32 %v1391, %v1533
    %1535 = vdwg.mxu0
    %1536 = vmatpush.msra.mxu0 %v1384
    %1537 = vmatpush.msra.mxu0 %v1380
    %1538 = vmatpush.msra.mxu0 %v1376
    %1539 = vmatpush.msra.mxu0 %v1372
    %1540 = vmatpush.msra.mxu0 %v1368
    %1541 = vmatpush.msra.mxu0 %v1364
    %1542 = vmatpush.msra.mxu0 %v1360
    %1543 = vmatpush.msra.mxu0 %v1356
    %1544 = vmatpush.msra.mxu0 %v1352
    %1545 = vmatpush.msra.mxu0 %v1348
    %1546 = vmatpush.msra.mxu0 %v1344
    %1547 = vmatpush.msra.mxu0 %v1340
    %1548 = vmatpush.msra.mxu0 %v1336
    %1549 = vmatpush.msra.mxu0 %v1332
    %1550 = vmatpush.msra.mxu0 %v1328
    %1551 = vmatpush.msra.mxu0 %v1324
    %1552 = vmatmul.f32.gmra.mxu0 0.0
    %v1553 = vpop.f32.mrf.mxu0
    %v1554 = vadd.f32 %v1534, %v1553
    %1555 = vdwg.mxu0
    %v1556 = vmul.f32 %v1434, 0.5
    %v1557 = vtanh.pop %v1556
    %v1558 = vmul.f32 %v1557, 0.5
    %v1559 = vadd.f32 %v1558, 0.5
    %v1560 = vmul.f32 %v1474, 0.5
    %v1561 = vtanh.pop %v1560
    %v1562 = vmul.f32 %v1561, 0.5
    %v1563 = vadd.f32 %v1562, 0.5
    %v1564 = vmul.f32 %v1559, %v1554
    %v1565 = vadd.f32 %v1514, %v1564
    %v1566 = vtanh.pop %v1565
    %v1567 = vsub.f32 1.0, %v1563
    %v1568 = vmul.f32 %v1567, %v1566
    %v1569 = vmul.f32 %v1563, 0.0
    %v1570 = vadd.f32 %v1568, %v1569
    %v1571 = vld [vmem:[#allocation2 + $0x60] sm:$0xff]
    %v1572 = vld [vmem:[#allocation2 + $0x68] sm:$0xff]
    %v1573 = vld [vmem:[#allocation2 + $0x70] sm:$0xff]
    %v1574 = vld [vmem:[#allocation2 + $0x78] sm:$0xff]
    %1575 = vmatpush.msra.mxu0 %v458
    %1576 = vmatpush.msra.mxu0 %v454
    %1577 = vmatpush.msra.mxu0 %v450
    %1578 = vmatpush.msra.mxu0 %v446
    %1579 = vmatpush.msra.mxu0 %v442
    %1580 = vmatpush.msra.mxu0 %v438
    %1581 = vmatpush.msra.mxu0 %v434
    %1582 = vmatpush.msra.mxu0 %v430
    %1583 = vmatpush.msra.mxu0 %v426
    %1584 = vmatpush.msra.mxu0 %v422
    %1585 = vmatpush.msra.mxu0 %v418
    %1586 = vmatpush.msra.mxu0 %v414
    %1587 = vmatpush.msra.mxu0 %v410
    %1588 = vmatpush.msra.mxu0 %v406
    %1589 = vmatpush.msra.mxu0 %v402
    %1590 = vmatpush.msra.mxu0 %v398
    %1591 = vmatmul.f32.gmra.mxu0 %v1080
    %v1592 = vpop.f32.mrf.mxu0
    %v1593 = vadd.f32 0.0, %v1592
    %1594 = vdwg.mxu0
    %1595 = vmatpush.msra.mxu0 %v459
    %1596 = vmatpush.msra.mxu0 %v455
    %1597 = vmatpush.msra.mxu0 %v451
    %1598 = vmatpush.msra.mxu0 %v447
    %1599 = vmatpush.msra.mxu0 %v443
    %1600 = vmatpush.msra.mxu0 %v439
    %1601 = vmatpush.msra.mxu0 %v435
    %1602 = vmatpush.msra.mxu0 %v431
    %1603 = vmatpush.msra.mxu0 %v427
    %1604 = vmatpush.msra.mxu0 %v423
    %1605 = vmatpush.msra.mxu0 %v419
    %1606 = vmatpush.msra.mxu0 %v415
    %1607 = vmatpush.msra.mxu0 %v411
    %1608 = vmatpush.msra.mxu0 %v407
    %1609 = vmatpush.msra.mxu0 %v403
    %1610 = vmatpush.msra.mxu0 %v399
    %1611 = vmatmul.f32.gmra.mxu0 %v1080
    %v1612 = vpop.f32.mrf.mxu0
    %v1613 = vadd.f32 0.0, %v1612
    %1614 = vdwg.mxu0
    %1615 = vmatpush.msra.mxu0 %v460
    %1616 = vmatpush.msra.mxu0 %v456
    %1617 = vmatpush.msra.mxu0 %v452
    %1618 = vmatpush.msra.mxu0 %v448
    %1619 = vmatpush.msra.mxu0 %v444
    %1620 = vmatpush.msra.mxu0 %v440
    %1621 = vmatpush.msra.mxu0 %v436
    %1622 = vmatpush.msra.mxu0 %v432
    %1623 = vmatpush.msra.mxu0 %v428
    %1624 = vmatpush.msra.mxu0 %v424
    %1625 = vmatpush.msra.mxu0 %v420
    %1626 = vmatpush.msra.mxu0 %v416
    %1627 = vmatpush.msra.mxu0 %v412
    %1628 = vmatpush.msra.mxu0 %v408
    %1629 = vmatpush.msra.mxu0 %v404
    %1630 = vmatpush.msra.mxu0 %v400
    %1631 = vmatmul.f32.gmra.mxu0 %v1080
    %v1632 = vpop.f32.mrf.mxu0
    %v1633 = vadd.f32 0.0, %v1632
    %1634 = vdwg.mxu0
    %1635 = vmatpush.msra.mxu0 %v461
    %1636 = vmatpush.msra.mxu0 %v457
    %1637 = vmatpush.msra.mxu0 %v453
    %1638 = vmatpush.msra.mxu0 %v449
    %1639 = vmatpush.msra.mxu0 %v445
    %1640 = vmatpush.msra.mxu0 %v441
    %1641 = vmatpush.msra.mxu0 %v437
    %1642 = vmatpush.msra.mxu0 %v433
    %1643 = vmatpush.msra.mxu0 %v429
    %1644 = vmatpush.msra.mxu0 %v425
    %1645 = vmatpush.msra.mxu0 %v421
    %1646 = vmatpush.msra.mxu0 %v417
    %1647 = vmatpush.msra.mxu0 %v413
    %1648 = vmatpush.msra.mxu0 %v409
    %1649 = vmatpush.msra.mxu0 %v405
    %1650 = vmatpush.msra.mxu0 %v401
    %1651 = vmatmul.f32.gmra.mxu0 %v1080
    %v1652 = vpop.f32.mrf.mxu0
    %v1653 = vadd.f32 0.0, %v1652
    %1654 = vdwg.mxu0
    %v1655 = vadd.f32 %v1571, %v1593
    %v1656 = vadd.f32 %v1572, %v1613
    %v1657 = vadd.f32 %v1573, %v1633
    %v1658 = vadd.f32 %v1574, %v1653
    %v1659 = vmul.f32 %v1655, 0.5
    %v1660 = vtanh.pop %v1659
    %v1661 = vmul.f32 %v1660, 0.5
    %v1662 = vadd.f32 %v1661, 0.5
    %v1663 = vmul.f32 %v1656, 0.5
    %v1664 = vtanh.pop %v1663
    %v1665 = vmul.f32 %v1664, 0.5
    %v1666 = vadd.f32 %v1665, 0.5
    %v1667 = vmul.f32 %v1662, %v1658
    %v1668 = vadd.f32 %v1657, %v1667
    %v1669 = vtanh.pop %v1668
    %v1670 = vsub.f32 1.0, %v1666
    %v1671 = vmul.f32 %v1670, %v1669
    %v1672 = vmul.f32 %v1666, %v1080
    %v1673 = vadd.f32 %v1671, %v1672
    %1674 = vmatpush.msra.mxu0 %v724
    %1675 = vmatpush.msra.mxu0 %v720
    %1676 = vmatpush.msra.mxu0 %v716
    %1677 = vmatpush.msra.mxu0 %v712
    %1678 = vmatpush.msra.mxu0 %v708
    %1679 = vmatpush.msra.mxu0 %v704
    %1680 = vmatpush.msra.mxu0 %v700
    %1681 = vmatpush.msra.mxu0 %v696
    %1682 = vmatpush.msra.mxu0 %v692
    %1683 = vmatpush.msra.mxu0 %v688
    %1684 = vmatpush.msra.mxu0 %v684
    %1685 = vmatpush.msra.mxu0 %v680
    %1686 = vmatpush.msra.mxu0 %v676
    %1687 = vmatpush.msra.mxu0 %v672
    %1688 = vmatpush.msra.mxu0 %v668
    %1689 = vmatpush.msra.mxu0 %v664
    %1690 = vmatmul.f32.gmra.mxu0 %v1080
    %v1691 = vpop.f32.mrf.mxu0
    %v1692 = vadd.f32 %v795, %v1691
    %1693 = vdwg.mxu0
    %1694 = vmatpush.msra.mxu0 %v788
    %1695 = vmatpush.msra.mxu0 %v784
    %1696 = vmatpush.msra.mxu0 %v780
    %1697 = vmatpush.msra.mxu0 %v776
    %1698 = vmatpush.msra.mxu0 %v772
    %1699 = vmatpush.msra.mxu0 %v768
    %1700 = vmatpush.msra.mxu0 %v764
    %1701 = vmatpush.msra.mxu0 %v760
    %1702 = vmatpush.msra.mxu0 %v756
    %1703 = vmatpush.msra.mxu0 %v752
    %1704 = vmatpush.msra.mxu0 %v748
    %1705 = vmatpush.msra.mxu0 %v744
    %1706 = vmatpush.msra.mxu0 %v740
    %1707 = vmatpush.msra.mxu0 %v736
    %1708 = vmatpush.msra.mxu0 %v732
    %1709 = vmatpush.msra.mxu0 %v728
    %1710 = vmatmul.f32.gmra.mxu0 %v1255
    %v1711 = vpop.f32.mrf.mxu0
    %v1712 = vadd.f32 %v1692, %v1711
    %1713 = vdwg.mxu0
    %1714 = vmatpush.msra.mxu0 %v725
    %1715 = vmatpush.msra.mxu0 %v721
    %1716 = vmatpush.msra.mxu0 %v717
    %1717 = vmatpush.msra.mxu0 %v713
    %1718 = vmatpush.msra.mxu0 %v709
    %1719 = vmatpush.msra.mxu0 %v705
    %1720 = vmatpush.msra.mxu0 %v701
    %1721 = vmatpush.msra.mxu0 %v697
    %1722 = vmatpush.msra.mxu0 %v693
    %1723 = vmatpush.msra.mxu0 %v689
    %1724 = vmatpush.msra.mxu0 %v685
    %1725 = vmatpush.msra.mxu0 %v681
    %1726 = vmatpush.msra.mxu0 %v677
    %1727 = vmatpush.msra.mxu0 %v673
    %1728 = vmatpush.msra.mxu0 %v669
    %1729 = vmatpush.msra.mxu0 %v665
    %1730 = vmatmul.f32.gmra.mxu0 %v1080
    %v1731 = vpop.f32.mrf.mxu0
    %v1732 = vadd.f32 %v796, %v1731
    %1733 = vdwg.mxu0
    %1734 = vmatpush.msra.mxu0 %v789
    %1735 = vmatpush.msra.mxu0 %v785
    %1736 = vmatpush.msra.mxu0 %v781
    %1737 = vmatpush.msra.mxu0 %v777
    %1738 = vmatpush.msra.mxu0 %v773
    %1739 = vmatpush.msra.mxu0 %v769
    %1740 = vmatpush.msra.mxu0 %v765
    %1741 = vmatpush.msra.mxu0 %v761
    %1742 = vmatpush.msra.mxu0 %v757
    %1743 = vmatpush.msra.mxu0 %v753
    %1744 = vmatpush.msra.mxu0 %v749
    %1745 = vmatpush.msra.mxu0 %v745
    %1746 = vmatpush.msra.mxu0 %v741
    %1747 = vmatpush.msra.mxu0 %v737
    %1748 = vmatpush.msra.mxu0 %v733
    %1749 = vmatpush.msra.mxu0 %v729
    %1750 = vmatmul.f32.gmra.mxu0 %v1255
    %v1751 = vpop.f32.mrf.mxu0
    %v1752 = vadd.f32 %v1732, %v1751
    %1753 = vdwg.mxu0
    %1754 = vmatpush.msra.mxu0 %v726
    %1755 = vmatpush.msra.mxu0 %v722
    %1756 = vmatpush.msra.mxu0 %v718
    %1757 = vmatpush.msra.mxu0 %v714
    %1758 = vmatpush.msra.mxu0 %v710
    %1759 = vmatpush.msra.mxu0 %v706
    %1760 = vmatpush.msra.mxu0 %v702
    %1761 = vmatpush.msra.mxu0 %v698
    %1762 = vmatpush.msra.mxu0 %v694
    %1763 = vmatpush.msra.mxu0 %v690
    %1764 = vmatpush.msra.mxu0 %v686
    %1765 = vmatpush.msra.mxu0 %v682
    %1766 = vmatpush.msra.mxu0 %v678
    %1767 = vmatpush.msra.mxu0 %v674
    %1768 = vmatpush.msra.mxu0 %v670
    %1769 = vmatpush.msra.mxu0 %v666
    %1770 = vmatmul.f32.gmra.mxu0 %v1080
    %v1771 = vpop.f32.mrf.mxu0
    %v1772 = vadd.f32 %v797, %v1771
    %1773 = vdwg.mxu0
    %1774 = vmatpush.msra.mxu0 %v790
    %1775 = vmatpush.msra.mxu0 %v786
    %1776 = vmatpush.msra.mxu0 %v782
    %1777 = vmatpush.msra.mxu0 %v778
    %1778 = vmatpush.msra.mxu0 %v774
    %1779 = vmatpush.msra.mxu0 %v770
    %1780 = vmatpush.msra.mxu0 %v766
    %1781 = vmatpush.msra.mxu0 %v762
    %1782 = vmatpush.msra.mxu0 %v758
    %1783 = vmatpush.msra.mxu0 %v754
    %1784 = vmatpush.msra.mxu0 %v750
    %1785 = vmatpush.msra.mxu0 %v746
    %1786 = vmatpush.msra.mxu0 %v742
    %1787 = vmatpush.msra.mxu0 %v738
    %1788 = vmatpush.msra.mxu0 %v734
    %1789 = vmatpush.msra.mxu0 %v730
    %1790 = vmatmul.f32.gmra.mxu0 %v1255
    %v1791 = vpop.f32.mrf.mxu0
    %v1792 = vadd.f32 %v1772, %v1791
    %1793 = vdwg.mxu0
    %1794 = vmatpush.msra.mxu0 %v727
    %1795 = vmatpush.msra.mxu0 %v723
    %1796 = vmatpush.msra.mxu0 %v719
    %1797 = vmatpush.msra.mxu0 %v715
    %1798 = vmatpush.msra.mxu0 %v711
    %1799 = vmatpush.msra.mxu0 %v707
    %1800 = vmatpush.msra.mxu0 %v703
    %1801 = vmatpush.msra.mxu0 %v699
    %1802 = vmatpush.msra.mxu0 %v695
    %1803 = vmatpush.msra.mxu0 %v691
    %1804 = vmatpush.msra.mxu0 %v687
    %1805 = vmatpush.msra.mxu0 %v683
    %1806 = vmatpush.msra.mxu0 %v679
    %1807 = vmatpush.msra.mxu0 %v675
    %1808 = vmatpush.msra.mxu0 %v671
    %1809 = vmatpush.msra.mxu0 %v667
    %1810 = vmatmul.f32.gmra.mxu0 %v1080
    %v1811 = vpop.f32.mrf.mxu0
    %v1812 = vadd.f32 %v798, %v1811
    %1813 = vdwg.mxu0
    %1814 = vmatpush.msra.mxu0 %v791
    %1815 = vmatpush.msra.mxu0 %v787
    %1816 = vmatpush.msra.mxu0 %v783
    %1817 = vmatpush.msra.mxu0 %v779
    %1818 = vmatpush.msra.mxu0 %v775
    %1819 = vmatpush.msra.mxu0 %v771
    %1820 = vmatpush.msra.mxu0 %v767
    %1821 = vmatpush.msra.mxu0 %v763
    %1822 = vmatpush.msra.mxu0 %v759
    %1823 = vmatpush.msra.mxu0 %v755
    %1824 = vmatpush.msra.mxu0 %v751
    %1825 = vmatpush.msra.mxu0 %v747
    %1826 = vmatpush.msra.mxu0 %v743
    %1827 = vmatpush.msra.mxu0 %v739
    %1828 = vmatpush.msra.mxu0 %v735
    %1829 = vmatpush.msra.mxu0 %v731
    %1830 = vmatmul.f32.gmra.mxu0 %v1255
    %v1831 = vpop.f32.mrf.mxu0
    %v1832 = vadd.f32 %v1812, %v1831
    %1833 = vdwg.mxu0
    %v1834 = vmul.f32 %v1712, 0.5
    %v1835 = vtanh.pop %v1834
    %v1836 = vmul.f32 %v1835, 0.5
    %v1837 = vadd.f32 %v1836, 0.5
    %v1838 = vmul.f32 %v1752, 0.5
    %v1839 = vtanh.pop %v1838
    %v1840 = vmul.f32 %v1839, 0.5
    %v1841 = vadd.f32 %v1840, 0.5
    %v1842 = vmul.f32 %v1837, %v1832
    %v1843 = vadd.f32 %v1792, %v1842
    %v1844 = vtanh.pop %v1843
    %v1845 = vsub.f32 1.0, %v1841
    %v1846 = vmul.f32 %v1845, %v1844
    %v1847 = vmul.f32 %v1841, %v1255
    %v1848 = vadd.f32 %v1846, %v1847
    %1849 = vmatpush.msra.mxu0 %v1317
    %1850 = vmatpush.msra.mxu0 %v1313
    %1851 = vmatpush.msra.mxu0 %v1309
    %1852 = vmatpush.msra.mxu0 %v1305
    %1853 = vmatpush.msra.mxu0 %v1301
    %1854 = vmatpush.msra.mxu0 %v1297
    %1855 = vmatpush.msra.mxu0 %v1293
    %1856 = vmatpush.msra.mxu0 %v1289
    %1857 = vmatpush.msra.mxu0 %v1285
    %1858 = vmatpush.msra.mxu0 %v1281
    %1859 = vmatpush.msra.mxu0 %v1277
    %1860 = vmatpush.msra.mxu0 %v1273
    %1861 = vmatpush.msra.mxu0 %v1269
    %1862 = vmatpush.msra.mxu0 %v1265
    %1863 = vmatpush.msra.mxu0 %v1261
    %1864 = vmatpush.msra.mxu0 %v1257
    %1865 = vmatmul.f32.gmra.mxu0 %v1255
    %v1866 = vpop.f32.mrf.mxu0
    %v1867 = vadd.f32 %v1388, %v1866
    %1868 = vdwg.mxu0
    %1869 = vmatpush.msra.mxu0 %v1381
    %1870 = vmatpush.msra.mxu0 %v1377
    %1871 = vmatpush.msra.mxu0 %v1373
    %1872 = vmatpush.msra.mxu0 %v1369
    %1873 = vmatpush.msra.mxu0 %v1365
    %1874 = vmatpush.msra.mxu0 %v1361
    %1875 = vmatpush.msra.mxu0 %v1357
    %1876 = vmatpush.msra.mxu0 %v1353
    %1877 = vmatpush.msra.mxu0 %v1349
    %1878 = vmatpush.msra.mxu0 %v1345
    %1879 = vmatpush.msra.mxu0 %v1341
    %1880 = vmatpush.msra.mxu0 %v1337
    %1881 = vmatpush.msra.mxu0 %v1333
    %1882 = vmatpush.msra.mxu0 %v1329
    %1883 = vmatpush.msra.mxu0 %v1325
    %1884 = vmatpush.msra.mxu0 %v1321
    %1885 = vmatmul.f32.gmra.mxu0 %v1570
    %v1886 = vpop.f32.mrf.mxu0
    %v1887 = vadd.f32 %v1867, %v1886
    %1888 = vdwg.mxu0
    %1889 = vmatpush.msra.mxu0 %v1318
    %1890 = vmatpush.msra.mxu0 %v1314
    %1891 = vmatpush.msra.mxu0 %v1310
    %1892 = vmatpush.msra.mxu0 %v1306
    %1893 = vmatpush.msra.mxu0 %v1302
    %1894 = vmatpush.msra.mxu0 %v1298
    %1895 = vmatpush.msra.mxu0 %v1294
    %1896 = vmatpush.msra.mxu0 %v1290
    %1897 = vmatpush.msra.mxu0 %v1286
    %1898 = vmatpush.msra.mxu0 %v1282
    %1899 = vmatpush.msra.mxu0 %v1278
    %1900 = vmatpush.msra.mxu0 %v1274
    %1901 = vmatpush.msra.mxu0 %v1270
    %1902 = vmatpush.msra.mxu0 %v1266
    %1903 = vmatpush.msra.mxu0 %v1262
    %1904 = vmatpush.msra.mxu0 %v1258
    %1905 = vmatmul.f32.gmra.mxu0 %v1255
    %v1906 = vpop.f32.mrf.mxu0
    %v1907 = vadd.f32 %v1389, %v1906
    %1908 = vdwg.mxu0
    %1909 = vmatpush.msra.mxu0 %v1382
    %1910 = vmatpush.msra.mxu0 %v1378
    %1911 = vmatpush.msra.mxu0 %v1374
    %1912 = vmatpush.msra.mxu0 %v1370
    %1913 = vmatpush.msra.mxu0 %v1366
    %1914 = vmatpush.msra.mxu0 %v1362
    %1915 = vmatpush.msra.mxu0 %v1358
    %1916 = vmatpush.msra.mxu0 %v1354
    %1917 = vmatpush.msra.mxu0 %v1350
    %1918 = vmatpush.msra.mxu0 %v1346
    %1919 = vmatpush.msra.mxu0 %v1342
    %1920 = vmatpush.msra.mxu0 %v1338
    %1921 = vmatpush.msra.mxu0 %v1334
    %1922 = vmatpush.msra.mxu0 %v1330
    %1923 = vmatpush.msra.mxu0 %v1326
    %1924 = vmatpush.msra.mxu0 %v1322
    %1925 = vmatmul.f32.gmra.mxu0 %v1570
    %v1926 = vpop.f32.mrf.mxu0
    %v1927 = vadd.f32 %v1907, %v1926
    %1928 = vdwg.mxu0
    %1929 = vmatpush.msra.mxu0 %v1319
    %1930 = vmatpush.msra.mxu0 %v1315
    %1931 = vmatpush.msra.mxu0 %v1311
    %1932 = vmatpush.msra.mxu0 %v1307
    %1933 = vmatpush.msra.mxu0 %v1303
    %1934 = vmatpush.msra.mxu0 %v1299
    %1935 = vmatpush.msra.mxu0 %v1295
    %1936 = vmatpush.msra.mxu0 %v1291
    %1937 = vmatpush.msra.mxu0 %v1287
    %1938 = vmatpush.msra.mxu0 %v1283
    %1939 = vmatpush.msra.mxu0 %v1279
    %1940 = vmatpush.msra.mxu0 %v1275
    %1941 = vmatpush.msra.mxu0 %v1271
    %1942 = vmatpush.msra.mxu0 %v1267
    %1943 = vmatpush.msra.mxu0 %v1263
    %1944 = vmatpush.msra.mxu0 %v1259
    %1945 = vmatmul.f32.gmra.mxu0 %v1255
    %v1946 = vpop.f32.mrf.mxu0
    %v1947 = vadd.f32 %v1390, %v1946
    %1948 = vdwg.mxu0
    %1949 = vmatpush.msra.mxu0 %v1383
    %1950 = vmatpush.msra.mxu0 %v1379
    %1951 = vmatpush.msra.mxu0 %v1375
    %1952 = vmatpush.msra.mxu0 %v1371
    %1953 = vmatpush.msra.mxu0 %v1367
    %1954 = vmatpush.msra.mxu0 %v1363
    %1955 = vmatpush.msra.mxu0 %v1359
    %1956 = vmatpush.msra.mxu0 %v1355
    %1957 = vmatpush.msra.mxu0 %v1351
    %1958 = vmatpush.msra.mxu0 %v1347
    %1959 = vmatpush.msra.mxu0 %v1343
    %1960 = vmatpush.msra.mxu0 %v1339
    %1961 = vmatpush.msra.mxu0 %v1335
    %1962 = vmatpush.msra.mxu0 %v1331
    %1963 = vmatpush.msra.mxu0 %v1327
    %1964 = vmatpush.msra.mxu0 %v1323
    %1965 = vmatmul.f32.gmra.mxu0 %v1570
    %v1966 = vpop.f32.mrf.mxu0
    %v1967 = vadd.f32 %v1947, %v1966
    %1968 = vdwg.mxu0
    %1969 = vmatpush.msra.mxu0 %v1320
    %1970 = vmatpush.msra.mxu0 %v1316
    %1971 = vmatpush.msra.mxu0 %v1312
    %1972 = vmatpush.msra.mxu0 %v1308
    %1973 = vmatpush.msra.mxu0 %v1304
    %1974 = vmatpush.msra.mxu0 %v1300
    %1975 = vmatpush.msra.mxu0 %v1296
    %1976 = vmatpush.msra.mxu0 %v1292
    %1977 = vmatpush.msra.mxu0 %v1288
    %1978 = vmatpush.msra.mxu0 %v1284
    %1979 = vmatpush.msra.mxu0 %v1280
    %1980 = vmatpush.msra.mxu0 %v1276
    %1981 = vmatpush.msra.mxu0 %v1272
    %1982 = vmatpush.msra.mxu0 %v1268
    %1983 = vmatpush.msra.mxu0 %v1264
    %1984 = vmatpush.msra.mxu0 %v1260
    %1985 = vmatmul.f32.gmra.mxu0 %v1255
    %v1986 = vpop.f32.mrf.mxu0
    %v1987 = vadd.f32 %v1391, %v1986
    %1988 = vdwg.mxu0
    %1989 = vmatpush.msra.mxu0 %v1384
    %1990 = vmatpush.msra.mxu0 %v1380
    %1991 = vmatpush.msra.mxu0 %v1376
    %1992 = vmatpush.msra.mxu0 %v1372
    %1993 = vmatpush.msra.mxu0 %v1368
    %1994 = vmatpush.msra.mxu0 %v1364
    %1995 = vmatpush.msra.mxu0 %v1360
    %1996 = vmatpush.msra.mxu0 %v1356
    %1997 = vmatpush.msra.mxu0 %v1352
    %1998 = vmatpush.msra.mxu0 %v1348
    %1999 = vmatpush.msra.mxu0 %v1344
    %2000 = vmatpush.msra.mxu0 %v1340
    %2001 = vmatpush.msra.mxu0 %v1336
    %2002 = vmatpush.msra.mxu0 %v1332
    %2003 = vmatpush.msra.mxu0 %v1328
    %2004 = vmatpush.msra.mxu0 %v1324
    %2005 = vmatmul.f32.gmra.mxu0 %v1570
    %v2006 = vpop.f32.mrf.mxu0
    %v2007 = vadd.f32 %v1987, %v2006
    %2008 = vdwg.mxu0
    %v2009 = vmul.f32 %v1887, 0.5
    %v2010 = vtanh.pop %v2009
    %v2011 = vmul.f32 %v2010, 0.5
    %v2012 = vadd.f32 %v2011, 0.5
    %v2013 = vmul.f32 %v1927, 0.5
    %v2014 = vtanh.pop %v2013
    %v2015 = vmul.f32 %v2014, 0.5
    %v2016 = vadd.f32 %v2015, 0.5
    %v2017 = vmul.f32 %v2012, %v2007
    %v2018 = vadd.f32 %v1967, %v2017
    %v2019 = vtanh.pop %v2018
    %v2020 = vsub.f32 1.0, %v2016
    %v2021 = vmul.f32 %v2020, %v2019
    %v2022 = vmul.f32 %v2016, %v1570
    %v2023 = vadd.f32 %v2021, %v2022
    %v2024 = vld [vmem:[#allocation2 + $0x80] sm:$0xff]
    %v2025 = vld [vmem:[#allocation2 + $0x88] sm:$0xff]
    %v2026 = vld [vmem:[#allocation2 + $0x90] sm:$0xff]
    %v2027 = vld [vmem:[#allocation2 + $0x98] sm:$0xff]
    %2028 = vmatpush.msra.mxu0 %v458
    %2029 = vmatpush.msra.mxu0 %v454
    %2030 = vmatpush.msra.mxu0 %v450
    %2031 = vmatpush.msra.mxu0 %v446
    %2032 = vmatpush.msra.mxu0 %v442
    %2033 = vmatpush.msra.mxu0 %v438
    %2034 = vmatpush.msra.mxu0 %v434
    %2035 = vmatpush.msra.mxu0 %v430
    %2036 = vmatpush.msra.mxu0 %v426
    %2037 = vmatpush.msra.mxu0 %v422
    %2038 = vmatpush.msra.mxu0 %v418
    %2039 = vmatpush.msra.mxu0 %v414
    %2040 = vmatpush.msra.mxu0 %v410
    %2041 = vmatpush.msra.mxu0 %v406
    %2042 = vmatpush.msra.mxu0 %v402
    %2043 = vmatpush.msra.mxu0 %v398
    %2044 = vmatmul.f32.gmra.mxu0 %v1673
    %v2045 = vpop.f32.mrf.mxu0
    %v2046 = vadd.f32 0.0, %v2045
    %2047 = vdwg.mxu0
    %2048 = vmatpush.msra.mxu0 %v459
    %2049 = vmatpush.msra.mxu0 %v455
    %2050 = vmatpush.msra.mxu0 %v451
    %2051 = vmatpush.msra.mxu0 %v447
    %2052 = vmatpush.msra.mxu0 %v443
    %2053 = vmatpush.msra.mxu0 %v439
    %2054 = vmatpush.msra.mxu0 %v435
    %2055 = vmatpush.msra.mxu0 %v431
    %2056 = vmatpush.msra.mxu0 %v427
    %2057 = vmatpush.msra.mxu0 %v423
    %2058 = vmatpush.msra.mxu0 %v419
    %2059 = vmatpush.msra.mxu0 %v415
    %2060 = vmatpush.msra.mxu0 %v411
    %2061 = vmatpush.msra.mxu0 %v407
    %2062 = vmatpush.msra.mxu0 %v403
    %2063 = vmatpush.msra.mxu0 %v399
    %2064 = vmatmul.f32.gmra.mxu0 %v1673
    %v2065 = vpop.f32.mrf.mxu0
    %v2066 = vadd.f32 0.0, %v2065
    %2067 = vdwg.mxu0
    %2068 = vmatpush.msra.mxu0 %v460
    %2069 = vmatpush.msra.mxu0 %v456
    %2070 = vmatpush.msra.mxu0 %v452
    %2071 = vmatpush.msra.mxu0 %v448
    %2072 = vmatpush.msra.mxu0 %v444
    %2073 = vmatpush.msra.mxu0 %v440
    %2074 = vmatpush.msra.mxu0 %v436
    %2075 = vmatpush.msra.mxu0 %v432
    %2076 = vmatpush.msra.mxu0 %v428
    %2077 = vmatpush.msra.mxu0 %v424
    %2078 = vmatpush.msra.mxu0 %v420
    %2079 = vmatpush.msra.mxu0 %v416
    %2080 = vmatpush.msra.mxu0 %v412
    %2081 = vmatpush.msra.mxu0 %v408
    %2082 = vmatpush.msra.mxu0 %v404
    %2083 = vmatpush.msra.mxu0 %v400
    %2084 = vmatmul.f32.gmra.mxu0 %v1673
    %v2085 = vpop.f32.mrf.mxu0
    %v2086 = vadd.f32 0.0, %v2085
    %2087 = vdwg.mxu0
    %2088 = vmatpush.msra.mxu0 %v461
    %2089 = vmatpush.msra.mxu0 %v457
    %2090 = vmatpush.msra.mxu0 %v453
    %2091 = vmatpush.msra.mxu0 %v449
    %2092 = vmatpush.msra.mxu0 %v445
    %2093 = vmatpush.msra.mxu0 %v441
    %2094 = vmatpush.msra.mxu0 %v437
    %2095 = vmatpush.msra.mxu0 %v433
    %2096 = vmatpush.msra.mxu0 %v429
    %2097 = vmatpush.msra.mxu0 %v425
    %2098 = vmatpush.msra.mxu0 %v421
    %2099 = vmatpush.msra.mxu0 %v417
    %2100 = vmatpush.msra.mxu0 %v413
    %2101 = vmatpush.msra.mxu0 %v409
    %2102 = vmatpush.msra.mxu0 %v405
    %2103 = vmatpush.msra.mxu0 %v401
    %2104 = vmatmul.f32.gmra.mxu0 %v1673
    %v2105 = vpop.f32.mrf.mxu0
    %v2106 = vadd.f32 0.0, %v2105
    %2107 = vdwg.mxu0
    %v2108 = vadd.f32 %v2024, %v2046
    %v2109 = vadd.f32 %v2025, %v2066
    %v2110 = vadd.f32 %v2026, %v2086
    %v2111 = vadd.f32 %v2027, %v2106
    %v2112 = vmul.f32 %v2108, 0.5
    %v2113 = vtanh.pop %v2112
    %v2114 = vmul.f32 %v2113, 0.5
    %v2115 = vadd.f32 %v2114, 0.5
    %v2116 = vmul.f32 %v2109, 0.5
    %v2117 = vtanh.pop %v2116
    %v2118 = vmul.f32 %v2117, 0.5
    %v2119 = vadd.f32 %v2118, 0.5
    %v2120 = vmul.f32 %v2115, %v2111
    %v2121 = vadd.f32 %v2110, %v2120
    %v2122 = vtanh.pop %v2121
    %v2123 = vsub.f32 1.0, %v2119
    %v2124 = vmul.f32 %v2123, %v2122
    %v2125 = vmul.f32 %v2119, %v1673
    %v2126 = vadd.f32 %v2124, %v2125
    %2127 = vmatpush.msra.mxu0 %v724
    %2128 = vmatpush.msra.mxu0 %v720
    %2129 = vmatpush.msra.mxu0 %v716
    %2130 = vmatpush.msra.mxu0 %v712
    %2131 = vmatpush.msra.mxu0 %v708
    %2132 = vmatpush.msra.mxu0 %v704
    %2133 = vmatpush.msra.mxu0 %v700
    %2134 = vmatpush.msra.mxu0 %v696
    %2135 = vmatpush.msra.mxu0 %v692
    %2136 = vmatpush.msra.mxu0 %v688
    %2137 = vmatpush.msra.mxu0 %v684
    %2138 = vmatpush.msra.mxu0 %v680
    %2139 = vmatpush.msra.mxu0 %v676
    %2140 = vmatpush.msra.mxu0 %v672
    %2141 = vmatpush.msra.mxu0 %v668
    %2142 = vmatpush.msra.mxu0 %v664
    %2143 = vmatmul.f32.gmra.mxu0 %v1673
    %v2144 = vpop.f32.mrf.mxu0
    %v2145 = vadd.f32 %v795, %v2144
    %2146 = vdwg.mxu0
    %2147 = vmatpush.msra.mxu0 %v788
    %2148 = vmatpush.msra.mxu0 %v784
    %2149 = vmatpush.msra.mxu0 %v780
    %2150 = vmatpush.msra.mxu0 %v776
    %2151 = vmatpush.msra.mxu0 %v772
    %2152 = vmatpush.msra.mxu0 %v768
    %2153 = vmatpush.msra.mxu0 %v764
    %2154 = vmatpush.msra.mxu0 %v760
    %2155 = vmatpush.msra.mxu0 %v756
    %2156 = vmatpush.msra.mxu0 %v752
    %2157 = vmatpush.msra.mxu0 %v748
    %2158 = vmatpush.msra.mxu0 %v744
    %2159 = vmatpush.msra.mxu0 %v740
    %2160 = vmatpush.msra.mxu0 %v736
    %2161 = vmatpush.msra.mxu0 %v732
    %2162 = vmatpush.msra.mxu0 %v728
    %2163 = vmatmul.f32.gmra.mxu0 %v1848
    %v2164 = vpop.f32.mrf.mxu0
    %v2165 = vadd.f32 %v2145, %v2164
    %2166 = vdwg.mxu0
    %2167 = vmatpush.msra.mxu0 %v725
    %2168 = vmatpush.msra.mxu0 %v721
    %2169 = vmatpush.msra.mxu0 %v717
    %2170 = vmatpush.msra.mxu0 %v713
    %2171 = vmatpush.msra.mxu0 %v709
    %2172 = vmatpush.msra.mxu0 %v705
    %2173 = vmatpush.msra.mxu0 %v701
    %2174 = vmatpush.msra.mxu0 %v697
    %2175 = vmatpush.msra.mxu0 %v693
    %2176 = vmatpush.msra.mxu0 %v689
    %2177 = vmatpush.msra.mxu0 %v685
    %2178 = vmatpush.msra.mxu0 %v681
    %2179 = vmatpush.msra.mxu0 %v677
    %2180 = vmatpush.msra.mxu0 %v673
    %2181 = vmatpush.msra.mxu0 %v669
    %2182 = vmatpush.msra.mxu0 %v665
    %2183 = vmatmul.f32.gmra.mxu0 %v1673
    %v2184 = vpop.f32.mrf.mxu0
    %v2185 = vadd.f32 %v796, %v2184
    %2186 = vdwg.mxu0
    %2187 = vmatpush.msra.mxu0 %v789
    %2188 = vmatpush.msra.mxu0 %v785
    %2189 = vmatpush.msra.mxu0 %v781
    %2190 = vmatpush.msra.mxu0 %v777
    %2191 = vmatpush.msra.mxu0 %v773
    %2192 = vmatpush.msra.mxu0 %v769
    %2193 = vmatpush.msra.mxu0 %v765
    %2194 = vmatpush.msra.mxu0 %v761
    %2195 = vmatpush.msra.mxu0 %v757
    %2196 = vmatpush.msra.mxu0 %v753
    %2197 = vmatpush.msra.mxu0 %v749
    %2198 = vmatpush.msra.mxu0 %v745
    %2199 = vmatpush.msra.mxu0 %v741
    %2200 = vmatpush.msra.mxu0 %v737
    %2201 = vmatpush.msra.mxu0 %v733
    %2202 = vmatpush.msra.mxu0 %v729
    %2203 = vmatmul.f32.gmra.mxu0 %v1848
    %v2204 = vpop.f32.mrf.mxu0
    %v2205 = vadd.f32 %v2185, %v2204
    %2206 = vdwg.mxu0
    %2207 = vmatpush.msra.mxu0 %v726
    %2208 = vmatpush.msra.mxu0 %v722
    %2209 = vmatpush.msra.mxu0 %v718
    %2210 = vmatpush.msra.mxu0 %v714
    %2211 = vmatpush.msra.mxu0 %v710
    %2212 = vmatpush.msra.mxu0 %v706
    %2213 = vmatpush.msra.mxu0 %v702
    %2214 = vmatpush.msra.mxu0 %v698
    %2215 = vmatpush.msra.mxu0 %v694
    %2216 = vmatpush.msra.mxu0 %v690
    %2217 = vmatpush.msra.mxu0 %v686
    %2218 = vmatpush.msra.mxu0 %v682
    %2219 = vmatpush.msra.mxu0 %v678
    %2220 = vmatpush.msra.mxu0 %v674
    %2221 = vmatpush.msra.mxu0 %v670
    %2222 = vmatpush.msra.mxu0 %v666
    %2223 = vmatmul.f32.gmra.mxu0 %v1673
    %v2224 = vpop.f32.mrf.mxu0
    %v2225 = vadd.f32 %v797, %v2224
    %2226 = vdwg.mxu0
    %2227 = vmatpush.msra.mxu0 %v790
    %2228 = vmatpush.msra.mxu0 %v786
    %2229 = vmatpush.msra.mxu0 %v782
    %2230 = vmatpush.msra.mxu0 %v778
    %2231 = vmatpush.msra.mxu0 %v774
    %2232 = vmatpush.msra.mxu0 %v770
    %2233 = vmatpush.msra.mxu0 %v766
    %2234 = vmatpush.msra.mxu0 %v762
    %2235 = vmatpush.msra.mxu0 %v758
    %2236 = vmatpush.msra.mxu0 %v754
    %2237 = vmatpush.msra.mxu0 %v750
    %2238 = vmatpush.msra.mxu0 %v746
    %2239 = vmatpush.msra.mxu0 %v742
    %2240 = vmatpush.msra.mxu0 %v738
    %2241 = vmatpush.msra.mxu0 %v734
    %2242 = vmatpush.msra.mxu0 %v730
    %2243 = vmatmul.f32.gmra.mxu0 %v1848
    %v2244 = vpop.f32.mrf.mxu0
    %v2245 = vadd.f32 %v2225, %v2244
    %2246 = vdwg.mxu0
    %2247 = vmatpush.msra.mxu0 %v727
    %2248 = vmatpush.msra.mxu0 %v723
    %2249 = vmatpush.msra.mxu0 %v719
    %2250 = vmatpush.msra.mxu0 %v715
    %2251 = vmatpush.msra.mxu0 %v711
    %2252 = vmatpush.msra.mxu0 %v707
    %2253 = vmatpush.msra.mxu0 %v703
    %2254 = vmatpush.msra.mxu0 %v699
    %2255 = vmatpush.msra.mxu0 %v695
    %2256 = vmatpush.msra.mxu0 %v691
    %2257 = vmatpush.msra.mxu0 %v687
    %2258 = vmatpush.msra.mxu0 %v683
    %2259 = vmatpush.msra.mxu0 %v679
    %2260 = vmatpush.msra.mxu0 %v675
    %2261 = vmatpush.msra.mxu0 %v671
    %2262 = vmatpush.msra.mxu0 %v667
    %2263 = vmatmul.f32.gmra.mxu0 %v1673
    %v2264 = vpop.f32.mrf.mxu0
    %v2265 = vadd.f32 %v798, %v2264
    %2266 = vdwg.mxu0
    %2267 = vmatpush.msra.mxu0 %v791
    %2268 = vmatpush.msra.mxu0 %v787
    %2269 = vmatpush.msra.mxu0 %v783
    %2270 = vmatpush.msra.mxu0 %v779
    %2271 = vmatpush.msra.mxu0 %v775
    %2272 = vmatpush.msra.mxu0 %v771
    %2273 = vmatpush.msra.mxu0 %v767
    %2274 = vmatpush.msra.mxu0 %v763
    %2275 = vmatpush.msra.mxu0 %v759
    %2276 = vmatpush.msra.mxu0 %v755
    %2277 = vmatpush.msra.mxu0 %v751
    %2278 = vmatpush.msra.mxu0 %v747
    %2279 = vmatpush.msra.mxu0 %v743
    %2280 = vmatpush.msra.mxu0 %v739
    %2281 = vmatpush.msra.mxu0 %v735
    %2282 = vmatpush.msra.mxu0 %v731
    %2283 = vmatmul.f32.gmra.mxu0 %v1848
    %v2284 = vpop.f32.mrf.mxu0
    %v2285 = vadd.f32 %v2265, %v2284
    %2286 = vdwg.mxu0
    %v2287 = vmul.f32 %v2165, 0.5
    %v2288 = vtanh.pop %v2287
    %v2289 = vmul.f32 %v2288, 0.5
    %v2290 = vadd.f32 %v2289, 0.5
    %v2291 = vmul.f32 %v2205, 0.5
    %v2292 = vtanh.pop %v2291
    %v2293 = vmul.f32 %v2292, 0.5
    %v2294 = vadd.f32 %v2293, 0.5
    %v2295 = vmul.f32 %v2290, %v2285
    %v2296 = vadd.f32 %v2245, %v2295
    %v2297 = vtanh.pop %v2296
    %v2298 = vsub.f32 1.0, %v2294
    %v2299 = vmul.f32 %v2298, %v2297
    %v2300 = vmul.f32 %v2294, %v1848
    %v2301 = vadd.f32 %v2299, %v2300
    %2302 = vmatpush.msra.mxu0 %v1317
    %2303 = vmatpush.msra.mxu0 %v1313
    %2304 = vmatpush.msra.mxu0 %v1309
    %2305 = vmatpush.msra.mxu0 %v1305
    %2306 = vmatpush.msra.mxu0 %v1301
    %2307 = vmatpush.msra.mxu0 %v1297
    %2308 = vmatpush.msra.mxu0 %v1293
    %2309 = vmatpush.msra.mxu0 %v1289
    %2310 = vmatpush.msra.mxu0 %v1285
    %2311 = vmatpush.msra.mxu0 %v1281
    %2312 = vmatpush.msra.mxu0 %v1277
    %2313 = vmatpush.msra.mxu0 %v1273
    %2314 = vmatpush.msra.mxu0 %v1269
    %2315 = vmatpush.msra.mxu0 %v1265
    %2316 = vmatpush.msra.mxu0 %v1261
    %2317 = vmatpush.msra.mxu0 %v1257
    %2318 = vmatmul.f32.gmra.mxu0 %v1848
    %v2319 = vpop.f32.mrf.mxu0
    %v2320 = vadd.f32 %v1388, %v2319
    %2321 = vdwg.mxu0
    %2322 = vmatpush.msra.mxu0 %v1381
    %2323 = vmatpush.msra.mxu0 %v1377
    %2324 = vmatpush.msra.mxu0 %v1373
    %2325 = vmatpush.msra.mxu0 %v1369
    %2326 = vmatpush.msra.mxu0 %v1365
    %2327 = vmatpush.msra.mxu0 %v1361
    %2328 = vmatpush.msra.mxu0 %v1357
    %2329 = vmatpush.msra.mxu0 %v1353
    %2330 = vmatpush.msra.mxu0 %v1349
    %2331 = vmatpush.msra.mxu0 %v1345
    %2332 = vmatpush.msra.mxu0 %v1341
    %2333 = vmatpush.msra.mxu0 %v1337
    %2334 = vmatpush.msra.mxu0 %v1333
    %2335 = vmatpush.msra.mxu0 %v1329
    %2336 = vmatpush.msra.mxu0 %v1325
    %2337 = vmatpush.msra.mxu0 %v1321
    %2338 = vmatmul.f32.gmra.mxu0 %v2023
    %v2339 = vpop.f32.mrf.mxu0
    %v2340 = vadd.f32 %v2320, %v2339
    %2341 = vdwg.mxu0
    %2342 = vmatpush.msra.mxu0 %v1318
    %2343 = vmatpush.msra.mxu0 %v1314
    %2344 = vmatpush.msra.mxu0 %v1310
    %2345 = vmatpush.msra.mxu0 %v1306
    %2346 = vmatpush.msra.mxu0 %v1302
    %2347 = vmatpush.msra.mxu0 %v1298
    %2348 = vmatpush.msra.mxu0 %v1294
    %2349 = vmatpush.msra.mxu0 %v1290
    %2350 = vmatpush.msra.mxu0 %v1286
    %2351 = vmatpush.msra.mxu0 %v1282
    %2352 = vmatpush.msra.mxu0 %v1278
    %2353 = vmatpush.msra.mxu0 %v1274
    %2354 = vmatpush.msra.mxu0 %v1270
    %2355 = vmatpush.msra.mxu0 %v1266
    %2356 = vmatpush.msra.mxu0 %v1262
    %2357 = vmatpush.msra.mxu0 %v1258
    %2358 = vmatmul.f32.gmra.mxu0 %v1848
    %v2359 = vpop.f32.mrf.mxu0
    %v2360 = vadd.f32 %v1389, %v2359
    %2361 = vdwg.mxu0
    %2362 = vmatpush.msra.mxu0 %v1382
    %2363 = vmatpush.msra.mxu0 %v1378
    %2364 = vmatpush.msra.mxu0 %v1374
    %2365 = vmatpush.msra.mxu0 %v1370
    %2366 = vmatpush.msra.mxu0 %v1366
    %2367 = vmatpush.msra.mxu0 %v1362
    %2368 = vmatpush.msra.mxu0 %v1358
    %2369 = vmatpush.msra.mxu0 %v1354
    %2370 = vmatpush.msra.mxu0 %v1350
    %2371 = vmatpush.msra.mxu0 %v1346
    %2372 = vmatpush.msra.mxu0 %v1342
    %2373 = vmatpush.msra.mxu0 %v1338
    %2374 = vmatpush.msra.mxu0 %v1334
    %2375 = vmatpush.msra.mxu0 %v1330
    %2376 = vmatpush.msra.mxu0 %v1326
    %2377 = vmatpush.msra.mxu0 %v1322
    %2378 = vmatmul.f32.gmra.mxu0 %v2023
    %v2379 = vpop.f32.mrf.mxu0
    %v2380 = vadd.f32 %v2360, %v2379
    %2381 = vdwg.mxu0
    %2382 = vmatpush.msra.mxu0 %v1319
    %2383 = vmatpush.msra.mxu0 %v1315
    %2384 = vmatpush.msra.mxu0 %v1311
    %2385 = vmatpush.msra.mxu0 %v1307
    %2386 = vmatpush.msra.mxu0 %v1303
    %2387 = vmatpush.msra.mxu0 %v1299
    %2388 = vmatpush.msra.mxu0 %v1295
    %2389 = vmatpush.msra.mxu0 %v1291
    %2390 = vmatpush.msra.mxu0 %v1287
    %2391 = vmatpush.msra.mxu0 %v1283
    %2392 = vmatpush.msra.mxu0 %v1279
    %2393 = vmatpush.msra.mxu0 %v1275
    %2394 = vmatpush.msra.mxu0 %v1271
    %2395 = vmatpush.msra.mxu0 %v1267
    %2396 = vmatpush.msra.mxu0 %v1263
    %2397 = vmatpush.msra.mxu0 %v1259
    %2398 = vmatmul.f32.gmra.mxu0 %v1848
    %v2399 = vpop.f32.mrf.mxu0
    %v2400 = vadd.f32 %v1390, %v2399
    %2401 = vdwg.mxu0
    %2402 = vmatpush.msra.mxu0 %v1383
    %2403 = vmatpush.msra.mxu0 %v1379
    %2404 = vmatpush.msra.mxu0 %v1375
    %2405 = vmatpush.msra.mxu0 %v1371
    %2406 = vmatpush.msra.mxu0 %v1367
    %2407 = vmatpush.msra.mxu0 %v1363
    %2408 = vmatpush.msra.mxu0 %v1359
    %2409 = vmatpush.msra.mxu0 %v1355
    %2410 = vmatpush.msra.mxu0 %v1351
    %2411 = vmatpush.msra.mxu0 %v1347
    %2412 = vmatpush.msra.mxu0 %v1343
    %2413 = vmatpush.msra.mxu0 %v1339
    %2414 = vmatpush.msra.mxu0 %v1335
    %2415 = vmatpush.msra.mxu0 %v1331
    %2416 = vmatpush.msra.mxu0 %v1327
    %2417 = vmatpush.msra.mxu0 %v1323
    %2418 = vmatmul.f32.gmra.mxu0 %v2023
    %v2419 = vpop.f32.mrf.mxu0
    %v2420 = vadd.f32 %v2400, %v2419
    %2421 = vdwg.mxu0
    %2422 = vmatpush.msra.mxu0 %v1320
    %2423 = vmatpush.msra.mxu0 %v1316
    %2424 = vmatpush.msra.mxu0 %v1312
    %2425 = vmatpush.msra.mxu0 %v1308
    %2426 = vmatpush.msra.mxu0 %v1304
    %2427 = vmatpush.msra.mxu0 %v1300
    %2428 = vmatpush.msra.mxu0 %v1296
    %2429 = vmatpush.msra.mxu0 %v1292
    %2430 = vmatpush.msra.mxu0 %v1288
    %2431 = vmatpush.msra.mxu0 %v1284
    %2432 = vmatpush.msra.mxu0 %v1280
    %2433 = vmatpush.msra.mxu0 %v1276
    %2434 = vmatpush.msra.mxu0 %v1272
    %2435 = vmatpush.msra.mxu0 %v1268
    %2436 = vmatpush.msra.mxu0 %v1264
    %2437 = vmatpush.msra.mxu0 %v1260
    %2438 = vmatmul.f32.gmra.mxu0 %v1848
    %v2439 = vpop.f32.mrf.mxu0
    %v2440 = vadd.f32 %v1391, %v2439
    %2441 = vdwg.mxu0
    %2442 = vmatpush.msra.mxu0 %v1384
    %2443 = vmatpush.msra.mxu0 %v1380
    %2444 = vmatpush.msra.mxu0 %v1376
    %2445 = vmatpush.msra.mxu0 %v1372
    %2446 = vmatpush.msra.mxu0 %v1368
    %2447 = vmatpush.msra.mxu0 %v1364
    %2448 = vmatpush.msra.mxu0 %v1360
    %2449 = vmatpush.msra.mxu0 %v1356
    %2450 = vmatpush.msra.mxu0 %v1352
    %2451 = vmatpush.msra.mxu0 %v1348
    %2452 = vmatpush.msra.mxu0 %v1344
    %2453 = vmatpush.msra.mxu0 %v1340
    %2454 = vmatpush.msra.mxu0 %v1336
    %2455 = vmatpush.msra.mxu0 %v1332
    %2456 = vmatpush.msra.mxu0 %v1328
    %2457 = vmatpush.msra.mxu0 %v1324
    %2458 = vmatmul.f32.gmra.mxu0 %v2023
    %v2459 = vpop.f32.mrf.mxu0
    %v2460 = vadd.f32 %v2440, %v2459
    %2461 = vdwg.mxu0
    %v2462 = vmul.f32 %v2340, 0.5
    %v2463 = vtanh.pop %v2462
    %v2464 = vmul.f32 %v2463, 0.5
    %v2465 = vadd.f32 %v2464, 0.5
    %v2466 = vmul.f32 %v2380, 0.5
    %v2467 = vtanh.pop %v2466
    %v2468 = vmul.f32 %v2467, 0.5
    %v2469 = vadd.f32 %v2468, 0.5
    %v2470 = vmul.f32 %v2465, %v2460
    %v2471 = vadd.f32 %v2420, %v2470
    %v2472 = vtanh.pop %v2471
    %v2473 = vsub.f32 1.0, %v2469
    %v2474 = vmul.f32 %v2473, %v2472
    %v2475 = vmul.f32 %v2469, %v2023
    %v2476 = vadd.f32 %v2474, %v2475
    %v2477 = vld [vmem:[#allocation2 + $0xa0] sm:$0xff]
    %v2478 = vld [vmem:[#allocation2 + $0xa8] sm:$0xff]
    %v2479 = vld [vmem:[#allocation2 + $0xb0] sm:$0xff]
    %v2480 = vld [vmem:[#allocation2 + $0xb8] sm:$0xff]
    %2481 = vmatpush.msra.mxu0 %v458
    %2482 = vmatpush.msra.mxu0 %v454
    %2483 = vmatpush.msra.mxu0 %v450
    %2484 = vmatpush.msra.mxu0 %v446
    %2485 = vmatpush.msra.mxu0 %v442
    %2486 = vmatpush.msra.mxu0 %v438
    %2487 = vmatpush.msra.mxu0 %v434
    %2488 = vmatpush.msra.mxu0 %v430
    %2489 = vmatpush.msra.mxu0 %v426
    %2490 = vmatpush.msra.mxu0 %v422
    %2491 = vmatpush.msra.mxu0 %v418
    %2492 = vmatpush.msra.mxu0 %v414
    %2493 = vmatpush.msra.mxu0 %v410
    %2494 = vmatpush.msra.mxu0 %v406
    %2495 = vmatpush.msra.mxu0 %v402
    %2496 = vmatpush.msra.mxu0 %v398
    %2497 = vmatmul.f32.gmra.mxu0 %v2126
    %v2498 = vpop.f32.mrf.mxu0
    %v2499 = vadd.f32 0.0, %v2498
    %2500 = vdwg.mxu0
    %2501 = vmatpush.msra.mxu0 %v459
    %2502 = vmatpush.msra.mxu0 %v455
    %2503 = vmatpush.msra.mxu0 %v451
    %2504 = vmatpush.msra.mxu0 %v447
    %2505 = vmatpush.msra.mxu0 %v443
    %2506 = vmatpush.msra.mxu0 %v439
    %2507 = vmatpush.msra.mxu0 %v435
    %2508 = vmatpush.msra.mxu0 %v431
    %2509 = vmatpush.msra.mxu0 %v427
    %2510 = vmatpush.msra.mxu0 %v423
    %2511 = vmatpush.msra.mxu0 %v419
    %2512 = vmatpush.msra.mxu0 %v415
    %2513 = vmatpush.msra.mxu0 %v411
    %2514 = vmatpush.msra.mxu0 %v407
    %2515 = vmatpush.msra.mxu0 %v403
    %2516 = vmatpush.msra.mxu0 %v399
    %2517 = vmatmul.f32.gmra.mxu0 %v2126
    %v2518 = vpop.f32.mrf.mxu0
    %v2519 = vadd.f32 0.0, %v2518
    %2520 = vdwg.mxu0
    %2521 = vmatpush.msra.mxu0 %v460
    %2522 = vmatpush.msra.mxu0 %v456
    %2523 = vmatpush.msra.mxu0 %v452
    %2524 = vmatpush.msra.mxu0 %v448
    %2525 = vmatpush.msra.mxu0 %v444
    %2526 = vmatpush.msra.mxu0 %v440
    %2527 = vmatpush.msra.mxu0 %v436
    %2528 = vmatpush.msra.mxu0 %v432
    %2529 = vmatpush.msra.mxu0 %v428
    %2530 = vmatpush.msra.mxu0 %v424
    %2531 = vmatpush.msra.mxu0 %v420
    %2532 = vmatpush.msra.mxu0 %v416
    %2533 = vmatpush.msra.mxu0 %v412
    %2534 = vmatpush.msra.mxu0 %v408
    %2535 = vmatpush.msra.mxu0 %v404
    %2536 = vmatpush.msra.mxu0 %v400
    %2537 = vmatmul.f32.gmra.mxu0 %v2126
    %v2538 = vpop.f32.mrf.mxu0
    %v2539 = vadd.f32 0.0, %v2538
    %2540 = vdwg.mxu0
    %2541 = vmatpush.msra.mxu0 %v461
    %2542 = vmatpush.msra.mxu0 %v457
    %2543 = vmatpush.msra.mxu0 %v453
    %2544 = vmatpush.msra.mxu0 %v449
    %2545 = vmatpush.msra.mxu0 %v445
    %2546 = vmatpush.msra.mxu0 %v441
    %2547 = vmatpush.msra.mxu0 %v437
    %2548 = vmatpush.msra.mxu0 %v433
    %2549 = vmatpush.msra.mxu0 %v429
    %2550 = vmatpush.msra.mxu0 %v425
    %2551 = vmatpush.msra.mxu0 %v421
    %2552 = vmatpush.msra.mxu0 %v417
    %2553 = vmatpush.msra.mxu0 %v413
    %2554 = vmatpush.msra.mxu0 %v409
    %2555 = vmatpush.msra.mxu0 %v405
    %2556 = vmatpush.msra.mxu0 %v401
    %2557 = vmatmul.f32.gmra.mxu0 %v2126
    %v2558 = vpop.f32.mrf.mxu0
    %v2559 = vadd.f32 0.0, %v2558
    %2560 = vdwg.mxu0
    %v2561 = vadd.f32 %v2477, %v2499
    %v2562 = vadd.f32 %v2478, %v2519
    %v2563 = vadd.f32 %v2479, %v2539
    %v2564 = vadd.f32 %v2480, %v2559
    %v2565 = vmul.f32 %v2561, 0.5
    %v2566 = vtanh.pop %v2565
    %v2567 = vmul.f32 %v2566, 0.5
    %v2568 = vadd.f32 %v2567, 0.5
    %v2569 = vmul.f32 %v2562, 0.5
    %v2570 = vtanh.pop %v2569
    %v2571 = vmul.f32 %v2570, 0.5
    %v2572 = vadd.f32 %v2571, 0.5
    %v2573 = vmul.f32 %v2568, %v2564
    %v2574 = vadd.f32 %v2563, %v2573
    %v2575 = vtanh.pop %v2574
    %v2576 = vsub.f32 1.0, %v2572
    %v2577 = vmul.f32 %v2576, %v2575
    %v2578 = vmul.f32 %v2572, %v2126
    %v2579 = vadd.f32 %v2577, %v2578
    %2580 = vmatpush.msra.mxu0 %v724
    %2581 = vmatpush.msra.mxu0 %v720
    %2582 = vmatpush.msra.mxu0 %v716
    %2583 = vmatpush.msra.mxu0 %v712
    %2584 = vmatpush.msra.mxu0 %v708
    %2585 = vmatpush.msra.mxu0 %v704
    %2586 = vmatpush.msra.mxu0 %v700
    %2587 = vmatpush.msra.mxu0 %v696
    %2588 = vmatpush.msra.mxu0 %v692
    %2589 = vmatpush.msra.mxu0 %v688
    %2590 = vmatpush.msra.mxu0 %v684
    %2591 = vmatpush.msra.mxu0 %v680
    %2592 = vmatpush.msra.mxu0 %v676
    %2593 = vmatpush.msra.mxu0 %v672
    %2594 = vmatpush.msra.mxu0 %v668
    %2595 = vmatpush.msra.mxu0 %v664
    %2596 = vmatmul.f32.gmra.mxu0 %v2126
    %v2597 = vpop.f32.mrf.mxu0
    %v2598 = vadd.f32 %v795, %v2597
    %2599 = vdwg.mxu0
    %2600 = vmatpush.msra.mxu0 %v788
    %2601 = vmatpush.msra.mxu0 %v784
    %2602 = vmatpush.msra.mxu0 %v780
    %2603 = vmatpush.msra.mxu0 %v776
    %2604 = vmatpush.msra.mxu0 %v772
    %2605 = vmatpush.msra.mxu0 %v768
    %2606 = vmatpush.msra.mxu0 %v764
    %2607 = vmatpush.msra.mxu0 %v760
    %2608 = vmatpush.msra.mxu0 %v756
    %2609 = vmatpush.msra.mxu0 %v752
    %2610 = vmatpush.msra.mxu0 %v748
    %2611 = vmatpush.msra.mxu0 %v744
    %2612 = vmatpush.msra.mxu0 %v740
    %2613 = vmatpush.msra.mxu0 %v736
    %2614 = vmatpush.msra.mxu0 %v732
    %2615 = vmatpush.msra.mxu0 %v728
    %2616 = vmatmul.f32.gmra.mxu0 %v2301
    %v2617 = vpop.f32.mrf.mxu0
    %v2618 = vadd.f32 %v2598, %v2617
    %2619 = vdwg.mxu0
    %2620 = vmatpush.msra.mxu0 %v725
    %2621 = vmatpush.msra.mxu0 %v721
    %2622 = vmatpush.msra.mxu0 %v717
    %2623 = vmatpush.msra.mxu0 %v713
    %2624 = vmatpush.msra.mxu0 %v709
    %2625 = vmatpush.msra.mxu0 %v705
    %2626 = vmatpush.msra.mxu0 %v701
    %2627 = vmatpush.msra.mxu0 %v697
    %2628 = vmatpush.msra.mxu0 %v693
    %2629 = vmatpush.msra.mxu0 %v689
    %2630 = vmatpush.msra.mxu0 %v685
    %2631 = vmatpush.msra.mxu0 %v681
    %2632 = vmatpush.msra.mxu0 %v677
    %2633 = vmatpush.msra.mxu0 %v673
    %2634 = vmatpush.msra.mxu0 %v669
    %2635 = vmatpush.msra.mxu0 %v665
    %2636 = vmatmul.f32.gmra.mxu0 %v2126
    %v2637 = vpop.f32.mrf.mxu0
    %v2638 = vadd.f32 %v796, %v2637
    %2639 = vdwg.mxu0
    %2640 = vmatpush.msra.mxu0 %v789
    %2641 = vmatpush.msra.mxu0 %v785
    %2642 = vmatpush.msra.mxu0 %v781
    %2643 = vmatpush.msra.mxu0 %v777
    %2644 = vmatpush.msra.mxu0 %v773
    %2645 = vmatpush.msra.mxu0 %v769
    %2646 = vmatpush.msra.mxu0 %v765
    %2647 = vmatpush.msra.mxu0 %v761
    %2648 = vmatpush.msra.mxu0 %v757
    %2649 = vmatpush.msra.mxu0 %v753
    %2650 = vmatpush.msra.mxu0 %v749
    %2651 = vmatpush.msra.mxu0 %v745
    %2652 = vmatpush.msra.mxu0 %v741
    %2653 = vmatpush.msra.mxu0 %v737
    %2654 = vmatpush.msra.mxu0 %v733
    %2655 = vmatpush.msra.mxu0 %v729
    %2656 = vmatmul.f32.gmra.mxu0 %v2301
    %v2657 = vpop.f32.mrf.mxu0
    %v2658 = vadd.f32 %v2638, %v2657
    %2659 = vdwg.mxu0
    %2660 = vmatpush.msra.mxu0 %v726
    %2661 = vmatpush.msra.mxu0 %v722
    %2662 = vmatpush.msra.mxu0 %v718
    %2663 = vmatpush.msra.mxu0 %v714
    %2664 = vmatpush.msra.mxu0 %v710
    %2665 = vmatpush.msra.mxu0 %v706
    %2666 = vmatpush.msra.mxu0 %v702
    %2667 = vmatpush.msra.mxu0 %v698
    %2668 = vmatpush.msra.mxu0 %v694
    %2669 = vmatpush.msra.mxu0 %v690
    %2670 = vmatpush.msra.mxu0 %v686
    %2671 = vmatpush.msra.mxu0 %v682
    %2672 = vmatpush.msra.mxu0 %v678
    %2673 = vmatpush.msra.mxu0 %v674
    %2674 = vmatpush.msra.mxu0 %v670
    %2675 = vmatpush.msra.mxu0 %v666
    %2676 = vmatmul.f32.gmra.mxu0 %v2126
    %v2677 = vpop.f32.mrf.mxu0
    %v2678 = vadd.f32 %v797, %v2677
    %2679 = vdwg.mxu0
    %2680 = vmatpush.msra.mxu0 %v790
    %2681 = vmatpush.msra.mxu0 %v786
    %2682 = vmatpush.msra.mxu0 %v782
    %2683 = vmatpush.msra.mxu0 %v778
    %2684 = vmatpush.msra.mxu0 %v774
    %2685 = vmatpush.msra.mxu0 %v770
    %2686 = vmatpush.msra.mxu0 %v766
    %2687 = vmatpush.msra.mxu0 %v762
    %2688 = vmatpush.msra.mxu0 %v758
    %2689 = vmatpush.msra.mxu0 %v754
    %2690 = vmatpush.msra.mxu0 %v750
    %2691 = vmatpush.msra.mxu0 %v746
    %2692 = vmatpush.msra.mxu0 %v742
    %2693 = vmatpush.msra.mxu0 %v738
    %2694 = vmatpush.msra.mxu0 %v734
    %2695 = vmatpush.msra.mxu0 %v730
    %2696 = vmatmul.f32.gmra.mxu0 %v2301
    %v2697 = vpop.f32.mrf.mxu0
    %v2698 = vadd.f32 %v2678, %v2697
    %2699 = vdwg.mxu0
    %2700 = vmatpush.msra.mxu0 %v727
    %2701 = vmatpush.msra.mxu0 %v723
    %2702 = vmatpush.msra.mxu0 %v719
    %2703 = vmatpush.msra.mxu0 %v715
    %2704 = vmatpush.msra.mxu0 %v711
    %2705 = vmatpush.msra.mxu0 %v707
    %2706 = vmatpush.msra.mxu0 %v703
    %2707 = vmatpush.msra.mxu0 %v699
    %2708 = vmatpush.msra.mxu0 %v695
    %2709 = vmatpush.msra.mxu0 %v691
    %2710 = vmatpush.msra.mxu0 %v687
    %2711 = vmatpush.msra.mxu0 %v683
    %2712 = vmatpush.msra.mxu0 %v679
    %2713 = vmatpush.msra.mxu0 %v675
    %2714 = vmatpush.msra.mxu0 %v671
    %2715 = vmatpush.msra.mxu0 %v667
    %2716 = vmatmul.f32.gmra.mxu0 %v2126
    %v2717 = vpop.f32.mrf.mxu0
    %v2718 = vadd.f32 %v798, %v2717
    %2719 = vdwg.mxu0
    %2720 = vmatpush.msra.mxu0 %v791
    %2721 = vmatpush.msra.mxu0 %v787
    %2722 = vmatpush.msra.mxu0 %v783
    %2723 = vmatpush.msra.mxu0 %v779
    %2724 = vmatpush.msra.mxu0 %v775
    %2725 = vmatpush.msra.mxu0 %v771
    %2726 = vmatpush.msra.mxu0 %v767
    %2727 = vmatpush.msra.mxu0 %v763
    %2728 = vmatpush.msra.mxu0 %v759
    %2729 = vmatpush.msra.mxu0 %v755
    %2730 = vmatpush.msra.mxu0 %v751
    %2731 = vmatpush.msra.mxu0 %v747
    %2732 = vmatpush.msra.mxu0 %v743
    %2733 = vmatpush.msra.mxu0 %v739
    %2734 = vmatpush.msra.mxu0 %v735
    %2735 = vmatpush.msra.mxu0 %v731
    %2736 = vmatmul.f32.gmra.mxu0 %v2301
    %v2737 = vpop.f32.mrf.mxu0
    %v2738 = vadd.f32 %v2718, %v2737
    %2739 = vdwg.mxu0
    %v2740 = vmul.f32 %v2618, 0.5
    %v2741 = vtanh.pop %v2740
    %v2742 = vmul.f32 %v2741, 0.5
    %v2743 = vadd.f32 %v2742, 0.5
    %v2744 = vmul.f32 %v2658, 0.5
    %v2745 = vtanh.pop %v2744
    %v2746 = vmul.f32 %v2745, 0.5
    %v2747 = vadd.f32 %v2746, 0.5
    %v2748 = vmul.f32 %v2743, %v2738
    %v2749 = vadd.f32 %v2698, %v2748
    %v2750 = vtanh.pop %v2749
    %v2751 = vsub.f32 1.0, %v2747
    %v2752 = vmul.f32 %v2751, %v2750
    %v2753 = vmul.f32 %v2747, %v2301
    %v2754 = vadd.f32 %v2752, %v2753
    %2755 = vmatpush.msra.mxu0 %v1317
    %2756 = vmatpush.msra.mxu0 %v1313
    %2757 = vmatpush.msra.mxu0 %v1309
    %2758 = vmatpush.msra.mxu0 %v1305
    %2759 = vmatpush.msra.mxu0 %v1301
    %2760 = vmatpush.msra.mxu0 %v1297
    %2761 = vmatpush.msra.mxu0 %v1293
    %2762 = vmatpush.msra.mxu0 %v1289
    %2763 = vmatpush.msra.mxu0 %v1285
    %2764 = vmatpush.msra.mxu0 %v1281
    %2765 = vmatpush.msra.mxu0 %v1277
    %2766 = vmatpush.msra.mxu0 %v1273
    %2767 = vmatpush.msra.mxu0 %v1269
    %2768 = vmatpush.msra.mxu0 %v1265
    %2769 = vmatpush.msra.mxu0 %v1261
    %2770 = vmatpush.msra.mxu0 %v1257
    %2771 = vmatmul.f32.gmra.mxu0 %v2301
    %v2772 = vpop.f32.mrf.mxu0
    %v2773 = vadd.f32 %v1388, %v2772
    %2774 = vdwg.mxu0
    %2775 = vmatpush.msra.mxu0 %v1381
    %2776 = vmatpush.msra.mxu0 %v1377
    %2777 = vmatpush.msra.mxu0 %v1373
    %2778 = vmatpush.msra.mxu0 %v1369
    %2779 = vmatpush.msra.mxu0 %v1365
    %2780 = vmatpush.msra.mxu0 %v1361
    %2781 = vmatpush.msra.mxu0 %v1357
    %2782 = vmatpush.msra.mxu0 %v1353
    %2783 = vmatpush.msra.mxu0 %v1349
    %2784 = vmatpush.msra.mxu0 %v1345
    %2785 = vmatpush.msra.mxu0 %v1341
    %2786 = vmatpush.msra.mxu0 %v1337
    %2787 = vmatpush.msra.mxu0 %v1333
    %2788 = vmatpush.msra.mxu0 %v1329
    %2789 = vmatpush.msra.mxu0 %v1325
    %2790 = vmatpush.msra.mxu0 %v1321
    %2791 = vmatmul.f32.gmra.mxu0 %v2476
    %v2792 = vpop.f32.mrf.mxu0
    %v2793 = vadd.f32 %v2773, %v2792
    %2794 = vdwg.mxu0
    %2795 = vmatpush.msra.mxu0 %v1318
    %2796 = vmatpush.msra.mxu0 %v1314
    %2797 = vmatpush.msra.mxu0 %v1310
    %2798 = vmatpush.msra.mxu0 %v1306
    %2799 = vmatpush.msra.mxu0 %v1302
    %2800 = vmatpush.msra.mxu0 %v1298
    %2801 = vmatpush.msra.mxu0 %v1294
    %2802 = vmatpush.msra.mxu0 %v1290
    %2803 = vmatpush.msra.mxu0 %v1286
    %2804 = vmatpush.msra.mxu0 %v1282
    %2805 = vmatpush.msra.mxu0 %v1278
    %2806 = vmatpush.msra.mxu0 %v1274
    %2807 = vmatpush.msra.mxu0 %v1270
    %2808 = vmatpush.msra.mxu0 %v1266
    %2809 = vmatpush.msra.mxu0 %v1262
    %2810 = vmatpush.msra.mxu0 %v1258
    %2811 = vmatmul.f32.gmra.mxu0 %v2301
    %v2812 = vpop.f32.mrf.mxu0
    %v2813 = vadd.f32 %v1389, %v2812
    %2814 = vdwg.mxu0
    %2815 = vmatpush.msra.mxu0 %v1382
    %2816 = vmatpush.msra.mxu0 %v1378
    %2817 = vmatpush.msra.mxu0 %v1374
    %2818 = vmatpush.msra.mxu0 %v1370
    %2819 = vmatpush.msra.mxu0 %v1366
    %2820 = vmatpush.msra.mxu0 %v1362
    %2821 = vmatpush.msra.mxu0 %v1358
    %2822 = vmatpush.msra.mxu0 %v1354
    %2823 = vmatpush.msra.mxu0 %v1350
    %2824 = vmatpush.msra.mxu0 %v1346
    %2825 = vmatpush.msra.mxu0 %v1342
    %2826 = vmatpush.msra.mxu0 %v1338
    %2827 = vmatpush.msra.mxu0 %v1334
    %2828 = vmatpush.msra.mxu0 %v1330
    %2829 = vmatpush.msra.mxu0 %v1326
    %2830 = vmatpush.msra.mxu0 %v1322
    %2831 = vmatmul.f32.gmra.mxu0 %v2476
    %v2832 = vpop.f32.mrf.mxu0
    %v2833 = vadd.f32 %v2813, %v2832
    %2834 = vdwg.mxu0
    %2835 = vmatpush.msra.mxu0 %v1319
    %2836 = vmatpush.msra.mxu0 %v1315
    %2837 = vmatpush.msra.mxu0 %v1311
    %2838 = vmatpush.msra.mxu0 %v1307
    %2839 = vmatpush.msra.mxu0 %v1303
    %2840 = vmatpush.msra.mxu0 %v1299
    %2841 = vmatpush.msra.mxu0 %v1295
    %2842 = vmatpush.msra.mxu0 %v1291
    %2843 = vmatpush.msra.mxu0 %v1287
    %2844 = vmatpush.msra.mxu0 %v1283
    %2845 = vmatpush.msra.mxu0 %v1279
    %2846 = vmatpush.msra.mxu0 %v1275
    %2847 = vmatpush.msra.mxu0 %v1271
    %2848 = vmatpush.msra.mxu0 %v1267
    %2849 = vmatpush.msra.mxu0 %v1263
    %2850 = vmatpush.msra.mxu0 %v1259
    %2851 = vmatmul.f32.gmra.mxu0 %v2301
    %v2852 = vpop.f32.mrf.mxu0
    %v2853 = vadd.f32 %v1390, %v2852
    %2854 = vdwg.mxu0
    %2855 = vmatpush.msra.mxu0 %v1383
    %2856 = vmatpush.msra.mxu0 %v1379
    %2857 = vmatpush.msra.mxu0 %v1375
    %2858 = vmatpush.msra.mxu0 %v1371
    %2859 = vmatpush.msra.mxu0 %v1367
    %2860 = vmatpush.msra.mxu0 %v1363
    %2861 = vmatpush.msra.mxu0 %v1359
    %2862 = vmatpush.msra.mxu0 %v1355
    %2863 = vmatpush.msra.mxu0 %v1351
    %2864 = vmatpush.msra.mxu0 %v1347
    %2865 = vmatpush.msra.mxu0 %v1343
    %2866 = vmatpush.msra.mxu0 %v1339
    %2867 = vmatpush.msra.mxu0 %v1335
    %2868 = vmatpush.msra.mxu0 %v1331
    %2869 = vmatpush.msra.mxu0 %v1327
    %2870 = vmatpush.msra.mxu0 %v1323
    %2871 = vmatmul.f32.gmra.mxu0 %v2476
    %v2872 = vpop.f32.mrf.mxu0
    %v2873 = vadd.f32 %v2853, %v2872
    %2874 = vdwg.mxu0
    %2875 = vmatpush.msra.mxu0 %v1320
    %2876 = vmatpush.msra.mxu0 %v1316
    %2877 = vmatpush.msra.mxu0 %v1312
    %2878 = vmatpush.msra.mxu0 %v1308
    %2879 = vmatpush.msra.mxu0 %v1304
    %2880 = vmatpush.msra.mxu0 %v1300
    %2881 = vmatpush.msra.mxu0 %v1296
    %2882 = vmatpush.msra.mxu0 %v1292
    %2883 = vmatpush.msra.mxu0 %v1288
    %2884 = vmatpush.msra.mxu0 %v1284
    %2885 = vmatpush.msra.mxu0 %v1280
    %2886 = vmatpush.msra.mxu0 %v1276
    %2887 = vmatpush.msra.mxu0 %v1272
    %2888 = vmatpush.msra.mxu0 %v1268
    %2889 = vmatpush.msra.mxu0 %v1264
    %2890 = vmatpush.msra.mxu0 %v1260
    %2891 = vmatmul.f32.gmra.mxu0 %v2301
    %v2892 = vpop.f32.mrf.mxu0
    %v2893 = vadd.f32 %v1391, %v2892
    %2894 = vdwg.mxu0
    %2895 = vmatpush.msra.mxu0 %v1384
    %2896 = vmatpush.msra.mxu0 %v1380
    %2897 = vmatpush.msra.mxu0 %v1376
    %2898 = vmatpush.msra.mxu0 %v1372
    %2899 = vmatpush.msra.mxu0 %v1368
    %2900 = vmatpush.msra.mxu0 %v1364
    %2901 = vmatpush.msra.mxu0 %v1360
    %2902 = vmatpush.msra.mxu0 %v1356
    %2903 = vmatpush.msra.mxu0 %v1352
    %2904 = vmatpush.msra.mxu0 %v1348
    %2905 = vmatpush.msra.mxu0 %v1344
    %2906 = vmatpush.msra.mxu0 %v1340
    %2907 = vmatpush.msra.mxu0 %v1336
    %2908 = vmatpush.msra.mxu0 %v1332
    %2909 = vmatpush.msra.mxu0 %v1328
    %2910 = vmatpush.msra.mxu0 %v1324
    %2911 = vmatmul.f32.gmra.mxu0 %v2476
    %v2912 = vpop.f32.mrf.mxu0
    %v2913 = vadd.f32 %v2893, %v2912
    %2914 = vdwg.mxu0
    %v2915 = vmul.f32 %v2793, 0.5
    %v2916 = vtanh.pop %v2915
    %v2917 = vmul.f32 %v2916, 0.5
    %v2918 = vadd.f32 %v2917, 0.5
    %v2919 = vmul.f32 %v2833, 0.5
    %v2920 = vtanh.pop %v2919
    %v2921 = vmul.f32 %v2920, 0.5
    %v2922 = vadd.f32 %v2921, 0.5
    %v2923 = vmul.f32 %v2918, %v2913
    %v2924 = vadd.f32 %v2873, %v2923
    %v2925 = vtanh.pop %v2924
    %v2926 = vsub.f32 1.0, %v2922
    %v2927 = vmul.f32 %v2926, %v2925
    %v2928 = vmul.f32 %v2922, %v2476
    %v2929 = vadd.f32 %v2927, %v2928
    %v2930 = vld [vmem:[#allocation2 + $0xc0] sm:$0xff]
    %v2931 = vld [vmem:[#allocation2 + $0xc8] sm:$0xff]
    %v2932 = vld [vmem:[#allocation2 + $0xd0] sm:$0xff]
    %v2933 = vld [vmem:[#allocation2 + $0xd8] sm:$0xff]
    %2934 = vmatpush.msra.mxu0 %v458
    %2935 = vmatpush.msra.mxu0 %v454
    %2936 = vmatpush.msra.mxu0 %v450
    %2937 = vmatpush.msra.mxu0 %v446
    %2938 = vmatpush.msra.mxu0 %v442
    %2939 = vmatpush.msra.mxu0 %v438
    %2940 = vmatpush.msra.mxu0 %v434
    %2941 = vmatpush.msra.mxu0 %v430
    %2942 = vmatpush.msra.mxu0 %v426
    %2943 = vmatpush.msra.mxu0 %v422
    %2944 = vmatpush.msra.mxu0 %v418
    %2945 = vmatpush.msra.mxu0 %v414
    %2946 = vmatpush.msra.mxu0 %v410
    %2947 = vmatpush.msra.mxu0 %v406
    %2948 = vmatpush.msra.mxu0 %v402
    %2949 = vmatpush.msra.mxu0 %v398
    %2950 = vmatmul.f32.gmra.mxu0 %v2579
    %v2951 = vpop.f32.mrf.mxu0
    %v2952 = vadd.f32 0.0, %v2951
    %2953 = vdwg.mxu0
    %2954 = vmatpush.msra.mxu0 %v459
    %2955 = vmatpush.msra.mxu0 %v455
    %2956 = vmatpush.msra.mxu0 %v451
    %2957 = vmatpush.msra.mxu0 %v447
    %2958 = vmatpush.msra.mxu0 %v443
    %2959 = vmatpush.msra.mxu0 %v439
    %2960 = vmatpush.msra.mxu0 %v435
    %2961 = vmatpush.msra.mxu0 %v431
    %2962 = vmatpush.msra.mxu0 %v427
    %2963 = vmatpush.msra.mxu0 %v423
    %2964 = vmatpush.msra.mxu0 %v419
    %2965 = vmatpush.msra.mxu0 %v415
    %2966 = vmatpush.msra.mxu0 %v411
    %2967 = vmatpush.msra.mxu0 %v407
    %2968 = vmatpush.msra.mxu0 %v403
    %2969 = vmatpush.msra.mxu0 %v399
    %2970 = vmatmul.f32.gmra.mxu0 %v2579
    %v2971 = vpop.f32.mrf.mxu0
    %v2972 = vadd.f32 0.0, %v2971
    %2973 = vdwg.mxu0
    %2974 = vmatpush.msra.mxu0 %v460
    %2975 = vmatpush.msra.mxu0 %v456
    %2976 = vmatpush.msra.mxu0 %v452
    %2977 = vmatpush.msra.mxu0 %v448
    %2978 = vmatpush.msra.mxu0 %v444
    %2979 = vmatpush.msra.mxu0 %v440
    %2980 = vmatpush.msra.mxu0 %v436
    %2981 = vmatpush.msra.mxu0 %v432
    %2982 = vmatpush.msra.mxu0 %v428
    %2983 = vmatpush.msra.mxu0 %v424
    %2984 = vmatpush.msra.mxu0 %v420
    %2985 = vmatpush.msra.mxu0 %v416
    %2986 = vmatpush.msra.mxu0 %v412
    %2987 = vmatpush.msra.mxu0 %v408
    %2988 = vmatpush.msra.mxu0 %v404
    %2989 = vmatpush.msra.mxu0 %v400
    %2990 = vmatmul.f32.gmra.mxu0 %v2579
    %v2991 = vpop.f32.mrf.mxu0
    %v2992 = vadd.f32 0.0, %v2991
    %2993 = vdwg.mxu0
    %2994 = vmatpush.msra.mxu0 %v461
    %2995 = vmatpush.msra.mxu0 %v457
    %2996 = vmatpush.msra.mxu0 %v453
    %2997 = vmatpush.msra.mxu0 %v449
    %2998 = vmatpush.msra.mxu0 %v445
    %2999 = vmatpush.msra.mxu0 %v441
    %3000 = vmatpush.msra.mxu0 %v437
    %3001 = vmatpush.msra.mxu0 %v433
    %3002 = vmatpush.msra.mxu0 %v429
    %3003 = vmatpush.msra.mxu0 %v425
    %3004 = vmatpush.msra.mxu0 %v421
    %3005 = vmatpush.msra.mxu0 %v417
    %3006 = vmatpush.msra.mxu0 %v413
    %3007 = vmatpush.msra.mxu0 %v409
    %3008 = vmatpush.msra.mxu0 %v405
    %3009 = vmatpush.msra.mxu0 %v401
    %3010 = vmatmul.f32.gmra.mxu0 %v2579
    %v3011 = vpop.f32.mrf.mxu0
    %v3012 = vadd.f32 0.0, %v3011
    %3013 = vdwg.mxu0
    %v3014 = vadd.f32 %v2930, %v2952
    %v3015 = vadd.f32 %v2931, %v2972
    %v3016 = vadd.f32 %v2932, %v2992
    %v3017 = vadd.f32 %v2933, %v3012
    %v3018 = vmul.f32 %v3014, 0.5
    %v3019 = vtanh.pop %v3018
    %v3020 = vmul.f32 %v3019, 0.5
    %v3021 = vadd.f32 %v3020, 0.5
    %v3022 = vmul.f32 %v3015, 0.5
    %v3023 = vtanh.pop %v3022
    %v3024 = vmul.f32 %v3023, 0.5
    %v3025 = vadd.f32 %v3024, 0.5
    %v3026 = vmul.f32 %v3021, %v3017
    %v3027 = vadd.f32 %v3016, %v3026
    %v3028 = vtanh.pop %v3027
    %v3029 = vsub.f32 1.0, %v3025
    %v3030 = vmul.f32 %v3029, %v3028
    %v3031 = vmul.f32 %v3025, %v2579
    %v3032 = vadd.f32 %v3030, %v3031
    %3033 = vmatpush.msra.mxu0 %v724
    %3034 = vmatpush.msra.mxu0 %v720
    %3035 = vmatpush.msra.mxu0 %v716
    %3036 = vmatpush.msra.mxu0 %v712
    %3037 = vmatpush.msra.mxu0 %v708
    %3038 = vmatpush.msra.mxu0 %v704
    %3039 = vmatpush.msra.mxu0 %v700
    %3040 = vmatpush.msra.mxu0 %v696
    %3041 = vmatpush.msra.mxu0 %v692
    %3042 = vmatpush.msra.mxu0 %v688
    %3043 = vmatpush.msra.mxu0 %v684
    %3044 = vmatpush.msra.mxu0 %v680
    %3045 = vmatpush.msra.mxu0 %v676
    %3046 = vmatpush.msra.mxu0 %v672
    %3047 = vmatpush.msra.mxu0 %v668
    %3048 = vmatpush.msra.mxu0 %v664
    %3049 = vmatmul.f32.gmra.mxu0 %v2579
    %v3050 = vpop.f32.mrf.mxu0
    %v3051 = vadd.f32 %v795, %v3050
    %3052 = vdwg.mxu0
    %3053 = vmatpush.msra.mxu0 %v788
    %3054 = vmatpush.msra.mxu0 %v784
    %3055 = vmatpush.msra.mxu0 %v780
    %3056 = vmatpush.msra.mxu0 %v776
    %3057 = vmatpush.msra.mxu0 %v772
    %3058 = vmatpush.msra.mxu0 %v768
    %3059 = vmatpush.msra.mxu0 %v764
    %3060 = vmatpush.msra.mxu0 %v760
    %3061 = vmatpush.msra.mxu0 %v756
    %3062 = vmatpush.msra.mxu0 %v752
    %3063 = vmatpush.msra.mxu0 %v748
    %3064 = vmatpush.msra.mxu0 %v744
    %3065 = vmatpush.msra.mxu0 %v740
    %3066 = vmatpush.msra.mxu0 %v736
    %3067 = vmatpush.msra.mxu0 %v732
    %3068 = vmatpush.msra.mxu0 %v728
    %3069 = vmatmul.f32.gmra.mxu0 %v2754
    %v3070 = vpop.f32.mrf.mxu0
    %v3071 = vadd.f32 %v3051, %v3070
    %3072 = vdwg.mxu0
    %3073 = vmatpush.msra.mxu0 %v725
    %3074 = vmatpush.msra.mxu0 %v721
    %3075 = vmatpush.msra.mxu0 %v717
    %3076 = vmatpush.msra.mxu0 %v713
    %3077 = vmatpush.msra.mxu0 %v709
    %3078 = vmatpush.msra.mxu0 %v705
    %3079 = vmatpush.msra.mxu0 %v701
    %3080 = vmatpush.msra.mxu0 %v697
    %3081 = vmatpush.msra.mxu0 %v693
    %3082 = vmatpush.msra.mxu0 %v689
    %3083 = vmatpush.msra.mxu0 %v685
    %3084 = vmatpush.msra.mxu0 %v681
    %3085 = vmatpush.msra.mxu0 %v677
    %3086 = vmatpush.msra.mxu0 %v673
    %3087 = vmatpush.msra.mxu0 %v669
    %3088 = vmatpush.msra.mxu0 %v665
    %3089 = vmatmul.f32.gmra.mxu0 %v2579
    %v3090 = vpop.f32.mrf.mxu0
    %v3091 = vadd.f32 %v796, %v3090
    %3092 = vdwg.mxu0
    %3093 = vmatpush.msra.mxu0 %v789
    %3094 = vmatpush.msra.mxu0 %v785
    %3095 = vmatpush.msra.mxu0 %v781
    %3096 = vmatpush.msra.mxu0 %v777
    %3097 = vmatpush.msra.mxu0 %v773
    %3098 = vmatpush.msra.mxu0 %v769
    %3099 = vmatpush.msra.mxu0 %v765
    %3100 = vmatpush.msra.mxu0 %v761
    %3101 = vmatpush.msra.mxu0 %v757
    %3102 = vmatpush.msra.mxu0 %v753
    %3103 = vmatpush.msra.mxu0 %v749
    %3104 = vmatpush.msra.mxu0 %v745
    %3105 = vmatpush.msra.mxu0 %v741
    %3106 = vmatpush.msra.mxu0 %v737
    %3107 = vmatpush.msra.mxu0 %v733
    %3108 = vmatpush.msra.mxu0 %v729
    %3109 = vmatmul.f32.gmra.mxu0 %v2754
    %v3110 = vpop.f32.mrf.mxu0
    %v3111 = vadd.f32 %v3091, %v3110
    %3112 = vdwg.mxu0
    %3113 = vmatpush.msra.mxu0 %v726
    %3114 = vmatpush.msra.mxu0 %v722
    %3115 = vmatpush.msra.mxu0 %v718
    %3116 = vmatpush.msra.mxu0 %v714
    %3117 = vmatpush.msra.mxu0 %v710
    %3118 = vmatpush.msra.mxu0 %v706
    %3119 = vmatpush.msra.mxu0 %v702
    %3120 = vmatpush.msra.mxu0 %v698
    %3121 = vmatpush.msra.mxu0 %v694
    %3122 = vmatpush.msra.mxu0 %v690
    %3123 = vmatpush.msra.mxu0 %v686
    %3124 = vmatpush.msra.mxu0 %v682
    %3125 = vmatpush.msra.mxu0 %v678
    %3126 = vmatpush.msra.mxu0 %v674
    %3127 = vmatpush.msra.mxu0 %v670
    %3128 = vmatpush.msra.mxu0 %v666
    %3129 = vmatmul.f32.gmra.mxu0 %v2579
    %v3130 = vpop.f32.mrf.mxu0
    %v3131 = vadd.f32 %v797, %v3130
    %3132 = vdwg.mxu0
    %3133 = vmatpush.msra.mxu0 %v790
    %3134 = vmatpush.msra.mxu0 %v786
    %3135 = vmatpush.msra.mxu0 %v782
    %3136 = vmatpush.msra.mxu0 %v778
    %3137 = vmatpush.msra.mxu0 %v774
    %3138 = vmatpush.msra.mxu0 %v770
    %3139 = vmatpush.msra.mxu0 %v766
    %3140 = vmatpush.msra.mxu0 %v762
    %3141 = vmatpush.msra.mxu0 %v758
    %3142 = vmatpush.msra.mxu0 %v754
    %3143 = vmatpush.msra.mxu0 %v750
    %3144 = vmatpush.msra.mxu0 %v746
    %3145 = vmatpush.msra.mxu0 %v742
    %3146 = vmatpush.msra.mxu0 %v738
    %3147 = vmatpush.msra.mxu0 %v734
    %3148 = vmatpush.msra.mxu0 %v730
    %3149 = vmatmul.f32.gmra.mxu0 %v2754
    %v3150 = vpop.f32.mrf.mxu0
    %v3151 = vadd.f32 %v3131, %v3150
    %3152 = vdwg.mxu0
    %3153 = vmatpush.msra.mxu0 %v727
    %3154 = vmatpush.msra.mxu0 %v723
    %3155 = vmatpush.msra.mxu0 %v719
    %3156 = vmatpush.msra.mxu0 %v715
    %3157 = vmatpush.msra.mxu0 %v711
    %3158 = vmatpush.msra.mxu0 %v707
    %3159 = vmatpush.msra.mxu0 %v703
    %3160 = vmatpush.msra.mxu0 %v699
    %3161 = vmatpush.msra.mxu0 %v695
    %3162 = vmatpush.msra.mxu0 %v691
    %3163 = vmatpush.msra.mxu0 %v687
    %3164 = vmatpush.msra.mxu0 %v683
    %3165 = vmatpush.msra.mxu0 %v679
    %3166 = vmatpush.msra.mxu0 %v675
    %3167 = vmatpush.msra.mxu0 %v671
    %3168 = vmatpush.msra.mxu0 %v667
    %3169 = vmatmul.f32.gmra.mxu0 %v2579
    %v3170 = vpop.f32.mrf.mxu0
    %v3171 = vadd.f32 %v798, %v3170
    %3172 = vdwg.mxu0
    %3173 = vmatpush.msra.mxu0 %v791
    %3174 = vmatpush.msra.mxu0 %v787
    %3175 = vmatpush.msra.mxu0 %v783
    %3176 = vmatpush.msra.mxu0 %v779
    %3177 = vmatpush.msra.mxu0 %v775
    %3178 = vmatpush.msra.mxu0 %v771
    %3179 = vmatpush.msra.mxu0 %v767
    %3180 = vmatpush.msra.mxu0 %v763
    %3181 = vmatpush.msra.mxu0 %v759
    %3182 = vmatpush.msra.mxu0 %v755
    %3183 = vmatpush.msra.mxu0 %v751
    %3184 = vmatpush.msra.mxu0 %v747
    %3185 = vmatpush.msra.mxu0 %v743
    %3186 = vmatpush.msra.mxu0 %v739
    %3187 = vmatpush.msra.mxu0 %v735
    %3188 = vmatpush.msra.mxu0 %v731
    %3189 = vmatmul.f32.gmra.mxu0 %v2754
    %v3190 = vpop.f32.mrf.mxu0
    %v3191 = vadd.f32 %v3171, %v3190
    %3192 = vdwg.mxu0
    %v3193 = vmul.f32 %v3071, 0.5
    %v3194 = vtanh.pop %v3193
    %v3195 = vmul.f32 %v3194, 0.5
    %v3196 = vadd.f32 %v3195, 0.5
    %v3197 = vmul.f32 %v3111, 0.5
    %v3198 = vtanh.pop %v3197
    %v3199 = vmul.f32 %v3198, 0.5
    %v3200 = vadd.f32 %v3199, 0.5
    %v3201 = vmul.f32 %v3196, %v3191
    %v3202 = vadd.f32 %v3151, %v3201
    %v3203 = vtanh.pop %v3202
    %v3204 = vsub.f32 1.0, %v3200
    %v3205 = vmul.f32 %v3204, %v3203
    %v3206 = vmul.f32 %v3200, %v2754
    %v3207 = vadd.f32 %v3205, %v3206
    %3208 = vmatpush.msra.mxu0 %v1317
    %3209 = vmatpush.msra.mxu0 %v1313
    %3210 = vmatpush.msra.mxu0 %v1309
    %3211 = vmatpush.msra.mxu0 %v1305
    %3212 = vmatpush.msra.mxu0 %v1301
    %3213 = vmatpush.msra.mxu0 %v1297
    %3214 = vmatpush.msra.mxu0 %v1293
    %3215 = vmatpush.msra.mxu0 %v1289
    %3216 = vmatpush.msra.mxu0 %v1285
    %3217 = vmatpush.msra.mxu0 %v1281
    %3218 = vmatpush.msra.mxu0 %v1277
    %3219 = vmatpush.msra.mxu0 %v1273
    %3220 = vmatpush.msra.mxu0 %v1269
    %3221 = vmatpush.msra.mxu0 %v1265
    %3222 = vmatpush.msra.mxu0 %v1261
    %3223 = vmatpush.msra.mxu0 %v1257
    %3224 = vmatmul.f32.gmra.mxu0 %v2754
    %v3225 = vpop.f32.mrf.mxu0
    %v3226 = vadd.f32 %v1388, %v3225
    %3227 = vdwg.mxu0
    %3228 = vmatpush.msra.mxu0 %v1381
    %3229 = vmatpush.msra.mxu0 %v1377
    %3230 = vmatpush.msra.mxu0 %v1373
    %3231 = vmatpush.msra.mxu0 %v1369
    %3232 = vmatpush.msra.mxu0 %v1365
    %3233 = vmatpush.msra.mxu0 %v1361
    %3234 = vmatpush.msra.mxu0 %v1357
    %3235 = vmatpush.msra.mxu0 %v1353
    %3236 = vmatpush.msra.mxu0 %v1349
    %3237 = vmatpush.msra.mxu0 %v1345
    %3238 = vmatpush.msra.mxu0 %v1341
    %3239 = vmatpush.msra.mxu0 %v1337
    %3240 = vmatpush.msra.mxu0 %v1333
    %3241 = vmatpush.msra.mxu0 %v1329
    %3242 = vmatpush.msra.mxu0 %v1325
    %3243 = vmatpush.msra.mxu0 %v1321
    %3244 = vmatmul.f32.gmra.mxu0 %v2929
    %v3245 = vpop.f32.mrf.mxu0
    %v3246 = vadd.f32 %v3226, %v3245
    %3247 = vdwg.mxu0
    %3248 = vmatpush.msra.mxu0 %v1318
    %3249 = vmatpush.msra.mxu0 %v1314
    %3250 = vmatpush.msra.mxu0 %v1310
    %3251 = vmatpush.msra.mxu0 %v1306
    %3252 = vmatpush.msra.mxu0 %v1302
    %3253 = vmatpush.msra.mxu0 %v1298
    %3254 = vmatpush.msra.mxu0 %v1294
    %3255 = vmatpush.msra.mxu0 %v1290
    %3256 = vmatpush.msra.mxu0 %v1286
    %3257 = vmatpush.msra.mxu0 %v1282
    %3258 = vmatpush.msra.mxu0 %v1278
    %3259 = vmatpush.msra.mxu0 %v1274
    %3260 = vmatpush.msra.mxu0 %v1270
    %3261 = vmatpush.msra.mxu0 %v1266
    %3262 = vmatpush.msra.mxu0 %v1262
    %3263 = vmatpush.msra.mxu0 %v1258
    %3264 = vmatmul.f32.gmra.mxu0 %v2754
    %v3265 = vpop.f32.mrf.mxu0
    %v3266 = vadd.f32 %v1389, %v3265
    %3267 = vdwg.mxu0
    %3268 = vmatpush.msra.mxu0 %v1382
    %3269 = vmatpush.msra.mxu0 %v1378
    %3270 = vmatpush.msra.mxu0 %v1374
    %3271 = vmatpush.msra.mxu0 %v1370
    %3272 = vmatpush.msra.mxu0 %v1366
    %3273 = vmatpush.msra.mxu0 %v1362
    %3274 = vmatpush.msra.mxu0 %v1358
    %3275 = vmatpush.msra.mxu0 %v1354
    %3276 = vmatpush.msra.mxu0 %v1350
    %3277 = vmatpush.msra.mxu0 %v1346
    %3278 = vmatpush.msra.mxu0 %v1342
    %3279 = vmatpush.msra.mxu0 %v1338
    %3280 = vmatpush.msra.mxu0 %v1334
    %3281 = vmatpush.msra.mxu0 %v1330
    %3282 = vmatpush.msra.mxu0 %v1326
    %3283 = vmatpush.msra.mxu0 %v1322
    %3284 = vmatmul.f32.gmra.mxu0 %v2929
    %v3285 = vpop.f32.mrf.mxu0
    %v3286 = vadd.f32 %v3266, %v3285
    %3287 = vdwg.mxu0
    %3288 = vmatpush.msra.mxu0 %v1319
    %3289 = vmatpush.msra.mxu0 %v1315
    %3290 = vmatpush.msra.mxu0 %v1311
    %3291 = vmatpush.msra.mxu0 %v1307
    %3292 = vmatpush.msra.mxu0 %v1303
    %3293 = vmatpush.msra.mxu0 %v1299
    %3294 = vmatpush.msra.mxu0 %v1295
    %3295 = vmatpush.msra.mxu0 %v1291
    %3296 = vmatpush.msra.mxu0 %v1287
    %3297 = vmatpush.msra.mxu0 %v1283
    %3298 = vmatpush.msra.mxu0 %v1279
    %3299 = vmatpush.msra.mxu0 %v1275
    %3300 = vmatpush.msra.mxu0 %v1271
    %3301 = vmatpush.msra.mxu0 %v1267
    %3302 = vmatpush.msra.mxu0 %v1263
    %3303 = vmatpush.msra.mxu0 %v1259
    %3304 = vmatmul.f32.gmra.mxu0 %v2754
    %v3305 = vpop.f32.mrf.mxu0
    %v3306 = vadd.f32 %v1390, %v3305
    %3307 = vdwg.mxu0
    %3308 = vmatpush.msra.mxu0 %v1383
    %3309 = vmatpush.msra.mxu0 %v1379
    %3310 = vmatpush.msra.mxu0 %v1375
    %3311 = vmatpush.msra.mxu0 %v1371
    %3312 = vmatpush.msra.mxu0 %v1367
    %3313 = vmatpush.msra.mxu0 %v1363
    %3314 = vmatpush.msra.mxu0 %v1359
    %3315 = vmatpush.msra.mxu0 %v1355
    %3316 = vmatpush.msra.mxu0 %v1351
    %3317 = vmatpush.msra.mxu0 %v1347
    %3318 = vmatpush.msra.mxu0 %v1343
    %3319 = vmatpush.msra.mxu0 %v1339
    %3320 = vmatpush.msra.mxu0 %v1335
    %3321 = vmatpush.msra.mxu0 %v1331
    %3322 = vmatpush.msra.mxu0 %v1327
    %3323 = vmatpush.msra.mxu0 %v1323
    %3324 = vmatmul.f32.gmra.mxu0 %v2929
    %v3325 = vpop.f32.mrf.mxu0
    %v3326 = vadd.f32 %v3306, %v3325
    %3327 = vdwg.mxu0
    %3328 = vmatpush.msra.mxu0 %v1320
    %3329 = vmatpush.msra.mxu0 %v1316
    %3330 = vmatpush.msra.mxu0 %v1312
    %3331 = vmatpush.msra.mxu0 %v1308
    %3332 = vmatpush.msra.mxu0 %v1304
    %3333 = vmatpush.msra.mxu0 %v1300
    %3334 = vmatpush.msra.mxu0 %v1296
    %3335 = vmatpush.msra.mxu0 %v1292
    %3336 = vmatpush.msra.mxu0 %v1288
    %3337 = vmatpush.msra.mxu0 %v1284
    %3338 = vmatpush.msra.mxu0 %v1280
    %3339 = vmatpush.msra.mxu0 %v1276
    %3340 = vmatpush.msra.mxu0 %v1272
    %3341 = vmatpush.msra.mxu0 %v1268
    %3342 = vmatpush.msra.mxu0 %v1264
    %3343 = vmatpush.msra.mxu0 %v1260
    %3344 = vmatmul.f32.gmra.mxu0 %v2754
    %v3345 = vpop.f32.mrf.mxu0
    %v3346 = vadd.f32 %v1391, %v3345
    %3347 = vdwg.mxu0
    %3348 = vmatpush.msra.mxu0 %v1384
    %3349 = vmatpush.msra.mxu0 %v1380
    %3350 = vmatpush.msra.mxu0 %v1376
    %3351 = vmatpush.msra.mxu0 %v1372
    %3352 = vmatpush.msra.mxu0 %v1368
    %3353 = vmatpush.msra.mxu0 %v1364
    %3354 = vmatpush.msra.mxu0 %v1360
    %3355 = vmatpush.msra.mxu0 %v1356
    %3356 = vmatpush.msra.mxu0 %v1352
    %3357 = vmatpush.msra.mxu0 %v1348
    %3358 = vmatpush.msra.mxu0 %v1344
    %3359 = vmatpush.msra.mxu0 %v1340
    %3360 = vmatpush.msra.mxu0 %v1336
    %3361 = vmatpush.msra.mxu0 %v1332
    %3362 = vmatpush.msra.mxu0 %v1328
    %3363 = vmatpush.msra.mxu0 %v1324
    %3364 = vmatmul.f32.gmra.mxu0 %v2929
    %v3365 = vpop.f32.mrf.mxu0
    %v3366 = vadd.f32 %v3346, %v3365
    %3367 = vdwg.mxu0
    %v3368 = vmul.f32 %v3246, 0.5
    %v3369 = vtanh.pop %v3368
    %v3370 = vmul.f32 %v3369, 0.5
    %v3371 = vadd.f32 %v3370, 0.5
    %v3372 = vmul.f32 %v3286, 0.5
    %v3373 = vtanh.pop %v3372
    %v3374 = vmul.f32 %v3373, 0.5
    %v3375 = vadd.f32 %v3374, 0.5
    %v3376 = vmul.f32 %v3371, %v3366
    %v3377 = vadd.f32 %v3326, %v3376
    %v3378 = vtanh.pop %v3377
    %v3379 = vsub.f32 1.0, %v3375
    %v3380 = vmul.f32 %v3379, %v3378
    %v3381 = vmul.f32 %v3375, %v2929
    %v3382 = vadd.f32 %v3380, %v3381
    %v3383 = vld [vmem:[#allocation2 + $0xe0] sm:$0xff]
    %v3384 = vld [vmem:[#allocation2 + $0xe8] sm:$0xff]
    %v3385 = vld [vmem:[#allocation2 + $0xf0] sm:$0xff]
    %v3386 = vld [vmem:[#allocation2 + $0xf8] sm:$0xff]
    %3387 = vmatpush.msra.mxu0 %v458
    %3388 = vmatpush.msra.mxu0 %v454
    %3389 = vmatpush.msra.mxu0 %v450
    %3390 = vmatpush.msra.mxu0 %v446
    %3391 = vmatpush.msra.mxu0 %v442
    %3392 = vmatpush.msra.mxu0 %v438
    %3393 = vmatpush.msra.mxu0 %v434
    %3394 = vmatpush.msra.mxu0 %v430
    %3395 = vmatpush.msra.mxu0 %v426
    %3396 = vmatpush.msra.mxu0 %v422
    %3397 = vmatpush.msra.mxu0 %v418
    %3398 = vmatpush.msra.mxu0 %v414
    %3399 = vmatpush.msra.mxu0 %v410
    %3400 = vmatpush.msra.mxu0 %v406
    %3401 = vmatpush.msra.mxu0 %v402
    %3402 = vmatpush.msra.mxu0 %v398
    %3403 = vmatmul.f32.gmra.mxu0 %v3032
    %v3404 = vpop.f32.mrf.mxu0
    %v3405 = vadd.f32 0.0, %v3404
    %3406 = vdwg.mxu0
    %3407 = vmatpush.msra.mxu0 %v459
    %3408 = vmatpush.msra.mxu0 %v455
    %3409 = vmatpush.msra.mxu0 %v451
    %3410 = vmatpush.msra.mxu0 %v447
    %3411 = vmatpush.msra.mxu0 %v443
    %3412 = vmatpush.msra.mxu0 %v439
    %3413 = vmatpush.msra.mxu0 %v435
    %3414 = vmatpush.msra.mxu0 %v431
    %3415 = vmatpush.msra.mxu0 %v427
    %3416 = vmatpush.msra.mxu0 %v423
    %3417 = vmatpush.msra.mxu0 %v419
    %3418 = vmatpush.msra.mxu0 %v415
    %3419 = vmatpush.msra.mxu0 %v411
    %3420 = vmatpush.msra.mxu0 %v407
    %3421 = vmatpush.msra.mxu0 %v403
    %3422 = vmatpush.msra.mxu0 %v399
    %3423 = vmatmul.f32.gmra.mxu0 %v3032
    %v3424 = vpop.f32.mrf.mxu0
    %v3425 = vadd.f32 0.0, %v3424
    %3426 = vdwg.mxu0
    %3427 = vmatpush.msra.mxu0 %v460
    %3428 = vmatpush.msra.mxu0 %v456
    %3429 = vmatpush.msra.mxu0 %v452
    %3430 = vmatpush.msra.mxu0 %v448
    %3431 = vmatpush.msra.mxu0 %v444
    %3432 = vmatpush.msra.mxu0 %v440
    %3433 = vmatpush.msra.mxu0 %v436
    %3434 = vmatpush.msra.mxu0 %v432
    %3435 = vmatpush.msra.mxu0 %v428
    %3436 = vmatpush.msra.mxu0 %v424
    %3437 = vmatpush.msra.mxu0 %v420
    %3438 = vmatpush.msra.mxu0 %v416
    %3439 = vmatpush.msra.mxu0 %v412
    %3440 = vmatpush.msra.mxu0 %v408
    %3441 = vmatpush.msra.mxu0 %v404
    %3442 = vmatpush.msra.mxu0 %v400
    %3443 = vmatmul.f32.gmra.mxu0 %v3032
    %v3444 = vpop.f32.mrf.mxu0
    %v3445 = vadd.f32 0.0, %v3444
    %3446 = vdwg.mxu0
    %3447 = vmatpush.msra.mxu0 %v461
    %3448 = vmatpush.msra.mxu0 %v457
    %3449 = vmatpush.msra.mxu0 %v453
    %3450 = vmatpush.msra.mxu0 %v449
    %3451 = vmatpush.msra.mxu0 %v445
    %3452 = vmatpush.msra.mxu0 %v441
    %3453 = vmatpush.msra.mxu0 %v437
    %3454 = vmatpush.msra.mxu0 %v433
    %3455 = vmatpush.msra.mxu0 %v429
    %3456 = vmatpush.msra.mxu0 %v425
    %3457 = vmatpush.msra.mxu0 %v421
    %3458 = vmatpush.msra.mxu0 %v417
    %3459 = vmatpush.msra.mxu0 %v413
    %3460 = vmatpush.msra.mxu0 %v409
    %3461 = vmatpush.msra.mxu0 %v405
    %3462 = vmatpush.msra.mxu0 %v401
    %3463 = vmatmul.f32.gmra.mxu0 %v3032
    %v3464 = vpop.f32.mrf.mxu0
    %v3465 = vadd.f32 0.0, %v3464
    %3466 = vdwg.mxu0
    %v3467 = vadd.f32 %v3383, %v3405
    %v3468 = vadd.f32 %v3384, %v3425
    %v3469 = vadd.f32 %v3385, %v3445
    %v3470 = vadd.f32 %v3386, %v3465
    %v3471 = vmul.f32 %v3467, 0.5
    %v3472 = vtanh.pop %v3471
    %v3473 = vmul.f32 %v3472, 0.5
    %v3474 = vadd.f32 %v3473, 0.5
    %v3475 = vmul.f32 %v3468, 0.5
    %v3476 = vtanh.pop %v3475
    %v3477 = vmul.f32 %v3476, 0.5
    %v3478 = vadd.f32 %v3477, 0.5
    %v3479 = vmul.f32 %v3474, %v3470
    %v3480 = vadd.f32 %v3469, %v3479
    %v3481 = vtanh.pop %v3480
    %v3482 = vsub.f32 1.0, %v3478
    %v3483 = vmul.f32 %v3482, %v3481
    %v3484 = vmul.f32 %v3478, %v3032
    %v3485 = vadd.f32 %v3483, %v3484
    %3486 = vmatpush.msra.mxu0 %v724
    %3487 = vmatpush.msra.mxu0 %v720
    %3488 = vmatpush.msra.mxu0 %v716
    %3489 = vmatpush.msra.mxu0 %v712
    %3490 = vmatpush.msra.mxu0 %v708
    %3491 = vmatpush.msra.mxu0 %v704
    %3492 = vmatpush.msra.mxu0 %v700
    %3493 = vmatpush.msra.mxu0 %v696
    %3494 = vmatpush.msra.mxu0 %v692
    %3495 = vmatpush.msra.mxu0 %v688
    %3496 = vmatpush.msra.mxu0 %v684
    %3497 = vmatpush.msra.mxu0 %v680
    %3498 = vmatpush.msra.mxu0 %v676
    %3499 = vmatpush.msra.mxu0 %v672
    %3500 = vmatpush.msra.mxu0 %v668
    %3501 = vmatpush.msra.mxu0 %v664
    %3502 = vmatmul.f32.gmra.mxu0 %v3032
    %v3503 = vpop.f32.mrf.mxu0
    %v3504 = vadd.f32 %v795, %v3503
    %3505 = vdwg.mxu0
    %3506 = vmatpush.msra.mxu0 %v788
    %3507 = vmatpush.msra.mxu0 %v784
    %3508 = vmatpush.msra.mxu0 %v780
    %3509 = vmatpush.msra.mxu0 %v776
    %3510 = vmatpush.msra.mxu0 %v772
    %3511 = vmatpush.msra.mxu0 %v768
    %3512 = vmatpush.msra.mxu0 %v764
    %3513 = vmatpush.msra.mxu0 %v760
    %3514 = vmatpush.msra.mxu0 %v756
    %3515 = vmatpush.msra.mxu0 %v752
    %3516 = vmatpush.msra.mxu0 %v748
    %3517 = vmatpush.msra.mxu0 %v744
    %3518 = vmatpush.msra.mxu0 %v740
    %3519 = vmatpush.msra.mxu0 %v736
    %3520 = vmatpush.msra.mxu0 %v732
    %3521 = vmatpush.msra.mxu0 %v728
    %3522 = vmatmul.f32.gmra.mxu0 %v3207
    %v3523 = vpop.f32.mrf.mxu0
    %v3524 = vadd.f32 %v3504, %v3523
    %3525 = vdwg.mxu0
    %3526 = vmatpush.msra.mxu0 %v725
    %3527 = vmatpush.msra.mxu0 %v721
    %3528 = vmatpush.msra.mxu0 %v717
    %3529 = vmatpush.msra.mxu0 %v713
    %3530 = vmatpush.msra.mxu0 %v709
    %3531 = vmatpush.msra.mxu0 %v705
    %3532 = vmatpush.msra.mxu0 %v701
    %3533 = vmatpush.msra.mxu0 %v697
    %3534 = vmatpush.msra.mxu0 %v693
    %3535 = vmatpush.msra.mxu0 %v689
    %3536 = vmatpush.msra.mxu0 %v685
    %3537 = vmatpush.msra.mxu0 %v681
    %3538 = vmatpush.msra.mxu0 %v677
    %3539 = vmatpush.msra.mxu0 %v673
    %3540 = vmatpush.msra.mxu0 %v669
    %3541 = vmatpush.msra.mxu0 %v665
    %3542 = vmatmul.f32.gmra.mxu0 %v3032
    %v3543 = vpop.f32.mrf.mxu0
    %v3544 = vadd.f32 %v796, %v3543
    %3545 = vdwg.mxu0
    %3546 = vmatpush.msra.mxu0 %v789
    %3547 = vmatpush.msra.mxu0 %v785
    %3548 = vmatpush.msra.mxu0 %v781
    %3549 = vmatpush.msra.mxu0 %v777
    %3550 = vmatpush.msra.mxu0 %v773
    %3551 = vmatpush.msra.mxu0 %v769
    %3552 = vmatpush.msra.mxu0 %v765
    %3553 = vmatpush.msra.mxu0 %v761
    %3554 = vmatpush.msra.mxu0 %v757
    %3555 = vmatpush.msra.mxu0 %v753
    %3556 = vmatpush.msra.mxu0 %v749
    %3557 = vmatpush.msra.mxu0 %v745
    %3558 = vmatpush.msra.mxu0 %v741
    %3559 = vmatpush.msra.mxu0 %v737
    %3560 = vmatpush.msra.mxu0 %v733
    %3561 = vmatpush.msra.mxu0 %v729
    %3562 = vmatmul.f32.gmra.mxu0 %v3207
    %v3563 = vpop.f32.mrf.mxu0
    %v3564 = vadd.f32 %v3544, %v3563
    %3565 = vdwg.mxu0
    %3566 = vmatpush.msra.mxu0 %v726
    %3567 = vmatpush.msra.mxu0 %v722
    %3568 = vmatpush.msra.mxu0 %v718
    %3569 = vmatpush.msra.mxu0 %v714
    %3570 = vmatpush.msra.mxu0 %v710
    %3571 = vmatpush.msra.mxu0 %v706
    %3572 = vmatpush.msra.mxu0 %v702
    %3573 = vmatpush.msra.mxu0 %v698
    %3574 = vmatpush.msra.mxu0 %v694
    %3575 = vmatpush.msra.mxu0 %v690
    %3576 = vmatpush.msra.mxu0 %v686
    %3577 = vmatpush.msra.mxu0 %v682
    %3578 = vmatpush.msra.mxu0 %v678
    %3579 = vmatpush.msra.mxu0 %v674
    %3580 = vmatpush.msra.mxu0 %v670
    %3581 = vmatpush.msra.mxu0 %v666
    %3582 = vmatmul.f32.gmra.mxu0 %v3032
    %v3583 = vpop.f32.mrf.mxu0
    %v3584 = vadd.f32 %v797, %v3583
    %3585 = vdwg.mxu0
    %3586 = vmatpush.msra.mxu0 %v790
    %3587 = vmatpush.msra.mxu0 %v786
    %3588 = vmatpush.msra.mxu0 %v782
    %3589 = vmatpush.msra.mxu0 %v778
    %3590 = vmatpush.msra.mxu0 %v774
    %3591 = vmatpush.msra.mxu0 %v770
    %3592 = vmatpush.msra.mxu0 %v766
    %3593 = vmatpush.msra.mxu0 %v762
    %3594 = vmatpush.msra.mxu0 %v758
    %3595 = vmatpush.msra.mxu0 %v754
    %3596 = vmatpush.msra.mxu0 %v750
    %3597 = vmatpush.msra.mxu0 %v746
    %3598 = vmatpush.msra.mxu0 %v742
    %3599 = vmatpush.msra.mxu0 %v738
    %3600 = vmatpush.msra.mxu0 %v734
    %3601 = vmatpush.msra.mxu0 %v730
    %3602 = vmatmul.f32.gmra.mxu0 %v3207
    %v3603 = vpop.f32.mrf.mxu0
    %v3604 = vadd.f32 %v3584, %v3603
    %3605 = vdwg.mxu0
    %3606 = vmatpush.msra.mxu0 %v727
    %3607 = vmatpush.msra.mxu0 %v723
    %3608 = vmatpush.msra.mxu0 %v719
    %3609 = vmatpush.msra.mxu0 %v715
    %3610 = vmatpush.msra.mxu0 %v711
    %3611 = vmatpush.msra.mxu0 %v707
    %3612 = vmatpush.msra.mxu0 %v703
    %3613 = vmatpush.msra.mxu0 %v699
    %3614 = vmatpush.msra.mxu0 %v695
    %3615 = vmatpush.msra.mxu0 %v691
    %3616 = vmatpush.msra.mxu0 %v687
    %3617 = vmatpush.msra.mxu0 %v683
    %3618 = vmatpush.msra.mxu0 %v679
    %3619 = vmatpush.msra.mxu0 %v675
    %3620 = vmatpush.msra.mxu0 %v671
    %3621 = vmatpush.msra.mxu0 %v667
    %3622 = vmatmul.f32.gmra.mxu0 %v3032
    %v3623 = vpop.f32.mrf.mxu0
    %v3624 = vadd.f32 %v798, %v3623
    %3625 = vdwg.mxu0
    %3626 = vmatpush.msra.mxu0 %v791
    %3627 = vmatpush.msra.mxu0 %v787
    %3628 = vmatpush.msra.mxu0 %v783
    %3629 = vmatpush.msra.mxu0 %v779
    %3630 = vmatpush.msra.mxu0 %v775
    %3631 = vmatpush.msra.mxu0 %v771
    %3632 = vmatpush.msra.mxu0 %v767
    %3633 = vmatpush.msra.mxu0 %v763
    %3634 = vmatpush.msra.mxu0 %v759
    %3635 = vmatpush.msra.mxu0 %v755
    %3636 = vmatpush.msra.mxu0 %v751
    %3637 = vmatpush.msra.mxu0 %v747
    %3638 = vmatpush.msra.mxu0 %v743
    %3639 = vmatpush.msra.mxu0 %v739
    %3640 = vmatpush.msra.mxu0 %v735
    %3641 = vmatpush.msra.mxu0 %v731
    %3642 = vmatmul.f32.gmra.mxu0 %v3207
    %v3643 = vpop.f32.mrf.mxu0
    %v3644 = vadd.f32 %v3624, %v3643
    %3645 = vdwg.mxu0
    %v3646 = vmul.f32 %v3524, 0.5
    %v3647 = vtanh.pop %v3646
    %v3648 = vmul.f32 %v3647, 0.5
    %v3649 = vadd.f32 %v3648, 0.5
    %v3650 = vmul.f32 %v3564, 0.5
    %v3651 = vtanh.pop %v3650
    %v3652 = vmul.f32 %v3651, 0.5
    %v3653 = vadd.f32 %v3652, 0.5
    %v3654 = vmul.f32 %v3649, %v3644
    %v3655 = vadd.f32 %v3604, %v3654
    %v3656 = vtanh.pop %v3655
    %v3657 = vsub.f32 1.0, %v3653
    %v3658 = vmul.f32 %v3657, %v3656
    %v3659 = vmul.f32 %v3653, %v3207
    %v3660 = vadd.f32 %v3658, %v3659
    %3661 = vmatpush.msra.mxu0 %v1317
    %3662 = vmatpush.msra.mxu0 %v1313
    %3663 = vmatpush.msra.mxu0 %v1309
    %3664 = vmatpush.msra.mxu0 %v1305
    %3665 = vmatpush.msra.mxu0 %v1301
    %3666 = vmatpush.msra.mxu0 %v1297
    %3667 = vmatpush.msra.mxu0 %v1293
    %3668 = vmatpush.msra.mxu0 %v1289
    %3669 = vmatpush.msra.mxu0 %v1285
    %3670 = vmatpush.msra.mxu0 %v1281
    %3671 = vmatpush.msra.mxu0 %v1277
    %3672 = vmatpush.msra.mxu0 %v1273
    %3673 = vmatpush.msra.mxu0 %v1269
    %3674 = vmatpush.msra.mxu0 %v1265
    %3675 = vmatpush.msra.mxu0 %v1261
    %3676 = vmatpush.msra.mxu0 %v1257
    %3677 = vmatmul.f32.gmra.mxu0 %v3207
    %v3678 = vpop.f32.mrf.mxu0
    %v3679 = vadd.f32 %v1388, %v3678
    %3680 = vdwg.mxu0
    %3681 = vmatpush.msra.mxu0 %v1381
    %3682 = vmatpush.msra.mxu0 %v1377
    %3683 = vmatpush.msra.mxu0 %v1373
    %3684 = vmatpush.msra.mxu0 %v1369
    %3685 = vmatpush.msra.mxu0 %v1365
    %3686 = vmatpush.msra.mxu0 %v1361
    %3687 = vmatpush.msra.mxu0 %v1357
    %3688 = vmatpush.msra.mxu0 %v1353
    %3689 = vmatpush.msra.mxu0 %v1349
    %3690 = vmatpush.msra.mxu0 %v1345
    %3691 = vmatpush.msra.mxu0 %v1341
    %3692 = vmatpush.msra.mxu0 %v1337
    %3693 = vmatpush.msra.mxu0 %v1333
    %3694 = vmatpush.msra.mxu0 %v1329
    %3695 = vmatpush.msra.mxu0 %v1325
    %3696 = vmatpush.msra.mxu0 %v1321
    %3697 = vmatmul.f32.gmra.mxu0 %v3382
    %v3698 = vpop.f32.mrf.mxu0
    %v3699 = vadd.f32 %v3679, %v3698
    %3700 = vdwg.mxu0
    %3701 = vmatpush.msra.mxu0 %v1318
    %3702 = vmatpush.msra.mxu0 %v1314
    %3703 = vmatpush.msra.mxu0 %v1310
    %3704 = vmatpush.msra.mxu0 %v1306
    %3705 = vmatpush.msra.mxu0 %v1302
    %3706 = vmatpush.msra.mxu0 %v1298
    %3707 = vmatpush.msra.mxu0 %v1294
    %3708 = vmatpush.msra.mxu0 %v1290
    %3709 = vmatpush.msra.mxu0 %v1286
    %3710 = vmatpush.msra.mxu0 %v1282
    %3711 = vmatpush.msra.mxu0 %v1278
    %3712 = vmatpush.msra.mxu0 %v1274
    %3713 = vmatpush.msra.mxu0 %v1270
    %3714 = vmatpush.msra.mxu0 %v1266
    %3715 = vmatpush.msra.mxu0 %v1262
    %3716 = vmatpush.msra.mxu0 %v1258
    %3717 = vmatmul.f32.gmra.mxu0 %v3207
    %v3718 = vpop.f32.mrf.mxu0
    %v3719 = vadd.f32 %v1389, %v3718
    %3720 = vdwg.mxu0
    %3721 = vmatpush.msra.mxu0 %v1382
    %3722 = vmatpush.msra.mxu0 %v1378
    %3723 = vmatpush.msra.mxu0 %v1374
    %3724 = vmatpush.msra.mxu0 %v1370
    %3725 = vmatpush.msra.mxu0 %v1366
    %3726 = vmatpush.msra.mxu0 %v1362
    %3727 = vmatpush.msra.mxu0 %v1358
    %3728 = vmatpush.msra.mxu0 %v1354
    %3729 = vmatpush.msra.mxu0 %v1350
    %3730 = vmatpush.msra.mxu0 %v1346
    %3731 = vmatpush.msra.mxu0 %v1342
    %3732 = vmatpush.msra.mxu0 %v1338
    %3733 = vmatpush.msra.mxu0 %v1334
    %3734 = vmatpush.msra.mxu0 %v1330
    %3735 = vmatpush.msra.mxu0 %v1326
    %3736 = vmatpush.msra.mxu0 %v1322
    %3737 = vmatmul.f32.gmra.mxu0 %v3382
    %v3738 = vpop.f32.mrf.mxu0
    %v3739 = vadd.f32 %v3719, %v3738
    %3740 = vdwg.mxu0
    %3741 = vmatpush.msra.mxu0 %v1319
    %3742 = vmatpush.msra.mxu0 %v1315
    %3743 = vmatpush.msra.mxu0 %v1311
    %3744 = vmatpush.msra.mxu0 %v1307
    %3745 = vmatpush.msra.mxu0 %v1303
    %3746 = vmatpush.msra.mxu0 %v1299
    %3747 = vmatpush.msra.mxu0 %v1295
    %3748 = vmatpush.msra.mxu0 %v1291
    %3749 = vmatpush.msra.mxu0 %v1287
    %3750 = vmatpush.msra.mxu0 %v1283
    %3751 = vmatpush.msra.mxu0 %v1279
    %3752 = vmatpush.msra.mxu0 %v1275
    %3753 = vmatpush.msra.mxu0 %v1271
    %3754 = vmatpush.msra.mxu0 %v1267
    %3755 = vmatpush.msra.mxu0 %v1263
    %3756 = vmatpush.msra.mxu0 %v1259
    %3757 = vmatmul.f32.gmra.mxu0 %v3207
    %v3758 = vpop.f32.mrf.mxu0
    %v3759 = vadd.f32 %v1390, %v3758
    %3760 = vdwg.mxu0
    %3761 = vmatpush.msra.mxu0 %v1383
    %3762 = vmatpush.msra.mxu0 %v1379
    %3763 = vmatpush.msra.mxu0 %v1375
    %3764 = vmatpush.msra.mxu0 %v1371
    %3765 = vmatpush.msra.mxu0 %v1367
    %3766 = vmatpush.msra.mxu0 %v1363
    %3767 = vmatpush.msra.mxu0 %v1359
    %3768 = vmatpush.msra.mxu0 %v1355
    %3769 = vmatpush.msra.mxu0 %v1351
    %3770 = vmatpush.msra.mxu0 %v1347
    %3771 = vmatpush.msra.mxu0 %v1343
    %3772 = vmatpush.msra.mxu0 %v1339
    %3773 = vmatpush.msra.mxu0 %v1335
    %3774 = vmatpush.msra.mxu0 %v1331
    %3775 = vmatpush.msra.mxu0 %v1327
    %3776 = vmatpush.msra.mxu0 %v1323
    %3777 = vmatmul.f32.gmra.mxu0 %v3382
    %v3778 = vpop.f32.mrf.mxu0
    %v3779 = vadd.f32 %v3759, %v3778
    %3780 = vdwg.mxu0
    %3781 = vmatpush.msra.mxu0 %v1320
    %3782 = vmatpush.msra.mxu0 %v1316
    %3783 = vmatpush.msra.mxu0 %v1312
    %3784 = vmatpush.msra.mxu0 %v1308
    %3785 = vmatpush.msra.mxu0 %v1304
    %3786 = vmatpush.msra.mxu0 %v1300
    %3787 = vmatpush.msra.mxu0 %v1296
    %3788 = vmatpush.msra.mxu0 %v1292
    %3789 = vmatpush.msra.mxu0 %v1288
    %3790 = vmatpush.msra.mxu0 %v1284
    %3791 = vmatpush.msra.mxu0 %v1280
    %3792 = vmatpush.msra.mxu0 %v1276
    %3793 = vmatpush.msra.mxu0 %v1272
    %3794 = vmatpush.msra.mxu0 %v1268
    %3795 = vmatpush.msra.mxu0 %v1264
    %3796 = vmatpush.msra.mxu0 %v1260
    %3797 = vmatmul.f32.gmra.mxu0 %v3207
    %v3798 = vpop.f32.mrf.mxu0
    %v3799 = vadd.f32 %v1391, %v3798
    %3800 = vdwg.mxu0
    %3801 = vmatpush.msra.mxu0 %v1384
    %3802 = vmatpush.msra.mxu0 %v1380
    %3803 = vmatpush.msra.mxu0 %v1376
    %3804 = vmatpush.msra.mxu0 %v1372
    %3805 = vmatpush.msra.mxu0 %v1368
    %3806 = vmatpush.msra.mxu0 %v1364
    %3807 = vmatpush.msra.mxu0 %v1360
    %3808 = vmatpush.msra.mxu0 %v1356
    %3809 = vmatpush.msra.mxu0 %v1352
    %3810 = vmatpush.msra.mxu0 %v1348
    %3811 = vmatpush.msra.mxu0 %v1344
    %3812 = vmatpush.msra.mxu0 %v1340
    %3813 = vmatpush.msra.mxu0 %v1336
    %3814 = vmatpush.msra.mxu0 %v1332
    %3815 = vmatpush.msra.mxu0 %v1328
    %3816 = vmatpush.msra.mxu0 %v1324
    %3817 = vmatmul.f32.gmra.mxu0 %v3382
    %v3818 = vpop.f32.mrf.mxu0
    %v3819 = vadd.f32 %v3799, %v3818
    %3820 = vdwg.mxu0
    %v3821 = vmul.f32 %v3699, 0.5
    %v3822 = vtanh.pop %v3821
    %v3823 = vmul.f32 %v3822, 0.5
    %v3824 = vadd.f32 %v3823, 0.5
    %v3825 = vmul.f32 %v3739, 0.5
    %v3826 = vtanh.pop %v3825
    %v3827 = vmul.f32 %v3826, 0.5
    %v3828 = vadd.f32 %v3827, 0.5
    %v3829 = vmul.f32 %v3824, %v3819
    %v3830 = vadd.f32 %v3779, %v3829
    %v3831 = vtanh.pop %v3830
    %v3832 = vsub.f32 1.0, %v3828
    %v3833 = vmul.f32 %v3832, %v3831
    %v3834 = vmul.f32 %v3828, %v3382
    %v3835 = vadd.f32 %v3833, %v3834
    %3836 = vmatpush.msra.mxu0 %v724
    %3837 = vmatpush.msra.mxu0 %v720
    %3838 = vmatpush.msra.mxu0 %v716
    %3839 = vmatpush.msra.mxu0 %v712
    %3840 = vmatpush.msra.mxu0 %v708
    %3841 = vmatpush.msra.mxu0 %v704
    %3842 = vmatpush.msra.mxu0 %v700
    %3843 = vmatpush.msra.mxu0 %v696
    %3844 = vmatpush.msra.mxu0 %v692
    %3845 = vmatpush.msra.mxu0 %v688
    %3846 = vmatpush.msra.mxu0 %v684
    %3847 = vmatpush.msra.mxu0 %v680
    %3848 = vmatpush.msra.mxu0 %v676
    %3849 = vmatpush.msra.mxu0 %v672
    %3850 = vmatpush.msra.mxu0 %v668
    %3851 = vmatpush.msra.mxu0 %v664
    %3852 = vmatmul.f32.gmra.mxu0 %v3485
    %v3853 = vpop.f32.mrf.mxu0
    %v3854 = vadd.f32 %v795, %v3853
    %3855 = vdwg.mxu0
    %3856 = vmatpush.msra.mxu0 %v788
    %3857 = vmatpush.msra.mxu0 %v784
    %3858 = vmatpush.msra.mxu0 %v780
    %3859 = vmatpush.msra.mxu0 %v776
    %3860 = vmatpush.msra.mxu0 %v772
    %3861 = vmatpush.msra.mxu0 %v768
    %3862 = vmatpush.msra.mxu0 %v764
    %3863 = vmatpush.msra.mxu0 %v760
    %3864 = vmatpush.msra.mxu0 %v756
    %3865 = vmatpush.msra.mxu0 %v752
    %3866 = vmatpush.msra.mxu0 %v748
    %3867 = vmatpush.msra.mxu0 %v744
    %3868 = vmatpush.msra.mxu0 %v740
    %3869 = vmatpush.msra.mxu0 %v736
    %3870 = vmatpush.msra.mxu0 %v732
    %3871 = vmatpush.msra.mxu0 %v728
    %3872 = vmatmul.f32.gmra.mxu0 %v3660
    %v3873 = vpop.f32.mrf.mxu0
    %v3874 = vadd.f32 %v3854, %v3873
    %3875 = vdwg.mxu0
    %3876 = vmatpush.msra.mxu0 %v725
    %3877 = vmatpush.msra.mxu0 %v721
    %3878 = vmatpush.msra.mxu0 %v717
    %3879 = vmatpush.msra.mxu0 %v713
    %3880 = vmatpush.msra.mxu0 %v709
    %3881 = vmatpush.msra.mxu0 %v705
    %3882 = vmatpush.msra.mxu0 %v701
    %3883 = vmatpush.msra.mxu0 %v697
    %3884 = vmatpush.msra.mxu0 %v693
    %3885 = vmatpush.msra.mxu0 %v689
    %3886 = vmatpush.msra.mxu0 %v685
    %3887 = vmatpush.msra.mxu0 %v681
    %3888 = vmatpush.msra.mxu0 %v677
    %3889 = vmatpush.msra.mxu0 %v673
    %3890 = vmatpush.msra.mxu0 %v669
    %3891 = vmatpush.msra.mxu0 %v665
    %3892 = vmatmul.f32.gmra.mxu0 %v3485
    %v3893 = vpop.f32.mrf.mxu0
    %v3894 = vadd.f32 %v796, %v3893
    %3895 = vdwg.mxu0
    %3896 = vmatpush.msra.mxu0 %v789
    %3897 = vmatpush.msra.mxu0 %v785
    %3898 = vmatpush.msra.mxu0 %v781
    %3899 = vmatpush.msra.mxu0 %v777
    %3900 = vmatpush.msra.mxu0 %v773
    %3901 = vmatpush.msra.mxu0 %v769
    %3902 = vmatpush.msra.mxu0 %v765
    %3903 = vmatpush.msra.mxu0 %v761
    %3904 = vmatpush.msra.mxu0 %v757
    %3905 = vmatpush.msra.mxu0 %v753
    %3906 = vmatpush.msra.mxu0 %v749
    %3907 = vmatpush.msra.mxu0 %v745
    %3908 = vmatpush.msra.mxu0 %v741
    %3909 = vmatpush.msra.mxu0 %v737
    %3910 = vmatpush.msra.mxu0 %v733
    %3911 = vmatpush.msra.mxu0 %v729
    %3912 = vmatmul.f32.gmra.mxu0 %v3660
    %v3913 = vpop.f32.mrf.mxu0
    %v3914 = vadd.f32 %v3894, %v3913
    %3915 = vdwg.mxu0
    %3916 = vmatpush.msra.mxu0 %v726
    %3917 = vmatpush.msra.mxu0 %v722
    %3918 = vmatpush.msra.mxu0 %v718
    %3919 = vmatpush.msra.mxu0 %v714
    %3920 = vmatpush.msra.mxu0 %v710
    %3921 = vmatpush.msra.mxu0 %v706
    %3922 = vmatpush.msra.mxu0 %v702
    %3923 = vmatpush.msra.mxu0 %v698
    %3924 = vmatpush.msra.mxu0 %v694
    %3925 = vmatpush.msra.mxu0 %v690
    %3926 = vmatpush.msra.mxu0 %v686
    %3927 = vmatpush.msra.mxu0 %v682
    %3928 = vmatpush.msra.mxu0 %v678
    %3929 = vmatpush.msra.mxu0 %v674
    %3930 = vmatpush.msra.mxu0 %v670
    %3931 = vmatpush.msra.mxu0 %v666
    %3932 = vmatmul.f32.gmra.mxu0 %v3485
    %v3933 = vpop.f32.mrf.mxu0
    %v3934 = vadd.f32 %v797, %v3933
    %3935 = vdwg.mxu0
    %3936 = vmatpush.msra.mxu0 %v790
    %3937 = vmatpush.msra.mxu0 %v786
    %3938 = vmatpush.msra.mxu0 %v782
    %3939 = vmatpush.msra.mxu0 %v778
    %3940 = vmatpush.msra.mxu0 %v774
    %3941 = vmatpush.msra.mxu0 %v770
    %3942 = vmatpush.msra.mxu0 %v766
    %3943 = vmatpush.msra.mxu0 %v762
    %3944 = vmatpush.msra.mxu0 %v758
    %3945 = vmatpush.msra.mxu0 %v754
    %3946 = vmatpush.msra.mxu0 %v750
    %3947 = vmatpush.msra.mxu0 %v746
    %3948 = vmatpush.msra.mxu0 %v742
    %3949 = vmatpush.msra.mxu0 %v738
    %3950 = vmatpush.msra.mxu0 %v734
    %3951 = vmatpush.msra.mxu0 %v730
    %3952 = vmatmul.f32.gmra.mxu0 %v3660
    %v3953 = vpop.f32.mrf.mxu0
    %v3954 = vadd.f32 %v3934, %v3953
    %3955 = vdwg.mxu0
    %3956 = vmatpush.msra.mxu0 %v727
    %3957 = vmatpush.msra.mxu0 %v723
    %3958 = vmatpush.msra.mxu0 %v719
    %3959 = vmatpush.msra.mxu0 %v715
    %3960 = vmatpush.msra.mxu0 %v711
    %3961 = vmatpush.msra.mxu0 %v707
    %3962 = vmatpush.msra.mxu0 %v703
    %3963 = vmatpush.msra.mxu0 %v699
    %3964 = vmatpush.msra.mxu0 %v695
    %3965 = vmatpush.msra.mxu0 %v691
    %3966 = vmatpush.msra.mxu0 %v687
    %3967 = vmatpush.msra.mxu0 %v683
    %3968 = vmatpush.msra.mxu0 %v679
    %3969 = vmatpush.msra.mxu0 %v675
    %3970 = vmatpush.msra.mxu0 %v671
    %3971 = vmatpush.msra.mxu0 %v667
    %3972 = vmatmul.f32.gmra.mxu0 %v3485
    %v3973 = vpop.f32.mrf.mxu0
    %v3974 = vadd.f32 %v798, %v3973
    %3975 = vdwg.mxu0
    %3976 = vmatpush.msra.mxu0 %v791
    %3977 = vmatpush.msra.mxu0 %v787
    %3978 = vmatpush.msra.mxu0 %v783
    %3979 = vmatpush.msra.mxu0 %v779
    %3980 = vmatpush.msra.mxu0 %v775
    %3981 = vmatpush.msra.mxu0 %v771
    %3982 = vmatpush.msra.mxu0 %v767
    %3983 = vmatpush.msra.mxu0 %v763
    %3984 = vmatpush.msra.mxu0 %v759
    %3985 = vmatpush.msra.mxu0 %v755
    %3986 = vmatpush.msra.mxu0 %v751
    %3987 = vmatpush.msra.mxu0 %v747
    %3988 = vmatpush.msra.mxu0 %v743
    %3989 = vmatpush.msra.mxu0 %v739
    %3990 = vmatpush.msra.mxu0 %v735
    %3991 = vmatpush.msra.mxu0 %v731
    %3992 = vmatmul.f32.gmra.mxu0 %v3660
    %v3993 = vpop.f32.mrf.mxu0
    %v3994 = vadd.f32 %v3974, %v3993
    %3995 = vdwg.mxu0
    %v3996 = vmul.f32 %v3874, 0.5
    %v3997 = vtanh.pop %v3996
    %v3998 = vmul.f32 %v3997, 0.5
    %v3999 = vadd.f32 %v3998, 0.5
    %v4000 = vmul.f32 %v3914, 0.5
    %v4001 = vtanh.pop %v4000
    %v4002 = vmul.f32 %v4001, 0.5
    %v4003 = vadd.f32 %v4002, 0.5
    %v4004 = vmul.f32 %v3999, %v3994
    %v4005 = vadd.f32 %v3954, %v4004
    %v4006 = vtanh.pop %v4005
    %v4007 = vsub.f32 1.0, %v4003
    %v4008 = vmul.f32 %v4007, %v4006
    %v4009 = vmul.f32 %v4003, %v3660
    %v4010 = vadd.f32 %v4008, %v4009
    %4011 = vmatpush.msra.mxu0 %v1317
    %4012 = vmatpush.msra.mxu0 %v1313
    %4013 = vmatpush.msra.mxu0 %v1309
    %4014 = vmatpush.msra.mxu0 %v1305
    %4015 = vmatpush.msra.mxu0 %v1301
    %4016 = vmatpush.msra.mxu0 %v1297
    %4017 = vmatpush.msra.mxu0 %v1293
    %4018 = vmatpush.msra.mxu0 %v1289
    %4019 = vmatpush.msra.mxu0 %v1285
    %4020 = vmatpush.msra.mxu0 %v1281
    %4021 = vmatpush.msra.mxu0 %v1277
    %4022 = vmatpush.msra.mxu0 %v1273
    %4023 = vmatpush.msra.mxu0 %v1269
    %4024 = vmatpush.msra.mxu0 %v1265
    %4025 = vmatpush.msra.mxu0 %v1261
    %4026 = vmatpush.msra.mxu0 %v1257
    %4027 = vmatmul.f32.gmra.mxu0 %v3660
    %v4028 = vpop.f32.mrf.mxu0
    %v4029 = vadd.f32 %v1388, %v4028
    %4030 = vdwg.mxu0
    %4031 = vmatpush.msra.mxu0 %v1381
    %4032 = vmatpush.msra.mxu0 %v1377
    %4033 = vmatpush.msra.mxu0 %v1373
    %4034 = vmatpush.msra.mxu0 %v1369
    %4035 = vmatpush.msra.mxu0 %v1365
    %4036 = vmatpush.msra.mxu0 %v1361
    %4037 = vmatpush.msra.mxu0 %v1357
    %4038 = vmatpush.msra.mxu0 %v1353
    %4039 = vmatpush.msra.mxu0 %v1349
    %4040 = vmatpush.msra.mxu0 %v1345
    %4041 = vmatpush.msra.mxu0 %v1341
    %4042 = vmatpush.msra.mxu0 %v1337
    %4043 = vmatpush.msra.mxu0 %v1333
    %4044 = vmatpush.msra.mxu0 %v1329
    %4045 = vmatpush.msra.mxu0 %v1325
    %4046 = vmatpush.msra.mxu0 %v1321
    %4047 = vmatmul.f32.gmra.mxu0 %v3835
    %v4048 = vpop.f32.mrf.mxu0
    %v4049 = vadd.f32 %v4029, %v4048
    %4050 = vdwg.mxu0
    %4051 = vmatpush.msra.mxu0 %v1318
    %4052 = vmatpush.msra.mxu0 %v1314
    %4053 = vmatpush.msra.mxu0 %v1310
    %4054 = vmatpush.msra.mxu0 %v1306
    %4055 = vmatpush.msra.mxu0 %v1302
    %4056 = vmatpush.msra.mxu0 %v1298
    %4057 = vmatpush.msra.mxu0 %v1294
    %4058 = vmatpush.msra.mxu0 %v1290
    %4059 = vmatpush.msra.mxu0 %v1286
    %4060 = vmatpush.msra.mxu0 %v1282
    %4061 = vmatpush.msra.mxu0 %v1278
    %4062 = vmatpush.msra.mxu0 %v1274
    %4063 = vmatpush.msra.mxu0 %v1270
    %4064 = vmatpush.msra.mxu0 %v1266
    %4065 = vmatpush.msra.mxu0 %v1262
    %4066 = vmatpush.msra.mxu0 %v1258
    %4067 = vmatmul.f32.gmra.mxu0 %v3660
    %v4068 = vpop.f32.mrf.mxu0
    %v4069 = vadd.f32 %v1389, %v4068
    %4070 = vdwg.mxu0
    %4071 = vmatpush.msra.mxu0 %v1382
    %4072 = vmatpush.msra.mxu0 %v1378
    %4073 = vmatpush.msra.mxu0 %v1374
    %4074 = vmatpush.msra.mxu0 %v1370
    %4075 = vmatpush.msra.mxu0 %v1366
    %4076 = vmatpush.msra.mxu0 %v1362
    %4077 = vmatpush.msra.mxu0 %v1358
    %4078 = vmatpush.msra.mxu0 %v1354
    %4079 = vmatpush.msra.mxu0 %v1350
    %4080 = vmatpush.msra.mxu0 %v1346
    %4081 = vmatpush.msra.mxu0 %v1342
    %4082 = vmatpush.msra.mxu0 %v1338
    %4083 = vmatpush.msra.mxu0 %v1334
    %4084 = vmatpush.msra.mxu0 %v1330
    %4085 = vmatpush.msra.mxu0 %v1326
    %4086 = vmatpush.msra.mxu0 %v1322
    %4087 = vmatmul.f32.gmra.mxu0 %v3835
    %v4088 = vpop.f32.mrf.mxu0
    %v4089 = vadd.f32 %v4069, %v4088
    %4090 = vdwg.mxu0
    %4091 = vmatpush.msra.mxu0 %v1319
    %4092 = vmatpush.msra.mxu0 %v1315
    %4093 = vmatpush.msra.mxu0 %v1311
    %4094 = vmatpush.msra.mxu0 %v1307
    %4095 = vmatpush.msra.mxu0 %v1303
    %4096 = vmatpush.msra.mxu0 %v1299
    %4097 = vmatpush.msra.mxu0 %v1295
    %4098 = vmatpush.msra.mxu0 %v1291
    %4099 = vmatpush.msra.mxu0 %v1287
    %4100 = vmatpush.msra.mxu0 %v1283
    %4101 = vmatpush.msra.mxu0 %v1279
    %4102 = vmatpush.msra.mxu0 %v1275
    %4103 = vmatpush.msra.mxu0 %v1271
    %4104 = vmatpush.msra.mxu0 %v1267
    %4105 = vmatpush.msra.mxu0 %v1263
    %4106 = vmatpush.msra.mxu0 %v1259
    %4107 = vmatmul.f32.gmra.mxu0 %v3660
    %v4108 = vpop.f32.mrf.mxu0
    %v4109 = vadd.f32 %v1390, %v4108
    %4110 = vdwg.mxu0
    %4111 = vmatpush.msra.mxu0 %v1383
    %4112 = vmatpush.msra.mxu0 %v1379
    %4113 = vmatpush.msra.mxu0 %v1375
    %4114 = vmatpush.msra.mxu0 %v1371
    %4115 = vmatpush.msra.mxu0 %v1367
    %4116 = vmatpush.msra.mxu0 %v1363
    %4117 = vmatpush.msra.mxu0 %v1359
    %4118 = vmatpush.msra.mxu0 %v1355
    %4119 = vmatpush.msra.mxu0 %v1351
    %4120 = vmatpush.msra.mxu0 %v1347
    %4121 = vmatpush.msra.mxu0 %v1343
    %4122 = vmatpush.msra.mxu0 %v1339
    %4123 = vmatpush.msra.mxu0 %v1335
    %4124 = vmatpush.msra.mxu0 %v1331
    %4125 = vmatpush.msra.mxu0 %v1327
    %4126 = vmatpush.msra.mxu0 %v1323
    %4127 = vmatmul.f32.gmra.mxu0 %v3835
    %v4128 = vpop.f32.mrf.mxu0
    %v4129 = vadd.f32 %v4109, %v4128
    %4130 = vdwg.mxu0
    %4131 = vmatpush.msra.mxu0 %v1320
    %4132 = vmatpush.msra.mxu0 %v1316
    %4133 = vmatpush.msra.mxu0 %v1312
    %4134 = vmatpush.msra.mxu0 %v1308
    %4135 = vmatpush.msra.mxu0 %v1304
    %4136 = vmatpush.msra.mxu0 %v1300
    %4137 = vmatpush.msra.mxu0 %v1296
    %4138 = vmatpush.msra.mxu0 %v1292
    %4139 = vmatpush.msra.mxu0 %v1288
    %4140 = vmatpush.msra.mxu0 %v1284
    %4141 = vmatpush.msra.mxu0 %v1280
    %4142 = vmatpush.msra.mxu0 %v1276
    %4143 = vmatpush.msra.mxu0 %v1272
    %4144 = vmatpush.msra.mxu0 %v1268
    %4145 = vmatpush.msra.mxu0 %v1264
    %4146 = vmatpush.msra.mxu0 %v1260
    %4147 = vmatmul.f32.gmra.mxu0 %v3660
    %v4148 = vpop.f32.mrf.mxu0
    %v4149 = vadd.f32 %v1391, %v4148
    %4150 = vdwg.mxu0
    %4151 = vmatpush.msra.mxu0 %v1384
    %4152 = vmatpush.msra.mxu0 %v1380
    %4153 = vmatpush.msra.mxu0 %v1376
    %4154 = vmatpush.msra.mxu0 %v1372
    %4155 = vmatpush.msra.mxu0 %v1368
    %4156 = vmatpush.msra.mxu0 %v1364
    %4157 = vmatpush.msra.mxu0 %v1360
    %4158 = vmatpush.msra.mxu0 %v1356
    %4159 = vmatpush.msra.mxu0 %v1352
    %4160 = vmatpush.msra.mxu0 %v1348
    %4161 = vmatpush.msra.mxu0 %v1344
    %4162 = vmatpush.msra.mxu0 %v1340
    %4163 = vmatpush.msra.mxu0 %v1336
    %4164 = vmatpush.msra.mxu0 %v1332
    %4165 = vmatpush.msra.mxu0 %v1328
    %4166 = vmatpush.msra.mxu0 %v1324
    %4167 = vmatmul.f32.gmra.mxu0 %v3835
    %v4168 = vpop.f32.mrf.mxu0
    %v4169 = vadd.f32 %v4149, %v4168
    %4170 = vdwg.mxu0
    %v4171 = vmul.f32 %v4049, 0.5
    %v4172 = vtanh.pop %v4171
    %v4173 = vmul.f32 %v4172, 0.5
    %v4174 = vadd.f32 %v4173, 0.5
    %v4175 = vmul.f32 %v4089, 0.5
    %v4176 = vtanh.pop %v4175
    %v4177 = vmul.f32 %v4176, 0.5
    %v4178 = vadd.f32 %v4177, 0.5
    %v4179 = vmul.f32 %v4174, %v4169
    %v4180 = vadd.f32 %v4129, %v4179
    %v4181 = vtanh.pop %v4180
    %v4182 = vsub.f32 1.0, %v4178
    %v4183 = vmul.f32 %v4182, %v4181
    %v4184 = vmul.f32 %v4178, %v3835
    %v4185 = vadd.f32 %v4183, %v4184
    %4186 = vmatpush.msra.mxu0 %v1317
    %4187 = vmatpush.msra.mxu0 %v1313
    %4188 = vmatpush.msra.mxu0 %v1309
    %4189 = vmatpush.msra.mxu0 %v1305
    %4190 = vmatpush.msra.mxu0 %v1301
    %4191 = vmatpush.msra.mxu0 %v1297
    %4192 = vmatpush.msra.mxu0 %v1293
    %4193 = vmatpush.msra.mxu0 %v1289
    %4194 = vmatpush.msra.mxu0 %v1285
    %4195 = vmatpush.msra.mxu0 %v1281
    %4196 = vmatpush.msra.mxu0 %v1277
    %4197 = vmatpush.msra.mxu0 %v1273
    %4198 = vmatpush.msra.mxu0 %v1269
    %4199 = vmatpush.msra.mxu0 %v1265
    %4200 = vmatpush.msra.mxu0 %v1261
    %4201 = vmatpush.msra.mxu0 %v1257
    %4202 = vmatmul.f32.gmra.mxu0 %v4010
    %v4203 = vpop.f32.mrf.mxu0
    %v4204 = vadd.f32 %v1388, %v4203
    %4205 = vdwg.mxu0
    %4206 = vmatpush.msra.mxu0 %v1381
    %4207 = vmatpush.msra.mxu0 %v1377
    %4208 = vmatpush.msra.mxu0 %v1373
    %4209 = vmatpush.msra.mxu0 %v1369
    %4210 = vmatpush.msra.mxu0 %v1365
    %4211 = vmatpush.msra.mxu0 %v1361
    %4212 = vmatpush.msra.mxu0 %v1357
    %4213 = vmatpush.msra.mxu0 %v1353
    %4214 = vmatpush.msra.mxu0 %v1349
    %4215 = vmatpush.msra.mxu0 %v1345
    %4216 = vmatpush.msra.mxu0 %v1341
    %4217 = vmatpush.msra.mxu0 %v1337
    %4218 = vmatpush.msra.mxu0 %v1333
    %4219 = vmatpush.msra.mxu0 %v1329
    %4220 = vmatpush.msra.mxu0 %v1325
    %4221 = vmatpush.msra.mxu0 %v1321
    %4222 = vmatmul.f32.gmra.mxu0 %v4185
    %v4223 = vpop.f32.mrf.mxu0
    %v4224 = vadd.f32 %v4204, %v4223
    %4225 = vdwg.mxu0
    %4226 = vmatpush.msra.mxu0 %v1318
    %4227 = vmatpush.msra.mxu0 %v1314
    %4228 = vmatpush.msra.mxu0 %v1310
    %4229 = vmatpush.msra.mxu0 %v1306
    %4230 = vmatpush.msra.mxu0 %v1302
    %4231 = vmatpush.msra.mxu0 %v1298
    %4232 = vmatpush.msra.mxu0 %v1294
    %4233 = vmatpush.msra.mxu0 %v1290
    %4234 = vmatpush.msra.mxu0 %v1286
    %4235 = vmatpush.msra.mxu0 %v1282
    %4236 = vmatpush.msra.mxu0 %v1278
    %4237 = vmatpush.msra.mxu0 %v1274
    %4238 = vmatpush.msra.mxu0 %v1270
    %4239 = vmatpush.msra.mxu0 %v1266
    %4240 = vmatpush.msra.mxu0 %v1262
    %4241 = vmatpush.msra.mxu0 %v1258
    %4242 = vmatmul.f32.gmra.mxu0 %v4010
    %v4243 = vpop.f32.mrf.mxu0
    %v4244 = vadd.f32 %v1389, %v4243
    %4245 = vdwg.mxu0
    %4246 = vmatpush.msra.mxu0 %v1382
    %4247 = vmatpush.msra.mxu0 %v1378
    %4248 = vmatpush.msra.mxu0 %v1374
    %4249 = vmatpush.msra.mxu0 %v1370
    %4250 = vmatpush.msra.mxu0 %v1366
    %4251 = vmatpush.msra.mxu0 %v1362
    %4252 = vmatpush.msra.mxu0 %v1358
    %4253 = vmatpush.msra.mxu0 %v1354
    %4254 = vmatpush.msra.mxu0 %v1350
    %4255 = vmatpush.msra.mxu0 %v1346
    %4256 = vmatpush.msra.mxu0 %v1342
    %4257 = vmatpush.msra.mxu0 %v1338
    %4258 = vmatpush.msra.mxu0 %v1334
    %4259 = vmatpush.msra.mxu0 %v1330
    %4260 = vmatpush.msra.mxu0 %v1326
    %4261 = vmatpush.msra.mxu0 %v1322
    %4262 = vmatmul.f32.gmra.mxu0 %v4185
    %v4263 = vpop.f32.mrf.mxu0
    %v4264 = vadd.f32 %v4244, %v4263
    %4265 = vdwg.mxu0
    %4266 = vmatpush.msra.mxu0 %v1319
    %4267 = vmatpush.msra.mxu0 %v1315
    %4268 = vmatpush.msra.mxu0 %v1311
    %4269 = vmatpush.msra.mxu0 %v1307
    %4270 = vmatpush.msra.mxu0 %v1303
    %4271 = vmatpush.msra.mxu0 %v1299
    %4272 = vmatpush.msra.mxu0 %v1295
    %4273 = vmatpush.msra.mxu0 %v1291
    %4274 = vmatpush.msra.mxu0 %v1287
    %4275 = vmatpush.msra.mxu0 %v1283
    %4276 = vmatpush.msra.mxu0 %v1279
    %4277 = vmatpush.msra.mxu0 %v1275
    %4278 = vmatpush.msra.mxu0 %v1271
    %4279 = vmatpush.msra.mxu0 %v1267
    %4280 = vmatpush.msra.mxu0 %v1263
    %4281 = vmatpush.msra.mxu0 %v1259
    %4282 = vmatmul.f32.gmra.mxu0 %v4010
    %v4283 = vpop.f32.mrf.mxu0
    %v4284 = vadd.f32 %v1390, %v4283
    %4285 = vdwg.mxu0
    %4286 = vmatpush.msra.mxu0 %v1383
    %4287 = vmatpush.msra.mxu0 %v1379
    %4288 = vmatpush.msra.mxu0 %v1375
    %4289 = vmatpush.msra.mxu0 %v1371
    %4290 = vmatpush.msra.mxu0 %v1367
    %4291 = vmatpush.msra.mxu0 %v1363
    %4292 = vmatpush.msra.mxu0 %v1359
    %4293 = vmatpush.msra.mxu0 %v1355
    %4294 = vmatpush.msra.mxu0 %v1351
    %4295 = vmatpush.msra.mxu0 %v1347
    %4296 = vmatpush.msra.mxu0 %v1343
    %4297 = vmatpush.msra.mxu0 %v1339
    %4298 = vmatpush.msra.mxu0 %v1335
    %4299 = vmatpush.msra.mxu0 %v1331
    %4300 = vmatpush.msra.mxu0 %v1327
    %4301 = vmatpush.msra.mxu0 %v1323
    %4302 = vmatmul.f32.gmra.mxu0 %v4185
    %v4303 = vpop.f32.mrf.mxu0
    %v4304 = vadd.f32 %v4284, %v4303
    %4305 = vdwg.mxu0
    %4306 = vmatpush.msra.mxu0 %v1320
    %4307 = vmatpush.msra.mxu0 %v1316
    %4308 = vmatpush.msra.mxu0 %v1312
    %4309 = vmatpush.msra.mxu0 %v1308
    %4310 = vmatpush.msra.mxu0 %v1304
    %4311 = vmatpush.msra.mxu0 %v1300
    %4312 = vmatpush.msra.mxu0 %v1296
    %4313 = vmatpush.msra.mxu0 %v1292
    %4314 = vmatpush.msra.mxu0 %v1288
    %4315 = vmatpush.msra.mxu0 %v1284
    %4316 = vmatpush.msra.mxu0 %v1280
    %4317 = vmatpush.msra.mxu0 %v1276
    %4318 = vmatpush.msra.mxu0 %v1272
    %4319 = vmatpush.msra.mxu0 %v1268
    %4320 = vmatpush.msra.mxu0 %v1264
    %4321 = vmatpush.msra.mxu0 %v1260
    %4322 = vmatmul.f32.gmra.mxu0 %v4010
    %v4323 = vpop.f32.mrf.mxu0
    %v4324 = vadd.f32 %v1391, %v4323
    %4325 = vdwg.mxu0
    %4326 = vmatpush.msra.mxu0 %v1384
    %4327 = vmatpush.msra.mxu0 %v1380
    %4328 = vmatpush.msra.mxu0 %v1376
    %4329 = vmatpush.msra.mxu0 %v1372
    %4330 = vmatpush.msra.mxu0 %v1368
    %4331 = vmatpush.msra.mxu0 %v1364
    %4332 = vmatpush.msra.mxu0 %v1360
    %4333 = vmatpush.msra.mxu0 %v1356
    %4334 = vmatpush.msra.mxu0 %v1352
    %4335 = vmatpush.msra.mxu0 %v1348
    %4336 = vmatpush.msra.mxu0 %v1344
    %4337 = vmatpush.msra.mxu0 %v1340
    %4338 = vmatpush.msra.mxu0 %v1336
    %4339 = vmatpush.msra.mxu0 %v1332
    %4340 = vmatpush.msra.mxu0 %v1328
    %4341 = vmatpush.msra.mxu0 %v1324
    %4342 = vmatmul.f32.gmra.mxu0 %v4185
    %v4343 = vpop.f32.mrf.mxu0
    %v4344 = vadd.f32 %v4324, %v4343
    %4345 = vdwg.mxu0
    %v4346 = vmul.f32 %v4224, 0.5
    %v4347 = vtanh.pop %v4346
    %v4348 = vmul.f32 %v4347, 0.5
    %v4349 = vadd.f32 %v4348, 0.5
    %v4350 = vmul.f32 %v4264, 0.5
    %v4351 = vtanh.pop %v4350
    %v4352 = vmul.f32 %v4351, 0.5
    %v4353 = vadd.f32 %v4352, 0.5
    %v4354 = vmul.f32 %v4349, %v4344
    %v4355 = vadd.f32 %v4304, %v4354
    %v4356 = vtanh.pop %v4355
    %v4357 = vsub.f32 1.0, %v4353
    %v4358 = vmul.f32 %v4357, %v4356
    %v4359 = vmul.f32 %v4353, %v4185
    %v4360 = vadd.f32 %v4358, %v4359
    %v4362 = vrot.slane %v1570, 1
    %v4365 = vrot.slane %v2476, 7
    %v4368 = vrot.slane %v2929, 6
    %v4371 = vrot.slane %v3382, 5
    %v4374 = vrot.slane %v3835, 4
    %v4377 = vrot.slane %v4185, 3
    %v4380 = vrot.slane %v4360, 2
    %vm4382 = vcmask 1040384
    %v4383 = vsel %vm4382, %v4362, %v2023
    %vm4384 = vcmask 1041408
    %v4385 = vsel %vm4384, %v4383, %v4365
    %vm4386 = vcmask 1042432
    %v4387 = vsel %vm4386, %v4385, %v4368
    %vm4388 = vcmask 1043456
    %v4389 = vsel %vm4388, %v4387, %v4371
    %vm4390 = vcmask 1044480
    %v4391 = vsel %vm4390, %v4389, %v4374
    %vm4392 = vcmask 1045504
    %v4393 = vsel %vm4392, %v4391, %v4377
    %vm4394 = vcmask 1046528
    %v4395 = vsel %vm4394, %v4393, %v4380
    %v4396 = vld [vmem:[#allocation6] sm:$0xff]
    %v4397 = vmul.f32 %v4395, %v4396
    %4398 = vst [vmem:[#allocation14] sm:$0xff] %v4397
    // Predicated region
    $region50: #{tpu_custom_call.1} parent=1 // pred_check
      _
    $region51: #{tpu_custom_call.1} parent=1 // pred_check_branch
      %4400 = sbr.rel (0) target = $region53
    $region52: #{tpu_custom_call.1} parent=1 // pred_region
      %4402 = vsyncadd [#allocation5], 0
      %s4404 = sshll.u32 [#allocation14], 4
      %s4405 = int_to_ptr.vmem [resolvable:$true] %s4404
      %s4406 = sshll.u32 %s6, 4
      %s4407 = int_to_ptr.hbm [resolvable:$true] %s4406
      %4409 = dma.vmem_to_hbm [thread:$0]  %s4405, 128, %s4407, [#allocation5]
    $region53: #{tpu_custom_call.1} parent=1 // pred_fallthru
      _
    // Predicated region
    $region54: #{tpu_custom_call.1} parent=1 // pred_check
      _
    $region55: #{tpu_custom_call.1} parent=1 // pred_check_branch
      %4411 = sbr.rel (0) target = $region57
    $region56: #{tpu_custom_call.1} parent=1 // pred_region
      %4413 = dma.done [#allocation5], 128
    $region57: #{tpu_custom_call.1} parent=1 // pred_fallthru
      _
    %4414 = vsyncpa [#allocation4], 1
    %4415 = vsyncpa [#allocation7], 1
    %4416 = vsyncpa [#allocation10], 1
    %4417 = vsyncpa [#allocation13], 1
    %4418 = vsyncpa [#allocation5], 1

</llo_original>
